<compile_context>
chip_gen: v6e
topology: v6e:2x2x1
jax: 0.10.0
libtpu: 0.0.40
codegen_flags: <defaults>
</compile_context>

<pallas_src>
import functools

import jax
import jax.numpy as jnp
from jax.experimental import pallas as pl
from jax.experimental.pallas import tpu as pltpu


def _round_up(x, m):
    return (x + m - 1) // m * m


def _physical_vmem_bytes():
    """Best-effort physical VMEM capacity; conservative (v7x) fallback."""
    try:
        info = pltpu.get_tpu_info()
        cap = getattr(info, "vmem_capacity_bytes", None)
        if cap:
            return int(cap)
    except Exception:
        pass
    return 64 * 1024 * 1024


def _padded_vmem_bytes(shape, dtype):
    """Rough VMEM footprint of a tile after (sublane, lane) padding."""
    itemsize = jnp.dtype(dtype).itemsize
    packing = max(1, 4 // itemsize)
    lanes = _round_up(int(shape[-1]), 128)
    subl = _round_up(int(shape[-2]), 8 * packing)
    lead = 1
    for d in shape[:-2]:
        lead *= int(d)
    return lead * subl * lanes * itemsize


def _conv_kernel(x_ref, w_ref, o_ref, *scratch, K, stride, THO, Wo_p, Cin,
                 use_im2col):
    """One (batch, Ho-tile, Cout-tile) grid step.

    x_ref : (1, s*s, Hq, Wq, Cin)   phase-decomposed zero-padded input, bf16
    w_ref : (K*K*Cin, TCO)          flattened filter tile, bf16
    o_ref : (1, THO*Wo_p, TCO)      lane-dense output tile
    scratch (im2col path only): (THO, Wo_p, K*K*Cin) bf16 VMEM slab
    """
    s = stride
    ho = pl.program_id(1)
    rows = THO * Wo_p
    KKC = K * K * Cin

    def tap(kh, kw):
        # Contiguous read of the (kh, kw) tap for this Ho tile (phase trick
        # makes stride>1 contiguous too).
        phase = (kh % s) * s + (kw % s)
        return x_ref[0, phase,
                     pl.ds(ho * THO + kh // s, THO),
                     pl.ds(kw // s, Wo_p), :]

    if use_im2col:
        col_ref = scratch[0]

        # Build the slab only on the first Cout tile of this (n, ho) — it is
        # reused by every subsequent co step (co axis is "arbitrary").
        @pl.when(pl.program_id(2) == 0)
        def _build_im2col():
            for kh in range(K):
                for kw in range(K):
                    t = kh * K + kw
                    col_ref[:, :, t * Cin:(t + 1) * Cin] = tap(kh, kw)

        # Single MXU matmul: (rows, KKC) x (KKC, TCO), bf16 in / f32 acc.
        patch = col_ref[...].reshape(rows, KKC)
        o_ref[0] = jnp.dot(patch, w_ref[...],
                           preferred_element_type=jnp.float32).astype(o_ref.dtype)
    else:
        # Cin is already a multiple of 128: each tap fills the MXU contraction,
        # so skip the slab and accumulate K*K dots directly.
        acc = jnp.zeros((rows, o_ref.shape[-1]), jnp.float32)
        for kh in range(K):
            for kw in range(K):
                t = kh * K + kw
                acc = acc + jnp.dot(tap(kh, kw).reshape(rows, Cin),
                                    w_ref[t * Cin:(t + 1) * Cin, :],
                                    preferred_element_type=jnp.float32)
        o_ref[0] = acc.astype(o_ref.dtype)


def conv_forward(x_nchw, weight_oihw, stride=1):
    """nn.Conv2d(Cin, Cout, K, stride, padding=(K-1)//2, bias=False).forward."""
    N, Cin, H, W = x_nchw.shape
    Cout, Cin_w, K, K2 = weight_oihw.shape
    assert Cin == Cin_w and K == K2
    s = int(stride)
    pad = (K - 1) // 2
    Ho = (H + 2 * pad - K) // s + 1
    Wo = (W + 2 * pad - K) // s + 1
    out_dtype = x_nchw.dtype

    CO_P = _round_up(Cout, 128)          # lane-dense output channels
    KKC = K * K * Cin                    # matmul contraction depth
    Wo_p = _round_up(Wo, 8)              # sublane-friendly output width
    halo = (K - 1) // s                  # extra rows/cols needed per tap
    use_im2col = (Cin % 128 != 0)

    # ---- VMEM-budgeted tile selection -------------------------------------
    phys_vmem = _physical_vmem_bytes()
    budget = int(phys_vmem * 0.55)

    def footprint(tho, tco):
        n_ho_l = -(-Ho // tho)
        hq = n_ho_l * tho + halo
        wq = Wo_p + halo
        xb = _padded_vmem_bytes((s * s * hq, wq, Cin), jnp.bfloat16)
        wb = _padded_vmem_bytes((KKC, tco), jnp.bfloat16)
        ob = _padded_vmem_bytes((tho * Wo_p, tco), out_dtype)
        extra = 0
        if use_im2col:
            extra += _padded_vmem_bytes((tho, Wo_p, KKC), jnp.bfloat16)
        else:
            extra += _padded_vmem_bytes((tho * Wo_p, tco), jnp.float32)
        return 2 * xb + 2 * wb + 2 * ob + extra + (2 << 20)

    # Cout tile: hold the whole (padded) filter resident when it is modest so
    # weights are DMA'd once; otherwise tile it 256/128 wide.
    tco_cands = []
    if CO_P <= 512:
        tco_cands.append(CO_P)
    if CO_P % 256 == 0 and 256 not in tco_cands:
        tco_cands.append(256)
    if 128 not in tco_cands:
        tco_cands.append(128)

    THO = TCO = None
    for tco in tco_cands:
        tho = Ho
        while tho > 4 and footprint(tho, tco) > budget:
            tho = (tho + 1) // 2
        if footprint(tho, tco) <= budget:
            THO, TCO = tho, tco
            break
    if THO is None:                      # best effort for pathological shapes
        THO, TCO = min(Ho, 4), 128

    n_ho = -(-Ho // THO)
    Ho_p = n_ho * THO
    n_co = CO_P // TCO
    Hq = Ho_p + halo
    Wq = Wo_p + halo

    fp = footprint(THO, TCO)
    desired = max(int(fp * 1.3) + (8 << 20), 48 << 20)
    vmem_limit = max(min(int(phys_vmem * 0.85), desired), int(fp) + (4 << 20))

    # ---- Operand prep (wrapper side) --------------------------------------
    # NCHW -> NHWC, bf16, zero-pad to exactly (s*Hq, s*Wq) spatial.
    x = jnp.transpose(x_nchw, (0, 2, 3, 1)).astype(jnp.bfloat16)
    Hp_t, Wp_t = s * Hq, s * Wq
    x = jnp.pad(x, ((0, 0),
                    (pad, max(Hp_t - H - pad, 0)),
                    (pad, max(Wp_t - W - pad, 0)),
                    (0, 0)))
    x = x[:, :Hp_t, :Wp_t, :]
    # Phase decomposition: x_ph[n, a*s+b, p, q, c] = x_pad[n, p*s+a, q*s+b, c].
    # Makes every stride-s tap read contiguous inside the kernel.
    x_ph = x.reshape(N, Hq, s, Wq, s, Cin)
    x_ph = jnp.transpose(x_ph, (0, 2, 4, 1, 3, 5)).reshape(N, s * s, Hq, Wq, Cin)

    # OIHW -> (K, K, Cin, Cout) -> pad Cout -> (KKC, CO_P), bf16.
    w = jnp.transpose(weight_oihw, (2, 3, 1, 0)).astype(jnp.bfloat16)
    w = jnp.pad(w, ((0, 0), (0, 0), (0, 0), (0, CO_P - Cout))).reshape(KKC, CO_P)

    kernel = functools.partial(_conv_kernel, K=K, stride=s, THO=THO, Wo_p=Wo_p,
                               Cin=Cin, use_im2col=use_im2col)
    scratch = ([pltpu.VMEM((THO, Wo_p, KKC), jnp.bfloat16)]
               if use_im2col else [])

    flops = 2 * N * Ho_p * Wo_p * KKC * CO_P
    w_bytes = KKC * CO_P * 2
    w_fetches = (N * n_ho * n_co) if n_co > 1 else 1
    bytes_accessed = (x_ph.size * x_ph.dtype.itemsize
                      + w_fetches * w_bytes
                      + N * Ho_p * Wo_p * CO_P * jnp.dtype(out_dtype).itemsize)

    out = pl.pallas_call(
        kernel,
        out_shape=jax.ShapeDtypeStruct((N, Ho_p * Wo_p, CO_P), out_dtype),
        grid=(N, n_ho, n_co),
        in_specs=[
            pl.BlockSpec((1, s * s, Hq, Wq, Cin),
                         lambda n, ho, co: (n, 0, 0, 0, 0)),
            pl.BlockSpec((KKC, TCO), lambda n, ho, co: (0, co)),
        ],
        out_specs=pl.BlockSpec((1, THO * Wo_p, TCO),
                               lambda n, ho, co: (n, ho, co)),
        scratch_shapes=scratch,
        compiler_params=pltpu.CompilerParams(
            # co must stay "arbitrary" so the @pl.when(co==0) im2col-reuse
            # guard is safe under megacore sharding of the parallel axes.
            dimension_semantics=("parallel", "parallel", "arbitrary"),
            vmem_limit_bytes=vmem_limit,
        ),
        cost_estimate=pl.CostEstimate(flops=flops, transcendentals=0,
                                      bytes_accessed=int(bytes_accessed)),
    )(x_ph, w)

    # Drop spatial/Cout padding, back to PyTorch NCHW. The (Ho_p, Wo_p) split
    # of the flat row dim is a free row-major reshape.
    out = out.reshape(N, Ho_p, Wo_p, CO_P)[:, :Ho, :Wo, :Cout]
    return jnp.transpose(out, (0, 3, 1, 2))


if __name__ == "__main__":
    base_key = jax.random.PRNGKey(0)

    def run_case(idx, N, Cin, H, W, Cout, K, stride):
        kx, kw = jax.random.split(jax.random.fold_in(base_key, idx))
        x = jax.random.normal(kx, (N, Cin, H, W), dtype=jnp.float32)
        w = jax.random.normal(kw, (Cout, Cin, K, K), dtype=jnp.float32) * 0.1

        out = jax.block_until_ready(conv_forward(x, w, stride=stride))

        pad = (K - 1) // 2
        ref_bf16 = jax.lax.conv_general_dilated(
            x.astype(jnp.bfloat16), w.astype(jnp.bfloat16),
            window_strides=(stride, stride),
            padding=((pad, pad), (pad, pad)),
            dimension_numbers=("NCHW", "OIHW", "NCHW"),
            preferred_element_type=jnp.float32)
        ref_f32 = jax.lax.conv_general_dilated(
            x, w, window_strides=(stride, stride),
            padding=((pad, pad), (pad, pad)),
            dimension_numbers=("NCHW", "OIHW", "NCHW"))

        assert out.shape == ref_f32.shape, (idx, out.shape, ref_f32.shape)
        assert bool(jnp.allclose(out, ref_bf16, atol=1e-2, rtol=1e-2)), (
            f"case {idx}: mismatch vs bf16 reference")
        assert bool(jnp.allclose(out, ref_f32, atol=8e-2, rtol=5e-2)), (
            f"case {idx}: mismatch vs f32 reference")

    # Small deterministic cases exercising every code path.
    run_case(0, N=2, Cin=4, H=16, W=16, Cout=8, K=3, stride=1)      # small-Cin im2col path
    run_case(1, N=1, Cin=4, H=17, W=13, Cout=8, K=3, stride=2)      # stride-2, odd spatial, Wo%8!=0
    run_case(2, N=2, Cin=128, H=16, W=16, Cout=128, K=3, stride=1)  # Cin%128==0 direct fast path
    run_case(3, N=1, Cin=8, H=9, W=9, Cout=16, K=1, stride=1)       # 1x1 conv (no halo)

    print("KERNEL_OK")
</pallas_src>

<mosaic_0001>
module attributes {stable_mosaic.version = 11 : i64} {
  func.func @_conv_kernel(%arg0: i32, %arg1: i32, %arg2: i32, %arg3: memref<1x1x18x18x4xbf16, #tpu.memory_space<vmem>>, %arg4: memref<36x128xbf16, #tpu.memory_space<vmem>>, %arg5: memref<1x256x128xf32, #tpu.memory_space<vmem>>, %arg6: memref<16x16x36xbf16, #tpu.memory_space<vmem>>) attributes {dimension_semantics = [#tpu.dimension_semantics<parallel>, #tpu.dimension_semantics<parallel>, #tpu.dimension_semantics<arbitrary>], iteration_bounds = array<i64: 2, 1, 1>, scalar_prefetch = 0 : i64, scratch_operands = 1 : i64, tpu.core_type = #tpu.core_type<tc>, window_params = [{transform_indices = @transform_0, window_bounds = array<i64: 1, 1, 18, 18, 4>}, {transform_indices = @transform_1, window_bounds = array<i64: 36, 128>}, {transform_indices = @transform_2, window_bounds = array<i64: 1, 256, 128>}]} {
    %c0_i32 = arith.constant 0 : i32
    %0 = arith.cmpi eq, %arg2, %c0_i32 : i32
    %1 = arith.extui %0 : i1 to i32
    %c0_i32_0 = arith.constant 0 : i32
    %2 = arith.cmpi ne, %1, %c0_i32_0 : i32
    scf.if %2 {
      %c16_i32 = arith.constant 16 : i32
      %10 = arith.muli %arg1, %c16_i32 : i32
      %c0_i32_8 = arith.constant 0 : i32
      %11 = arith.addi %10, %c0_i32_8 : i32
      %c0_9 = arith.constant 0 : index
      %c0_10 = arith.constant 0 : index
      %12 = arith.index_cast %11 : i32 to index
      %c0_11 = arith.constant 0 : index
      %c0_12 = arith.constant 0 : index
      %13 = vector.load %arg3[%c0_9, %c0_10, %12, %c0_11, %c0_12] : memref<1x1x18x18x4xbf16, #tpu.memory_space<vmem>>, vector<1x1x16x16x4xbf16>
      %14 = vector.shape_cast %13 : vector<1x1x16x16x4xbf16> to vector<16x16x4xbf16>
      %c0_13 = arith.constant 0 : index
      %c0_14 = arith.constant 0 : index
      %c0_15 = arith.constant 0 : index
      %15 = vector.load %arg6[%c0_13, %c0_14, %c0_15] : memref<16x16x36xbf16, #tpu.memory_space<vmem>>, vector<16x16x4xbf16>
      tpu.vector_store %arg6[%c0_13, %c0_14, %c0_15], %14 {strides = array<i32>} : memref<16x16x36xbf16, #tpu.memory_space<vmem>>, vector<16x16x4xbf16>,
      %c16_i32_16 = arith.constant 16 : i32
      %16 = arith.muli %arg1, %c16_i32_16 : i32
      %c0_i32_17 = arith.constant 0 : i32
      %17 = arith.addi %16, %c0_i32_17 : i32
      %c0_18 = arith.constant 0 : index
      %c0_19 = arith.constant 0 : index
      %18 = arith.index_cast %17 : i32 to index
      %c1 = arith.constant 1 : index
      %c0_20 = arith.constant 0 : index
      %19 = vector.load %arg3[%c0_18, %c0_19, %18, %c1, %c0_20] : memref<1x1x18x18x4xbf16, #tpu.memory_space<vmem>>, vector<1x1x16x16x4xbf16>
      %20 = vector.shape_cast %19 : vector<1x1x16x16x4xbf16> to vector<16x16x4xbf16>
      %c0_21 = arith.constant 0 : index
      %c0_22 = arith.constant 0 : index
      %c4 = arith.constant 4 : index
      %21 = vector.load %arg6[%c0_21, %c0_22, %c4] : memref<16x16x36xbf16, #tpu.memory_space<vmem>>, vector<16x16x4xbf16>
      tpu.vector_store %arg6[%c0_21, %c0_22, %c4], %20 {strides = array<i32>} : memref<16x16x36xbf16, #tpu.memory_space<vmem>>, vector<16x16x4xbf16>,
      %c16_i32_23 = arith.constant 16 : i32
      %22 = arith.muli %arg1, %c16_i32_23 : i32
      %c0_i32_24 = arith.constant 0 : i32
      %23 = arith.addi %22, %c0_i32_24 : i32
      %c0_25 = arith.constant 0 : index
      %c0_26 = arith.constant 0 : index
      %24 = arith.index_cast %23 : i32 to index
      %c2 = arith.constant 2 : index
      %c0_27 = arith.constant 0 : index
      %25 = vector.load %arg3[%c0_25, %c0_26, %24, %c2, %c0_27] : memref<1x1x18x18x4xbf16, #tpu.memory_space<vmem>>, vector<1x1x16x16x4xbf16>
      %26 = vector.shape_cast %25 : vector<1x1x16x16x4xbf16> to vector<16x16x4xbf16>
      %c0_28 = arith.constant 0 : index
      %c0_29 = arith.constant 0 : index
      %c8 = arith.constant 8 : index
      %27 = vector.load %arg6[%c0_28, %c0_29, %c8] : memref<16x16x36xbf16, #tpu.memory_space<vmem>>, vector<16x16x4xbf16>
      tpu.vector_store %arg6[%c0_28, %c0_29, %c8], %26 {strides = array<i32>} : memref<16x16x36xbf16, #tpu.memory_space<vmem>>, vector<16x16x4xbf16>,
      %c16_i32_30 = arith.constant 16 : i32
      %28 = arith.muli %arg1, %c16_i32_30 : i32
      %c1_i32 = arith.constant 1 : i32
      %29 = arith.addi %28, %c1_i32 : i32
      %c0_31 = arith.constant 0 : index
      %c0_32 = arith.constant 0 : index
      %30 = arith.index_cast %29 : i32 to index
      %c0_33 = arith.constant 0 : index
      %c0_34 = arith.constant 0 : index
      %31 = vector.load %arg3[%c0_31, %c0_32, %30, %c0_33, %c0_34] : memref<1x1x18x18x4xbf16, #tpu.memory_space<vmem>>, vector<1x1x16x16x4xbf16>
      %32 = vector.shape_cast %31 : vector<1x1x16x16x4xbf16> to vector<16x16x4xbf16>
      %c0_35 = arith.constant 0 : index
      %c0_36 = arith.constant 0 : index
      %c12 = arith.constant 12 : index
      %33 = vector.load %arg6[%c0_35, %c0_36, %c12] : memref<16x16x36xbf16, #tpu.memory_space<vmem>>, vector<16x16x4xbf16>
      tpu.vector_store %arg6[%c0_35, %c0_36, %c12], %32 {strides = array<i32>} : memref<16x16x36xbf16, #tpu.memory_space<vmem>>, vector<16x16x4xbf16>,
      %c16_i32_37 = arith.constant 16 : i32
      %34 = arith.muli %arg1, %c16_i32_37 : i32
      %c1_i32_38 = arith.constant 1 : i32
      %35 = arith.addi %34, %c1_i32_38 : i32
      %c0_39 = arith.constant 0 : index
      %c0_40 = arith.constant 0 : index
      %36 = arith.index_cast %35 : i32 to index
      %c1_41 = arith.constant 1 : index
      %c0_42 = arith.constant 0 : index
      %37 = vector.load %arg3[%c0_39, %c0_40, %36, %c1_41, %c0_42] : memref<1x1x18x18x4xbf16, #tpu.memory_space<vmem>>, vector<1x1x16x16x4xbf16>
      %38 = vector.shape_cast %37 : vector<1x1x16x16x4xbf16> to vector<16x16x4xbf16>
      %c0_43 = arith.constant 0 : index
      %c0_44 = arith.constant 0 : index
      %c16 = arith.constant 16 : index
      %39 = vector.load %arg6[%c0_43, %c0_44, %c16] : memref<16x16x36xbf16, #tpu.memory_space<vmem>>, vector<16x16x4xbf16>
      tpu.vector_store %arg6[%c0_43, %c0_44, %c16], %38 {strides = array<i32>} : memref<16x16x36xbf16, #tpu.memory_space<vmem>>, vector<16x16x4xbf16>,
      %c16_i32_45 = arith.constant 16 : i32
      %40 = arith.muli %arg1, %c16_i32_45 : i32
      %c1_i32_46 = arith.constant 1 : i32
      %41 = arith.addi %40, %c1_i32_46 : i32
      %c0_47 = arith.constant 0 : index
      %c0_48 = arith.constant 0 : index
      %42 = arith.index_cast %41 : i32 to index
      %c2_49 = arith.constant 2 : index
      %c0_50 = arith.constant 0 : index
      %43 = vector.load %arg3[%c0_47, %c0_48, %42, %c2_49, %c0_50] : memref<1x1x18x18x4xbf16, #tpu.memory_space<vmem>>, vector<1x1x16x16x4xbf16>
      %44 = vector.shape_cast %43 : vector<1x1x16x16x4xbf16> to vector<16x16x4xbf16>
      %c0_51 = arith.constant 0 : index
      %c0_52 = arith.constant 0 : index
      %c20 = arith.constant 20 : index
      %45 = vector.load %arg6[%c0_51, %c0_52, %c20] : memref<16x16x36xbf16, #tpu.memory_space<vmem>>, vector<16x16x4xbf16>
      tpu.vector_store %arg6[%c0_51, %c0_52, %c20], %44 {strides = array<i32>} : memref<16x16x36xbf16, #tpu.memory_space<vmem>>, vector<16x16x4xbf16>,
      %c16_i32_53 = arith.constant 16 : i32
      %46 = arith.muli %arg1, %c16_i32_53 : i32
      %c2_i32 = arith.constant 2 : i32
      %47 = arith.addi %46, %c2_i32 : i32
      %c0_54 = arith.constant 0 : index
      %c0_55 = arith.constant 0 : index
      %48 = arith.index_cast %47 : i32 to index
      %c0_56 = arith.constant 0 : index
      %c0_57 = arith.constant 0 : index
      %49 = vector.load %arg3[%c0_54, %c0_55, %48, %c0_56, %c0_57] : memref<1x1x18x18x4xbf16, #tpu.memory_space<vmem>>, vector<1x1x16x16x4xbf16>
      %50 = vector.shape_cast %49 : vector<1x1x16x16x4xbf16> to vector<16x16x4xbf16>
      %c0_58 = arith.constant 0 : index
      %c0_59 = arith.constant 0 : index
      %c24 = arith.constant 24 : index
      %51 = vector.load %arg6[%c0_58, %c0_59, %c24] : memref<16x16x36xbf16, #tpu.memory_space<vmem>>, vector<16x16x4xbf16>
      tpu.vector_store %arg6[%c0_58, %c0_59, %c24], %50 {strides = array<i32>} : memref<16x16x36xbf16, #tpu.memory_space<vmem>>, vector<16x16x4xbf16>,
      %c16_i32_60 = arith.constant 16 : i32
      %52 = arith.muli %arg1, %c16_i32_60 : i32
      %c2_i32_61 = arith.constant 2 : i32
      %53 = arith.addi %52, %c2_i32_61 : i32
      %c0_62 = arith.constant 0 : index
      %c0_63 = arith.constant 0 : index
      %54 = arith.index_cast %53 : i32 to index
      %c1_64 = arith.constant 1 : index
      %c0_65 = arith.constant 0 : index
      %55 = vector.load %arg3[%c0_62, %c0_63, %54, %c1_64, %c0_65] : memref<1x1x18x18x4xbf16, #tpu.memory_space<vmem>>, vector<1x1x16x16x4xbf16>
      %56 = vector.shape_cast %55 : vector<1x1x16x16x4xbf16> to vector<16x16x4xbf16>
      %c0_66 = arith.constant 0 : index
      %c0_67 = arith.constant 0 : index
      %c28 = arith.constant 28 : index
      %57 = vector.load %arg6[%c0_66, %c0_67, %c28] : memref<16x16x36xbf16, #tpu.memory_space<vmem>>, vector<16x16x4xbf16>
      tpu.vector_store %arg6[%c0_66, %c0_67, %c28], %56 {strides = array<i32>} : memref<16x16x36xbf16, #tpu.memory_space<vmem>>, vector<16x16x4xbf16>,
      %c16_i32_68 = arith.constant 16 : i32
      %58 = arith.muli %arg1, %c16_i32_68 : i32
      %c2_i32_69 = arith.constant 2 : i32
      %59 = arith.addi %58, %c2_i32_69 : i32
      %c0_70 = arith.constant 0 : index
      %c0_71 = arith.constant 0 : index
      %60 = arith.index_cast %59 : i32 to index
      %c2_72 = arith.constant 2 : index
      %c0_73 = arith.constant 0 : index
      %61 = vector.load %arg3[%c0_70, %c0_71, %60, %c2_72, %c0_73] : memref<1x1x18x18x4xbf16, #tpu.memory_space<vmem>>, vector<1x1x16x16x4xbf16>
      %62 = vector.shape_cast %61 : vector<1x1x16x16x4xbf16> to vector<16x16x4xbf16>
      %c0_74 = arith.constant 0 : index
      %c0_75 = arith.constant 0 : index
      %c32 = arith.constant 32 : index
      %63 = vector.load %arg6[%c0_74, %c0_75, %c32] : memref<16x16x36xbf16, #tpu.memory_space<vmem>>, vector<16x16x4xbf16>
      tpu.vector_store %arg6[%c0_74, %c0_75, %c32], %62 {strides = array<i32>} : memref<16x16x36xbf16, #tpu.memory_space<vmem>>, vector<16x16x4xbf16>,
    } else {
    }
    %c0 = arith.constant 0 : index
    %c0_1 = arith.constant 0 : index
    %c0_2 = arith.constant 0 : index
    %3 = vector.load %arg6[%c0, %c0_1, %c0_2] : memref<16x16x36xbf16, #tpu.memory_space<vmem>>, vector<16x16x36xbf16>
    %4 = vector.shape_cast %3 : vector<16x16x36xbf16> to vector<256x36xbf16>
    %c0_3 = arith.constant 0 : index
    %c0_4 = arith.constant 0 : index
    %5 = vector.load %arg4[%c0_3, %c0_4] : memref<36x128xbf16, #tpu.memory_space<vmem>>, vector<36x128xbf16>
    %cst = arith.constant dense<0.000000e+00> : vector<256x128xf32>
    %6 = tpu.matmul %4, %5, %cst {dimension_numbers = #tpu.dot_dimension_numbers<[1], [0], [0], [1], [0, 0, 1, 1], [], []>} : vector<256x36xbf16>, vector<36x128xbf16>, vector<256x128xf32> -> vector<256x128xf32>
    %c0_5 = arith.constant 0 : index
    %c0_6 = arith.constant 0 : index
    %c0_7 = arith.constant 0 : index
    %7 = vector.load %arg5[%c0_5, %c0_6, %c0_7] : memref<1x256x128xf32, #tpu.memory_space<vmem>>, vector<1x256x128xf32>
    %8 = vector.shape_cast %7 : vector<1x256x128xf32> to vector<256x128xf32>
    %9 = vector.shape_cast %6 : vector<256x128xf32> to vector<1x256x128xf32>
    tpu.vector_store %arg5[%c0_5, %c0_6, %c0_7], %9 {strides = array<i32>} : memref<1x256x128xf32, #tpu.memory_space<vmem>>, vector<1x256x128xf32>,
    return
  }
  func.func @transform_0(%arg0: i32, %arg1: i32, %arg2: i32) -> (i32, i32, i32, i32, i32) {
    %c0_i32 = arith.constant 0 : i32
    %c0_i32_0 = arith.constant 0 : i32
    %c0_i32_1 = arith.constant 0 : i32
    %c0_i32_2 = arith.constant 0 : i32
    %c0_i32_3 = arith.constant 0 : i32
    return %arg0, %c0_i32, %c0_i32_0, %c0_i32_1, %c0_i32_2 : i32, i32, i32, i32, i32
  }
  func.func @transform_1(%arg0: i32, %arg1: i32, %arg2: i32) -> (i32, i32) {
    %c0_i32 = arith.constant 0 : i32
    %c0_i32_0 = arith.constant 0 : i32
    return %c0_i32, %arg2 : i32, i32
  }
  func.func @transform_2(%arg0: i32, %arg1: i32, %arg2: i32) -> (i32, i32, i32) {
    %c0_i32 = arith.constant 0 : i32
    return %arg0, %arg1, %arg2 : i32, i32, i32
  }
}

</mosaic_0001>

<llo_original>
// kernel: tpu_custom_call.1
$region0: #{tpu_custom_call.1}
  #allocation0 [shape = 'u32[]', space=smem, size = 0x4, offset = 0x4, fixed_abs, tag = 'smem constant byte address 0x4 - core index']
  #allocation1 [shape = 'u32[144,128]{1,0:T(1,128)}', space=vmem, size = 0x12000, scoped, tag = 'internal scratch']
  #allocation2 [shape = 'bf16[16,16,36]{2,1,0:T(8,128)(2,1)}', space=vmem, size = 0x10000, scoped, tag = 'scratch operand']
  %s0 = inlined_call_operand.vmem [shape: bf16[2,1,18,18,4], index: 0, kind: input, shape index: {}]
  %s1 = inlined_call_operand.vmem [shape: bf16[36,128], index: 1, kind: input, shape index: {}]
  %s2 = inlined_call_operand.hbm [shape: f32[2,256,128], index: 2, kind: output, shape index: {}]
  %s3 = sld [smem:[#allocation0]]
  $region45: #{tpu_custom_call.1} parent=0
    _
  %s5 = ssub.s32 1, %s3
  %s6 = scalar_select 0, %s5, %s3
  $region1: #{tpu_custom_call.1} parent=0
    #allocation3 [shape = 'u8[262144]{0}', space=vmem, size = 0x40000, scoped, tag = 'output window, operand 0']
    #allocation4 [shape = 's32[2]{0}', space=sflag, size = 0x8, scoped, tag = 'scoped memory for tpu_custom_call.1']
    %7 = vsyncpa [#allocation4], 0
    %s8 = scalar_lea.sflag [#allocation4], 1
    %9 = vsyncpa %s8, 0
    loop: start=0, step=1, limit=4
    $region2: #{tpu_custom_call.1} parent=1 // loop_pre_header
      _
    $region3: #{tpu_custom_call.1} parent=1 // loop_header
      %s11 = sphi 0, %s15
      %p12 = scmp.ge.s32.totalorder %s11, 4
      %s18 = sphi 0, %s37
      %s19 = sphi 0, %s33
      %s20 = sphi 0, %s29
      %s21 = sphi 0, %s18
      %s22 = sphi 0, %s19
      %s23 = sphi 0, %s20
      %s24 = sphi 0, %s21
      %s25 = sphi 0, %s22
      %s26 = sphi 0, %s23
      %s40 = sphi 0, %s42
      %s43 = sphi 0, %s40
      %s44 = sphi 0, %s43
      %s60 = sphi 0, %s44
      %s66 = sphi 0, %s68
      %s69 = sphi 0, %s66
      %s70 = sphi 0, %s69
      %s86 = sphi 0, %s70
      %s96 = sphi 0, %s98
      %s99 = sphi 0, %s96
      %s100 = sphi 0, %s99
      %s116 = sphi 0, %s100
    $region4: #{tpu_custom_call.1} parent=1 // loop_header_branch
      %14 = sbr.rel (%p12) target = $region8
    $region5: #{tpu_custom_call.1} parent=1 // loop_body
      %s16 = ssub.s32 %s11, 1
      %s17 = ssub.s32 %s11, 2
      %s27 = sadd.s32 1, %s20
      %p28 = scmp.ge.s32.totalorder %s27, 1
      %s29 = scalar_select %p28, 0, %s27
      %s30 = sadd.s32 1, %s19
      %s31 = scalar_select %p28, %s30, %s19
      %p32 = scmp.ge.s32.totalorder %s31, 1
      %s33 = scalar_select %p32, 0, %s31
      %s34 = sadd.s32 1, %s18
      %s35 = scalar_select %p32, %s34, %s18
      %p36 = scmp.ge.s32.totalorder %s35, 2
      %s37 = scalar_select %p36, 0, %s35
      %s38 = ssub.s32 %s18, %s37
      %p39 = scmp.eq.s32.totalorder %s38, 0
      %s41 = sadd.s32 %s40, 1
      %s42 = scalar_select %p39, %s40, %s41
      %p45 = pneg %p39
      %p46 = scmp.eq.s32.totalorder %s11, 1
      %p47 = por %p45, %p46
      %p48 = scmp.ne.s32.totalorder %s40, %s43
      %p49 = scmp.eq.s32.totalorder %s11, 0
      %p50 = por %p48, %p49
      %p51 = scmp.ne.s32.totalorder %s40, %s43
      %p52 = scmp.eq.s32.totalorder %s16, 1
      %p53 = por %p51, %p52
      %p54 = scmp.ne.s32.totalorder %s43, %s44
      %p55 = scmp.eq.s32.totalorder %s16, 0
      %p56 = por %p54, %p55
      %p57 = scmp.ne.s32.totalorder %s43, %s44
      %p58 = scmp.eq.s32.totalorder %s17, 1
      %p59 = por %p57, %p58
      %p61 = scmp.ne.s32.totalorder %s44, %s60
      %p62 = scmp.eq.s32.totalorder %s17, 0
      %p63 = por %p61, %p62
      %s64 = ssub.s32 %s20, %s29
      %p65 = scmp.eq.s32.totalorder %s64, 0
      %s67 = sadd.s32 %s66, 1
      %s68 = scalar_select %p65, %s66, %s67
      %p71 = pneg %p65
      %p72 = scmp.eq.s32.totalorder %s11, 1
      %p73 = por %p71, %p72
      %p74 = scmp.ne.s32.totalorder %s66, %s69
      %p75 = scmp.eq.s32.totalorder %s11, 0
      %p76 = por %p74, %p75
      %p77 = scmp.ne.s32.totalorder %s66, %s69
      %p78 = scmp.eq.s32.totalorder %s16, 1
      %p79 = por %p77, %p78
      %p80 = scmp.ne.s32.totalorder %s69, %s70
      %p81 = scmp.eq.s32.totalorder %s16, 0
      %p82 = por %p80, %p81
      %p83 = scmp.ne.s32.totalorder %s69, %s70
      %p84 = scmp.eq.s32.totalorder %s17, 1
      %p85 = por %p83, %p84
      %p87 = scmp.ne.s32.totalorder %s70, %s86
      %p88 = scmp.eq.s32.totalorder %s17, 0
      %p89 = por %p87, %p88
      %s90 = ssub.s32 %s18, %s37
      %s91 = ssub.s32 %s19, %s33
      %s92 = sor.u32 %s90, %s91
      %s93 = ssub.s32 %s20, %s29
      %s94 = sor.u32 %s92, %s93
      %p95 = scmp.eq.s32.totalorder %s94, 0
      %s97 = sadd.s32 %s96, 1
      %s98 = scalar_select %p95, %s96, %s97
      %p101 = pneg %p95
      %p102 = scmp.eq.s32.totalorder %s11, 1
      %p103 = por %p101, %p102
      %p104 = scmp.ne.s32.totalorder %s96, %s99
      %p105 = scmp.eq.s32.totalorder %s11, 0
      %p106 = por %p104, %p105
      %p107 = scmp.ne.s32.totalorder %s96, %s99
      %p108 = scmp.eq.s32.totalorder %s16, 1
      %p109 = por %p107, %p108
      %p110 = scmp.ne.s32.totalorder %s99, %s100
      %p111 = scmp.eq.s32.totalorder %s16, 0
      %p112 = por %p110, %p111
      %p113 = scmp.ne.s32.totalorder %s99, %s100
      %p114 = scmp.eq.s32.totalorder %s17, 1
      %p115 = por %p113, %p114
      %p117 = scmp.ne.s32.totalorder %s100, %s116
      %p118 = scmp.eq.s32.totalorder %s17, 0
      %p119 = por %p117, %p118
      %p120 = scmp.le.s32.totalorder 1, %s11
      %p121 = scmp.lt.s32.totalorder %s11, 3
      %p122 = pnand %p120, %p121
      %p123 = pneg %p122
      // Predicated region
      $region9: #{tpu_custom_call.1} parent=5 // pred_check
        _
      $region10: #{tpu_custom_call.1} parent=5 // pred_check_branch
        %125 = sbr.rel (%p122) target = $region12
      $region11: #{tpu_custom_call.1} parent=5 // pred_region
        %s126 = ssub.s32 %s11, 1
        // Predicated region
        $region13: #{tpu_custom_call.1} parent=11 // pred_check
          %p127 = pneg %p82
        $region14: #{tpu_custom_call.1} parent=11 // pred_check_branch
          %129 = sbr.rel (%p127) target = $region16
        $region15: #{tpu_custom_call.1} parent=11 // pred_region
          %p130 = scmp.lt.s32.totalorder %s23, 0
          %s131 = scalar_select %p130, %s23, 0
          %s132 = smul.addr %s131, 4
          %s133 = scalar_lea.vmem %s1, %s132
        $region16: #{tpu_custom_call.1} parent=11 // pred_fallthru
          _
      $region12: #{tpu_custom_call.1} parent=5 // pred_fallthru
        _
      %p134 = scmp.lt.s32.totalorder %s11, 2
      // Predicated region
      $region17: #{tpu_custom_call.1} parent=5 // pred_check
        %p135 = pneg %p134
      $region18: #{tpu_custom_call.1} parent=5 // pred_check_branch
        %137 = sbr.rel (%p135) target = $region20
      $region19: #{tpu_custom_call.1} parent=5 // pred_region
        // Predicated region
        $region21: #{tpu_custom_call.1} parent=19 // pred_check
          %p138 = pneg %p50
        $region22: #{tpu_custom_call.1} parent=19 // pred_check_branch
          %140 = sbr.rel (%p138) target = $region24
        $region23: #{tpu_custom_call.1} parent=19 // pred_region
          %p141 = scmp.lt.s32.totalorder %s18, 1
          %s142 = scalar_select %p141, %s18, 1
          %s143 = smul.addr %s142, 54
          %s144 = smul.addr %s143, 4
          %s145 = scalar_lea.vmem %s0, %s144
        $region24: #{tpu_custom_call.1} parent=19 // pred_fallthru
          _
      $region20: #{tpu_custom_call.1} parent=5 // pred_fallthru
        _
      %p146 = scmp.le.s32.totalorder 1, %s11
      %p147 = scmp.lt.s32.totalorder %s11, 3
      %p148 = pnand %p146, %p147
      %p149 = pneg %p148
      // Predicated region
      $region25: #{tpu_custom_call.1} parent=5 // pred_check
        _
      $region26: #{tpu_custom_call.1} parent=5 // pred_check_branch
        %151 = sbr.rel (%p148) target = $region28
      $region27: #{tpu_custom_call.1} parent=5 // pred_region
        %s152 = ssub.s32 %s11, 1
        %p153 = scmp.lt.s32.totalorder %s21, 1
        %s154 = scalar_select %p153, %s21, 1
        %s155 = smul.addr %s154, 54
        %s156 = smul.addr %s155, 4
        %s157 = scalar_lea.vmem %s0, %s156
        %p158 = pneg %p56
        %p159 = pneg %p53
        %p160 = scmp.lt.s32.totalorder %s23, 0
        %s161 = scalar_select %p160, %s23, 0
        %s162 = smul.addr %s161, 4
        %s163 = scalar_lea.vmem %s1, %s162
        %p164 = pneg %p82
        %p165 = pneg %p79
        %p166 = pneg %p112
        %p167 = pneg %p109
        %s168 = sand.u32 %s99, 1
        %s169 = scalar_lea.sflag [#allocation4], %s168
        %s170 = sand.u32 %s99, 1
        %s171 = smul.addr %s170, 256
        %s172 = scalar_lea.vmem [#allocation3], %s171
        %p173 = scmp.lt.s32.totalorder %s21, 1
        %s174 = scalar_select %p173, %s21, 1
        %s175 = smul.addr %s174, 54
        %s176 = smul.addr %s175, 4
        %s177 = scalar_lea.vmem %s0, %s176
        %p178 = scmp.lt.s32.totalorder %s23, 0
        %s179 = scalar_select %p178, %s23, 0
        %s180 = smul.addr %s179, 4
        %s181 = scalar_lea.vmem %s1, %s180
        %s182 = smul.u32 32, %s22
        %p184 = scmp.eq.s32.totalorder %s23, 0
        // Predicated region
        $region29: #{tpu_custom_call.1} parent=27 // pred_check
          %p185 = pneg %p184
        $region30: #{tpu_custom_call.1} parent=27 // pred_check_branch
          %187 = sbr.rel (%p185) target = $region32
        $region31: #{tpu_custom_call.1} parent=27 // pred_region
          %s188 = smul.u32 %s22, 16
          %s189 = smul.u32 %s188, 3
          %s190 = smul.addr %s189, 4
          %s191 = scalar_lea.vmem %s177, %s190
          %v192 = vld [vmem:[%s191] sm:$0xf]
          %v193 = vld [vmem:[%s191 + $0x4] sm:$0xf]
          %v194 = vld [vmem:[%s191 + $0xc] sm:$0xf]
          %v195 = vld [vmem:[%s191 + $0x10] sm:$0xf]
          %v196 = vld [vmem:[%s191 + $0x18] sm:$0xf]
          %v197 = vld [vmem:[%s191 + $0x1c] sm:$0xf]
          %v198 = vld [vmem:[%s191 + $0x24] sm:$0xf]
          %v199 = vld [vmem:[%s191 + $0x28] sm:$0xf]
          %v200 = vld [vmem:[%s191 + $0x30] sm:$0xf]
          %v201 = vld [vmem:[%s191 + $0x34] sm:$0xf]
          %v202 = vld [vmem:[%s191 + $0x3c] sm:$0xf]
          %v203 = vld [vmem:[%s191 + $0x40] sm:$0xf]
          %v204 = vld [vmem:[%s191 + $0x48] sm:$0xf]
          %v205 = vld [vmem:[%s191 + $0x4c] sm:$0xf]
          %v206 = vld [vmem:[%s191 + $0x54] sm:$0xf]
          %v207 = vld [vmem:[%s191 + $0x58] sm:$0xf]
          %v208 = vld [vmem:[%s191 + $0x60] sm:$0xf]
          %v209 = vld [vmem:[%s191 + $0x64] sm:$0xf]
          %v210 = vld [vmem:[%s191 + $0x6c] sm:$0xf]
          %v211 = vld [vmem:[%s191 + $0x70] sm:$0xf]
          %v212 = vld [vmem:[%s191 + $0x78] sm:$0xf]
          %v213 = vld [vmem:[%s191 + $0x7c] sm:$0xf]
          %v214 = vld [vmem:[%s191 + $0x84] sm:$0xf]
          %v215 = vld [vmem:[%s191 + $0x88] sm:$0xf]
          %v216 = vld [vmem:[%s191 + $0x90] sm:$0xf]
          %v217 = vld [vmem:[%s191 + $0x94] sm:$0xf]
          %v218 = vld [vmem:[%s191 + $0x9c] sm:$0xf]
          %v219 = vld [vmem:[%s191 + $0xa0] sm:$0xf]
          %v220 = vld [vmem:[%s191 + $0xa8] sm:$0xf]
          %v221 = vld [vmem:[%s191 + $0xac] sm:$0xf]
          %v222 = vld [vmem:[%s191 + $0xb4] sm:$0xf]
          %v223 = vld [vmem:[%s191 + $0xb8] sm:$0xf]
          %vm224 = vcmask 27648
          %225 = vst.msk [vmem:[#allocation2] sm:$0xf] %vm224, %v192
          %226 = vst.msk [vmem:[#allocation2 + $0x4] sm:$0xf] %vm224, %v193
          %227 = vst.msk [vmem:[#allocation2 + $0x8] sm:$0xf] %vm224, %v194
          %228 = vst.msk [vmem:[#allocation2 + $0xc] sm:$0xf] %vm224, %v195
          %229 = vst.msk [vmem:[#allocation2 + $0x10] sm:$0xf] %vm224, %v196
          %230 = vst.msk [vmem:[#allocation2 + $0x14] sm:$0xf] %vm224, %v197
          %231 = vst.msk [vmem:[#allocation2 + $0x18] sm:$0xf] %vm224, %v198
          %232 = vst.msk [vmem:[#allocation2 + $0x1c] sm:$0xf] %vm224, %v199
          %233 = vst.msk [vmem:[#allocation2 + $0x20] sm:$0xf] %vm224, %v200
          %234 = vst.msk [vmem:[#allocation2 + $0x24] sm:$0xf] %vm224, %v201
          %235 = vst.msk [vmem:[#allocation2 + $0x28] sm:$0xf] %vm224, %v202
          %236 = vst.msk [vmem:[#allocation2 + $0x2c] sm:$0xf] %vm224, %v203
          %237 = vst.msk [vmem:[#allocation2 + $0x30] sm:$0xf] %vm224, %v204
          %238 = vst.msk [vmem:[#allocation2 + $0x34] sm:$0xf] %vm224, %v205
          %239 = vst.msk [vmem:[#allocation2 + $0x38] sm:$0xf] %vm224, %v206
          %240 = vst.msk [vmem:[#allocation2 + $0x3c] sm:$0xf] %vm224, %v207
          %241 = vst.msk [vmem:[#allocation2 + $0x40] sm:$0xf] %vm224, %v208
          %242 = vst.msk [vmem:[#allocation2 + $0x44] sm:$0xf] %vm224, %v209
          %243 = vst.msk [vmem:[#allocation2 + $0x48] sm:$0xf] %vm224, %v210
          %244 = vst.msk [vmem:[#allocation2 + $0x4c] sm:$0xf] %vm224, %v211
          %245 = vst.msk [vmem:[#allocation2 + $0x50] sm:$0xf] %vm224, %v212
          %246 = vst.msk [vmem:[#allocation2 + $0x54] sm:$0xf] %vm224, %v213
          %247 = vst.msk [vmem:[#allocation2 + $0x58] sm:$0xf] %vm224, %v214
          %248 = vst.msk [vmem:[#allocation2 + $0x5c] sm:$0xf] %vm224, %v215
          %249 = vst.msk [vmem:[#allocation2 + $0x60] sm:$0xf] %vm224, %v216
          %250 = vst.msk [vmem:[#allocation2 + $0x64] sm:$0xf] %vm224, %v217
          %251 = vst.msk [vmem:[#allocation2 + $0x68] sm:$0xf] %vm224, %v218
          %252 = vst.msk [vmem:[#allocation2 + $0x6c] sm:$0xf] %vm224, %v219
          %253 = vst.msk [vmem:[#allocation2 + $0x70] sm:$0xf] %vm224, %v220
          %254 = vst.msk [vmem:[#allocation2 + $0x74] sm:$0xf] %vm224, %v221
          %255 = vst.msk [vmem:[#allocation2 + $0x78] sm:$0xf] %vm224, %v222
          %256 = vst.msk [vmem:[#allocation2 + $0x7c] sm:$0xf] %vm224, %v223
          %v257 = vld [vmem:[%s191] sm:$0xf]
          %v258 = vld [vmem:[%s191 + $0x4] sm:$0xf]
          %v259 = vld [vmem:[%s191 + $0x8] sm:$0x1]
          %v260 = vld [vmem:[%s191 + $0xc] sm:$0xf]
          %v261 = vld [vmem:[%s191 + $0x10] sm:$0xf]
          %v262 = vld [vmem:[%s191 + $0x14] sm:$0x1]
          %v263 = vld [vmem:[%s191 + $0x18] sm:$0xf]
          %v264 = vld [vmem:[%s191 + $0x1c] sm:$0xf]
          %v265 = vld [vmem:[%s191 + $0x20] sm:$0x1]
          %v266 = vld [vmem:[%s191 + $0x24] sm:$0xf]
          %v267 = vld [vmem:[%s191 + $0x28] sm:$0xf]
          %v268 = vld [vmem:[%s191 + $0x2c] sm:$0x1]
          %v269 = vld [vmem:[%s191 + $0x30] sm:$0xf]
          %v270 = vld [vmem:[%s191 + $0x34] sm:$0xf]
          %v271 = vld [vmem:[%s191 + $0x38] sm:$0x1]
          %v272 = vld [vmem:[%s191 + $0x3c] sm:$0xf]
          %v273 = vld [vmem:[%s191 + $0x40] sm:$0xf]
          %v274 = vld [vmem:[%s191 + $0x44] sm:$0x1]
          %v275 = vld [vmem:[%s191 + $0x48] sm:$0xf]
          %v276 = vld [vmem:[%s191 + $0x4c] sm:$0xf]
          %v277 = vld [vmem:[%s191 + $0x50] sm:$0x1]
          %v278 = vld [vmem:[%s191 + $0x54] sm:$0xf]
          %v279 = vld [vmem:[%s191 + $0x58] sm:$0xf]
          %v280 = vld [vmem:[%s191 + $0x5c] sm:$0x1]
          %v281 = vld [vmem:[%s191 + $0x60] sm:$0xf]
          %v282 = vld [vmem:[%s191 + $0x64] sm:$0xf]
          %v283 = vld [vmem:[%s191 + $0x68] sm:$0x1]
          %v284 = vld [vmem:[%s191 + $0x6c] sm:$0xf]
          %v285 = vld [vmem:[%s191 + $0x70] sm:$0xf]
          %v286 = vld [vmem:[%s191 + $0x74] sm:$0x1]
          %v287 = vld [vmem:[%s191 + $0x78] sm:$0xf]
          %v288 = vld [vmem:[%s191 + $0x7c] sm:$0xf]
          %v289 = vld [vmem:[%s191 + $0x80] sm:$0x1]
          %v290 = vld [vmem:[%s191 + $0x84] sm:$0xf]
          %v291 = vld [vmem:[%s191 + $0x88] sm:$0xf]
          %v292 = vld [vmem:[%s191 + $0x8c] sm:$0x1]
          %v293 = vld [vmem:[%s191 + $0x90] sm:$0xf]
          %v294 = vld [vmem:[%s191 + $0x94] sm:$0xf]
          %v295 = vld [vmem:[%s191 + $0x98] sm:$0x1]
          %v296 = vld [vmem:[%s191 + $0x9c] sm:$0xf]
          %v297 = vld [vmem:[%s191 + $0xa0] sm:$0xf]
          %v298 = vld [vmem:[%s191 + $0xa4] sm:$0x1]
          %v299 = vld [vmem:[%s191 + $0xa8] sm:$0xf]
          %v300 = vld [vmem:[%s191 + $0xac] sm:$0xf]
          %v301 = vld [vmem:[%s191 + $0xb0] sm:$0x1]
          %v302 = vld [vmem:[%s191 + $0xb4] sm:$0xf]
          %v303 = vld [vmem:[%s191 + $0xb8] sm:$0xf]
          %v304 = vld [vmem:[%s191 + $0xbc] sm:$0x1]
          %vm305 = vsmask.f32 3328
          %vm306 = vsmask.f32 7440
          %vm307 = vmor %vm305, %vm306
          %v309 = vshrl.u32 %v257, 16
          %v311 = vrot.slane %v309, 4
          %v312 = vshll.u32 %v257, 16
          %v314 = vrot.slane %v312, 5
          %v315 = vor.u32 %v311, %v314
          %v316 = vrot.slane %v315, 4
          %v318 = vshll.u32 %v258, 16
          %v320 = vrot.slane %v318, 5
          %v321 = vsel %vm307, %v316, %v320
          %v322 = vshrl.u32 %v258, 16
          %v324 = vrot.slane %v322, 4
          %v325 = vor.u32 %v324, %v320
          %v326 = vrot.slane %v325, 4
          %v328 = vshll.u32 %v259, 16
          %v330 = vrot.slane %v328, 5
          %v331 = vsel %vm307, %v326, %v330
          %v333 = vshrl.u32 %v260, 16
          %v335 = vrot.slane %v333, 4
          %v336 = vshll.u32 %v260, 16
          %v338 = vrot.slane %v336, 5
          %v339 = vor.u32 %v335, %v338
          %v340 = vrot.slane %v339, 4
          %v342 = vshll.u32 %v261, 16
          %v344 = vrot.slane %v342, 5
          %v345 = vsel %vm307, %v340, %v344
          %v346 = vshrl.u32 %v261, 16
          %v348 = vrot.slane %v346, 4
          %v349 = vor.u32 %v348, %v344
          %v350 = vrot.slane %v349, 4
          %v352 = vshll.u32 %v262, 16
          %v354 = vrot.slane %v352, 5
          %v355 = vsel %vm307, %v350, %v354
          %v357 = vshrl.u32 %v263, 16
          %v359 = vrot.slane %v357, 4
          %v360 = vshll.u32 %v263, 16
          %v362 = vrot.slane %v360, 5
          %v363 = vor.u32 %v359, %v362
          %v364 = vrot.slane %v363, 4
          %v366 = vshll.u32 %v264, 16
          %v368 = vrot.slane %v366, 5
          %v369 = vsel %vm307, %v364, %v368
          %v370 = vshrl.u32 %v264, 16
          %v372 = vrot.slane %v370, 4
          %v373 = vor.u32 %v372, %v368
          %v374 = vrot.slane %v373, 4
          %v376 = vshll.u32 %v265, 16
          %v378 = vrot.slane %v376, 5
          %v379 = vsel %vm307, %v374, %v378
          %v381 = vshrl.u32 %v266, 16
          %v383 = vrot.slane %v381, 4
          %v384 = vshll.u32 %v266, 16
          %v386 = vrot.slane %v384, 5
          %v387 = vor.u32 %v383, %v386
          %v388 = vrot.slane %v387, 4
          %v390 = vshll.u32 %v267, 16
          %v392 = vrot.slane %v390, 5
          %v393 = vsel %vm307, %v388, %v392
          %v394 = vshrl.u32 %v267, 16
          %v396 = vrot.slane %v394, 4
          %v397 = vor.u32 %v396, %v392
          %v398 = vrot.slane %v397, 4
          %v400 = vshll.u32 %v268, 16
          %v402 = vrot.slane %v400, 5
          %v403 = vsel %vm307, %v398, %v402
          %v405 = vshrl.u32 %v269, 16
          %v407 = vrot.slane %v405, 4
          %v408 = vshll.u32 %v269, 16
          %v410 = vrot.slane %v408, 5
          %v411 = vor.u32 %v407, %v410
          %v412 = vrot.slane %v411, 4
          %v414 = vshll.u32 %v270, 16
          %v416 = vrot.slane %v414, 5
          %v417 = vsel %vm307, %v412, %v416
          %v418 = vshrl.u32 %v270, 16
          %v420 = vrot.slane %v418, 4
          %v421 = vor.u32 %v420, %v416
          %v422 = vrot.slane %v421, 4
          %v424 = vshll.u32 %v271, 16
          %v426 = vrot.slane %v424, 5
          %v427 = vsel %vm307, %v422, %v426
          %v429 = vshrl.u32 %v272, 16
          %v431 = vrot.slane %v429, 4
          %v432 = vshll.u32 %v272, 16
          %v434 = vrot.slane %v432, 5
          %v435 = vor.u32 %v431, %v434
          %v436 = vrot.slane %v435, 4
          %v438 = vshll.u32 %v273, 16
          %v440 = vrot.slane %v438, 5
          %v441 = vsel %vm307, %v436, %v440
          %v442 = vshrl.u32 %v273, 16
          %v444 = vrot.slane %v442, 4
          %v445 = vor.u32 %v444, %v440
          %v446 = vrot.slane %v445, 4
          %v448 = vshll.u32 %v274, 16
          %v450 = vrot.slane %v448, 5
          %v451 = vsel %vm307, %v446, %v450
          %v453 = vshrl.u32 %v275, 16
          %v455 = vrot.slane %v453, 4
          %v456 = vshll.u32 %v275, 16
          %v458 = vrot.slane %v456, 5
          %v459 = vor.u32 %v455, %v458
          %v460 = vrot.slane %v459, 4
          %v462 = vshll.u32 %v276, 16
          %v464 = vrot.slane %v462, 5
          %v465 = vsel %vm307, %v460, %v464
          %v466 = vshrl.u32 %v276, 16
          %v468 = vrot.slane %v466, 4
          %v469 = vor.u32 %v468, %v464
          %v470 = vrot.slane %v469, 4
          %v472 = vshll.u32 %v277, 16
          %v474 = vrot.slane %v472, 5
          %v475 = vsel %vm307, %v470, %v474
          %v477 = vshrl.u32 %v278, 16
          %v479 = vrot.slane %v477, 4
          %v480 = vshll.u32 %v278, 16
          %v482 = vrot.slane %v480, 5
          %v483 = vor.u32 %v479, %v482
          %v484 = vrot.slane %v483, 4
          %v486 = vshll.u32 %v279, 16
          %v488 = vrot.slane %v486, 5
          %v489 = vsel %vm307, %v484, %v488
          %v490 = vshrl.u32 %v279, 16
          %v492 = vrot.slane %v490, 4
          %v493 = vor.u32 %v492, %v488
          %v494 = vrot.slane %v493, 4
          %v496 = vshll.u32 %v280, 16
          %v498 = vrot.slane %v496, 5
          %v499 = vsel %vm307, %v494, %v498
          %v501 = vshrl.u32 %v281, 16
          %v503 = vrot.slane %v501, 4
          %v504 = vshll.u32 %v281, 16
          %v506 = vrot.slane %v504, 5
          %v507 = vor.u32 %v503, %v506
          %v508 = vrot.slane %v507, 4
          %v510 = vshll.u32 %v282, 16
          %v512 = vrot.slane %v510, 5
          %v513 = vsel %vm307, %v508, %v512
          %v514 = vshrl.u32 %v282, 16
          %v516 = vrot.slane %v514, 4
          %v517 = vor.u32 %v516, %v512
          %v518 = vrot.slane %v517, 4
          %v520 = vshll.u32 %v283, 16
          %v522 = vrot.slane %v520, 5
          %v523 = vsel %vm307, %v518, %v522
          %v525 = vshrl.u32 %v284, 16
          %v527 = vrot.slane %v525, 4
          %v528 = vshll.u32 %v284, 16
          %v530 = vrot.slane %v528, 5
          %v531 = vor.u32 %v527, %v530
          %v532 = vrot.slane %v531, 4
          %v534 = vshll.u32 %v285, 16
          %v536 = vrot.slane %v534, 5
          %v537 = vsel %vm307, %v532, %v536
          %v538 = vshrl.u32 %v285, 16
          %v540 = vrot.slane %v538, 4
          %v541 = vor.u32 %v540, %v536
          %v542 = vrot.slane %v541, 4
          %v544 = vshll.u32 %v286, 16
          %v546 = vrot.slane %v544, 5
          %v547 = vsel %vm307, %v542, %v546
          %v549 = vshrl.u32 %v287, 16
          %v551 = vrot.slane %v549, 4
          %v552 = vshll.u32 %v287, 16
          %v554 = vrot.slane %v552, 5
          %v555 = vor.u32 %v551, %v554
          %v556 = vrot.slane %v555, 4
          %v558 = vshll.u32 %v288, 16
          %v560 = vrot.slane %v558, 5
          %v561 = vsel %vm307, %v556, %v560
          %v562 = vshrl.u32 %v288, 16
          %v564 = vrot.slane %v562, 4
          %v565 = vor.u32 %v564, %v560
          %v566 = vrot.slane %v565, 4
          %v568 = vshll.u32 %v289, 16
          %v570 = vrot.slane %v568, 5
          %v571 = vsel %vm307, %v566, %v570
          %v573 = vshrl.u32 %v290, 16
          %v575 = vrot.slane %v573, 4
          %v576 = vshll.u32 %v290, 16
          %v578 = vrot.slane %v576, 5
          %v579 = vor.u32 %v575, %v578
          %v580 = vrot.slane %v579, 4
          %v582 = vshll.u32 %v291, 16
          %v584 = vrot.slane %v582, 5
          %v585 = vsel %vm307, %v580, %v584
          %v586 = vshrl.u32 %v291, 16
          %v588 = vrot.slane %v586, 4
          %v589 = vor.u32 %v588, %v584
          %v590 = vrot.slane %v589, 4
          %v592 = vshll.u32 %v292, 16
          %v594 = vrot.slane %v592, 5
          %v595 = vsel %vm307, %v590, %v594
          %v597 = vshrl.u32 %v293, 16
          %v599 = vrot.slane %v597, 4
          %v600 = vshll.u32 %v293, 16
          %v602 = vrot.slane %v600, 5
          %v603 = vor.u32 %v599, %v602
          %v604 = vrot.slane %v603, 4
          %v606 = vshll.u32 %v294, 16
          %v608 = vrot.slane %v606, 5
          %v609 = vsel %vm307, %v604, %v608
          %v610 = vshrl.u32 %v294, 16
          %v612 = vrot.slane %v610, 4
          %v613 = vor.u32 %v612, %v608
          %v614 = vrot.slane %v613, 4
          %v616 = vshll.u32 %v295, 16
          %v618 = vrot.slane %v616, 5
          %v619 = vsel %vm307, %v614, %v618
          %v621 = vshrl.u32 %v296, 16
          %v623 = vrot.slane %v621, 4
          %v624 = vshll.u32 %v296, 16
          %v626 = vrot.slane %v624, 5
          %v627 = vor.u32 %v623, %v626
          %v628 = vrot.slane %v627, 4
          %v630 = vshll.u32 %v297, 16
          %v632 = vrot.slane %v630, 5
          %v633 = vsel %vm307, %v628, %v632
          %v634 = vshrl.u32 %v297, 16
          %v636 = vrot.slane %v634, 4
          %v637 = vor.u32 %v636, %v632
          %v638 = vrot.slane %v637, 4
          %v640 = vshll.u32 %v298, 16
          %v642 = vrot.slane %v640, 5
          %v643 = vsel %vm307, %v638, %v642
          %v645 = vshrl.u32 %v299, 16
          %v647 = vrot.slane %v645, 4
          %v648 = vshll.u32 %v299, 16
          %v650 = vrot.slane %v648, 5
          %v651 = vor.u32 %v647, %v650
          %v652 = vrot.slane %v651, 4
          %v654 = vshll.u32 %v300, 16
          %v656 = vrot.slane %v654, 5
          %v657 = vsel %vm307, %v652, %v656
          %v658 = vshrl.u32 %v300, 16
          %v660 = vrot.slane %v658, 4
          %v661 = vor.u32 %v660, %v656
          %v662 = vrot.slane %v661, 4
          %v664 = vshll.u32 %v301, 16
          %v666 = vrot.slane %v664, 5
          %v667 = vsel %vm307, %v662, %v666
          %v669 = vshrl.u32 %v302, 16
          %v671 = vrot.slane %v669, 4
          %v672 = vshll.u32 %v302, 16
          %v674 = vrot.slane %v672, 5
          %v675 = vor.u32 %v671, %v674
          %v676 = vrot.slane %v675, 4
          %v678 = vshll.u32 %v303, 16
          %v680 = vrot.slane %v678, 5
          %v681 = vsel %vm307, %v676, %v680
          %v682 = vshrl.u32 %v303, 16
          %v684 = vrot.slane %v682, 4
          %v685 = vor.u32 %v684, %v680
          %v686 = vrot.slane %v685, 4
          %v688 = vshll.u32 %v304, 16
          %v690 = vrot.slane %v688, 5
          %v691 = vsel %vm307, %v686, %v690
          %692 = vrot.lane.b32.xlu0 %v321, 4
          %v693 = vpop.permute.xlu0 %692
          %694 = vrot.lane.b32.xlu0 %v331, 4
          %v695 = vpop.permute.xlu0 %694
          %696 = vrot.lane.b32.xlu0 %v345, 4
          %v697 = vpop.permute.xlu0 %696
          %698 = vrot.lane.b32.xlu0 %v355, 4
          %v699 = vpop.permute.xlu0 %698
          %700 = vrot.lane.b32.xlu0 %v369, 4
          %v701 = vpop.permute.xlu0 %700
          %702 = vrot.lane.b32.xlu0 %v379, 4
          %v703 = vpop.permute.xlu0 %702
          %704 = vrot.lane.b32.xlu0 %v393, 4
          %v705 = vpop.permute.xlu0 %704
          %706 = vrot.lane.b32.xlu0 %v403, 4
          %v707 = vpop.permute.xlu0 %706
          %708 = vrot.lane.b32.xlu0 %v417, 4
          %v709 = vpop.permute.xlu0 %708
          %710 = vrot.lane.b32.xlu0 %v427, 4
          %v711 = vpop.permute.xlu0 %710
          %712 = vrot.lane.b32.xlu0 %v441, 4
          %v713 = vpop.permute.xlu0 %712
          %714 = vrot.lane.b32.xlu0 %v451, 4
          %v715 = vpop.permute.xlu0 %714
          %716 = vrot.lane.b32.xlu0 %v465, 4
          %v717 = vpop.permute.xlu0 %716
          %718 = vrot.lane.b32.xlu0 %v475, 4
          %v719 = vpop.permute.xlu0 %718
          %720 = vrot.lane.b32.xlu0 %v489, 4
          %v721 = vpop.permute.xlu0 %720
          %722 = vrot.lane.b32.xlu0 %v499, 4
          %v723 = vpop.permute.xlu0 %722
          %724 = vrot.lane.b32.xlu0 %v513, 4
          %v725 = vpop.permute.xlu0 %724
          %726 = vrot.lane.b32.xlu0 %v523, 4
          %v727 = vpop.permute.xlu0 %726
          %728 = vrot.lane.b32.xlu0 %v537, 4
          %v729 = vpop.permute.xlu0 %728
          %730 = vrot.lane.b32.xlu0 %v547, 4
          %v731 = vpop.permute.xlu0 %730
          %732 = vrot.lane.b32.xlu0 %v561, 4
          %v733 = vpop.permute.xlu0 %732
          %734 = vrot.lane.b32.xlu0 %v571, 4
          %v735 = vpop.permute.xlu0 %734
          %736 = vrot.lane.b32.xlu0 %v585, 4
          %v737 = vpop.permute.xlu0 %736
          %738 = vrot.lane.b32.xlu0 %v595, 4
          %v739 = vpop.permute.xlu0 %738
          %740 = vrot.lane.b32.xlu0 %v609, 4
          %v741 = vpop.permute.xlu0 %740
          %742 = vrot.lane.b32.xlu0 %v619, 4
          %v743 = vpop.permute.xlu0 %742
          %744 = vrot.lane.b32.xlu0 %v633, 4
          %v745 = vpop.permute.xlu0 %744
          %746 = vrot.lane.b32.xlu0 %v643, 4
          %v747 = vpop.permute.xlu0 %746
          %748 = vrot.lane.b32.xlu0 %v657, 4
          %v749 = vpop.permute.xlu0 %748
          %750 = vrot.lane.b32.xlu0 %v667, 4
          %v751 = vpop.permute.xlu0 %750
          %752 = vrot.lane.b32.xlu0 %v681, 4
          %v753 = vpop.permute.xlu0 %752
          %754 = vrot.lane.b32.xlu0 %v691, 4
          %v755 = vpop.permute.xlu0 %754
          %vm788 = vcmask 60448
          %789 = vst.msk [vmem:[#allocation2] sm:$0xf] %vm788, %v693
          %790 = vst.msk [vmem:[#allocation2 + $0x4] sm:$0xf] %vm788, %v695
          %791 = vst.msk [vmem:[#allocation2 + $0x8] sm:$0xf] %vm788, %v697
          %792 = vst.msk [vmem:[#allocation2 + $0xc] sm:$0xf] %vm788, %v699
          %793 = vst.msk [vmem:[#allocation2 + $0x10] sm:$0xf] %vm788, %v701
          %794 = vst.msk [vmem:[#allocation2 + $0x14] sm:$0xf] %vm788, %v703
          %795 = vst.msk [vmem:[#allocation2 + $0x18] sm:$0xf] %vm788, %v705
          %796 = vst.msk [vmem:[#allocation2 + $0x1c] sm:$0xf] %vm788, %v707
          %797 = vst.msk [vmem:[#allocation2 + $0x20] sm:$0xf] %vm788, %v709
          %798 = vst.msk [vmem:[#allocation2 + $0x24] sm:$0xf] %vm788, %v711
          %799 = vst.msk [vmem:[#allocation2 + $0x28] sm:$0xf] %vm788, %v713
          %800 = vst.msk [vmem:[#allocation2 + $0x2c] sm:$0xf] %vm788, %v715
          %801 = vst.msk [vmem:[#allocation2 + $0x30] sm:$0xf] %vm788, %v717
          %802 = vst.msk [vmem:[#allocation2 + $0x34] sm:$0xf] %vm788, %v719
          %803 = vst.msk [vmem:[#allocation2 + $0x38] sm:$0xf] %vm788, %v721
          %804 = vst.msk [vmem:[#allocation2 + $0x3c] sm:$0xf] %vm788, %v723
          %805 = vst.msk [vmem:[#allocation2 + $0x40] sm:$0xf] %vm788, %v725
          %806 = vst.msk [vmem:[#allocation2 + $0x44] sm:$0xf] %vm788, %v727
          %807 = vst.msk [vmem:[#allocation2 + $0x48] sm:$0xf] %vm788, %v729
          %808 = vst.msk [vmem:[#allocation2 + $0x4c] sm:$0xf] %vm788, %v731
          %809 = vst.msk [vmem:[#allocation2 + $0x50] sm:$0xf] %vm788, %v733
          %810 = vst.msk [vmem:[#allocation2 + $0x54] sm:$0xf] %vm788, %v735
          %811 = vst.msk [vmem:[#allocation2 + $0x58] sm:$0xf] %vm788, %v737
          %812 = vst.msk [vmem:[#allocation2 + $0x5c] sm:$0xf] %vm788, %v739
          %813 = vst.msk [vmem:[#allocation2 + $0x60] sm:$0xf] %vm788, %v741
          %814 = vst.msk [vmem:[#allocation2 + $0x64] sm:$0xf] %vm788, %v743
          %815 = vst.msk [vmem:[#allocation2 + $0x68] sm:$0xf] %vm788, %v745
          %816 = vst.msk [vmem:[#allocation2 + $0x6c] sm:$0xf] %vm788, %v747
          %817 = vst.msk [vmem:[#allocation2 + $0x70] sm:$0xf] %vm788, %v749
          %818 = vst.msk [vmem:[#allocation2 + $0x74] sm:$0xf] %vm788, %v751
          %819 = vst.msk [vmem:[#allocation2 + $0x78] sm:$0xf] %vm788, %v753
          %820 = vst.msk [vmem:[#allocation2 + $0x7c] sm:$0xf] %vm788, %v755
          %v821 = vld [vmem:[%s191] sm:$0xe]
          %v822 = vld [vmem:[%s191 + $0x4] sm:$0xf]
          %v823 = vld [vmem:[%s191 + $0x8] sm:$0x1]
          %v824 = vld [vmem:[%s191 + $0xc] sm:$0xe]
          %v825 = vld [vmem:[%s191 + $0x10] sm:$0xf]
          %v826 = vld [vmem:[%s191 + $0x14] sm:$0x1]
          %v827 = vld [vmem:[%s191 + $0x18] sm:$0xe]
          %v828 = vld [vmem:[%s191 + $0x1c] sm:$0xf]
          %v829 = vld [vmem:[%s191 + $0x20] sm:$0x1]
          %v830 = vld [vmem:[%s191 + $0x24] sm:$0xe]
          %v831 = vld [vmem:[%s191 + $0x28] sm:$0xf]
          %v832 = vld [vmem:[%s191 + $0x2c] sm:$0x1]
          %v833 = vld [vmem:[%s191 + $0x30] sm:$0xe]
          %v834 = vld [vmem:[%s191 + $0x34] sm:$0xf]
          %v835 = vld [vmem:[%s191 + $0x38] sm:$0x1]
          %v836 = vld [vmem:[%s191 + $0x3c] sm:$0xe]
          %v837 = vld [vmem:[%s191 + $0x40] sm:$0xf]
          %v838 = vld [vmem:[%s191 + $0x44] sm:$0x1]
          %v839 = vld [vmem:[%s191 + $0x48] sm:$0xe]
          %v840 = vld [vmem:[%s191 + $0x4c] sm:$0xf]
          %v841 = vld [vmem:[%s191 + $0x50] sm:$0x1]
          %v842 = vld [vmem:[%s191 + $0x54] sm:$0xe]
          %v843 = vld [vmem:[%s191 + $0x58] sm:$0xf]
          %v844 = vld [vmem:[%s191 + $0x5c] sm:$0x1]
          %v845 = vld [vmem:[%s191 + $0x60] sm:$0xe]
          %v846 = vld [vmem:[%s191 + $0x64] sm:$0xf]
          %v847 = vld [vmem:[%s191 + $0x68] sm:$0x1]
          %v848 = vld [vmem:[%s191 + $0x6c] sm:$0xe]
          %v849 = vld [vmem:[%s191 + $0x70] sm:$0xf]
          %v850 = vld [vmem:[%s191 + $0x74] sm:$0x1]
          %v851 = vld [vmem:[%s191 + $0x78] sm:$0xe]
          %v852 = vld [vmem:[%s191 + $0x7c] sm:$0xf]
          %v853 = vld [vmem:[%s191 + $0x80] sm:$0x1]
          %v854 = vld [vmem:[%s191 + $0x84] sm:$0xe]
          %v855 = vld [vmem:[%s191 + $0x88] sm:$0xf]
          %v856 = vld [vmem:[%s191 + $0x8c] sm:$0x1]
          %v857 = vld [vmem:[%s191 + $0x90] sm:$0xe]
          %v858 = vld [vmem:[%s191 + $0x94] sm:$0xf]
          %v859 = vld [vmem:[%s191 + $0x98] sm:$0x1]
          %v860 = vld [vmem:[%s191 + $0x9c] sm:$0xe]
          %v861 = vld [vmem:[%s191 + $0xa0] sm:$0xf]
          %v862 = vld [vmem:[%s191 + $0xa4] sm:$0x1]
          %v863 = vld [vmem:[%s191 + $0xa8] sm:$0xe]
          %v864 = vld [vmem:[%s191 + $0xac] sm:$0xf]
          %v865 = vld [vmem:[%s191 + $0xb0] sm:$0x1]
          %v866 = vld [vmem:[%s191 + $0xb4] sm:$0xe]
          %v867 = vld [vmem:[%s191 + $0xb8] sm:$0xf]
          %v868 = vld [vmem:[%s191 + $0xbc] sm:$0x1]
          %vm917 = vcmask 1042432
          %vm918 = vcmask 1046532
          %vm919 = vmor %vm917, %vm918
          %v920 = vrot.slane %v821, 5
          %v921 = vrot.slane %v920, 4
          %v922 = vrot.slane %v822, 5
          %v923 = vsel %vm919, %v921, %v922
          %v924 = vrot.slane %v922, 4
          %v925 = vrot.slane %v823, 5
          %v926 = vsel %vm919, %v924, %v925
          %v927 = vrot.slane %v824, 5
          %v928 = vrot.slane %v927, 4
          %v929 = vrot.slane %v825, 5
          %v930 = vsel %vm919, %v928, %v929
          %v931 = vrot.slane %v929, 4
          %v932 = vrot.slane %v826, 5
          %v933 = vsel %vm919, %v931, %v932
          %v934 = vrot.slane %v827, 5
          %v935 = vrot.slane %v934, 4
          %v936 = vrot.slane %v828, 5
          %v937 = vsel %vm919, %v935, %v936
          %v938 = vrot.slane %v936, 4
          %v939 = vrot.slane %v829, 5
          %v940 = vsel %vm919, %v938, %v939
          %v941 = vrot.slane %v830, 5
          %v942 = vrot.slane %v941, 4
          %v943 = vrot.slane %v831, 5
          %v944 = vsel %vm919, %v942, %v943
          %v945 = vrot.slane %v943, 4
          %v946 = vrot.slane %v832, 5
          %v947 = vsel %vm919, %v945, %v946
          %v948 = vrot.slane %v833, 5
          %v949 = vrot.slane %v948, 4
          %v950 = vrot.slane %v834, 5
          %v951 = vsel %vm919, %v949, %v950
          %v952 = vrot.slane %v950, 4
          %v953 = vrot.slane %v835, 5
          %v954 = vsel %vm919, %v952, %v953
          %v955 = vrot.slane %v836, 5
          %v956 = vrot.slane %v955, 4
          %v957 = vrot.slane %v837, 5
          %v958 = vsel %vm919, %v956, %v957
          %v959 = vrot.slane %v957, 4
          %v960 = vrot.slane %v838, 5
          %v961 = vsel %vm919, %v959, %v960
          %v962 = vrot.slane %v839, 5
          %v963 = vrot.slane %v962, 4
          %v964 = vrot.slane %v840, 5
          %v965 = vsel %vm919, %v963, %v964
          %v966 = vrot.slane %v964, 4
          %v967 = vrot.slane %v841, 5
          %v968 = vsel %vm919, %v966, %v967
          %v969 = vrot.slane %v842, 5
          %v970 = vrot.slane %v969, 4
          %v971 = vrot.slane %v843, 5
          %v972 = vsel %vm919, %v970, %v971
          %v973 = vrot.slane %v971, 4
          %v974 = vrot.slane %v844, 5
          %v975 = vsel %vm919, %v973, %v974
          %v976 = vrot.slane %v845, 5
          %v977 = vrot.slane %v976, 4
          %v978 = vrot.slane %v846, 5
          %v979 = vsel %vm919, %v977, %v978
          %v980 = vrot.slane %v978, 4
          %v981 = vrot.slane %v847, 5
          %v982 = vsel %vm919, %v980, %v981
          %v983 = vrot.slane %v848, 5
          %v984 = vrot.slane %v983, 4
          %v985 = vrot.slane %v849, 5
          %v986 = vsel %vm919, %v984, %v985
          %v987 = vrot.slane %v985, 4
          %v988 = vrot.slane %v850, 5
          %v989 = vsel %vm919, %v987, %v988
          %v990 = vrot.slane %v851, 5
          %v991 = vrot.slane %v990, 4
          %v992 = vrot.slane %v852, 5
          %v993 = vsel %vm919, %v991, %v992
          %v994 = vrot.slane %v992, 4
          %v995 = vrot.slane %v853, 5
          %v996 = vsel %vm919, %v994, %v995
          %v997 = vrot.slane %v854, 5
          %v998 = vrot.slane %v997, 4
          %v999 = vrot.slane %v855, 5
          %v1000 = vsel %vm919, %v998, %v999
          %v1001 = vrot.slane %v999, 4
          %v1002 = vrot.slane %v856, 5
          %v1003 = vsel %vm919, %v1001, %v1002
          %v1004 = vrot.slane %v857, 5
          %v1005 = vrot.slane %v1004, 4
          %v1006 = vrot.slane %v858, 5
          %v1007 = vsel %vm919, %v1005, %v1006
          %v1008 = vrot.slane %v1006, 4
          %v1009 = vrot.slane %v859, 5
          %v1010 = vsel %vm919, %v1008, %v1009
          %v1011 = vrot.slane %v860, 5
          %v1012 = vrot.slane %v1011, 4
          %v1013 = vrot.slane %v861, 5
          %v1014 = vsel %vm919, %v1012, %v1013
          %v1015 = vrot.slane %v1013, 4
          %v1016 = vrot.slane %v862, 5
          %v1017 = vsel %vm919, %v1015, %v1016
          %v1018 = vrot.slane %v863, 5
          %v1019 = vrot.slane %v1018, 4
          %v1020 = vrot.slane %v864, 5
          %v1021 = vsel %vm919, %v1019, %v1020
          %v1022 = vrot.slane %v1020, 4
          %v1023 = vrot.slane %v865, 5
          %v1024 = vsel %vm919, %v1022, %v1023
          %v1025 = vrot.slane %v866, 5
          %v1026 = vrot.slane %v1025, 4
          %v1027 = vrot.slane %v867, 5
          %v1028 = vsel %vm919, %v1026, %v1027
          %v1029 = vrot.slane %v1027, 4
          %v1030 = vrot.slane %v868, 5
          %v1031 = vsel %vm919, %v1029, %v1030
          %1032 = vrot.lane.b32.xlu0 %v923, 8
          %v1033 = vpop.permute.xlu0 %1032
          %1034 = vrot.lane.b32.xlu0 %v926, 8
          %v1035 = vpop.permute.xlu0 %1034
          %1036 = vrot.lane.b32.xlu0 %v930, 8
          %v1037 = vpop.permute.xlu0 %1036
          %1038 = vrot.lane.b32.xlu0 %v933, 8
          %v1039 = vpop.permute.xlu0 %1038
          %1040 = vrot.lane.b32.xlu0 %v937, 8
          %v1041 = vpop.permute.xlu0 %1040
          %1042 = vrot.lane.b32.xlu0 %v940, 8
          %v1043 = vpop.permute.xlu0 %1042
          %1044 = vrot.lane.b32.xlu0 %v944, 8
          %v1045 = vpop.permute.xlu0 %1044
          %1046 = vrot.lane.b32.xlu0 %v947, 8
          %v1047 = vpop.permute.xlu0 %1046
          %1048 = vrot.lane.b32.xlu0 %v951, 8
          %v1049 = vpop.permute.xlu0 %1048
          %1050 = vrot.lane.b32.xlu0 %v954, 8
          %v1051 = vpop.permute.xlu0 %1050
          %1052 = vrot.lane.b32.xlu0 %v958, 8
          %v1053 = vpop.permute.xlu0 %1052
          %1054 = vrot.lane.b32.xlu0 %v961, 8
          %v1055 = vpop.permute.xlu0 %1054
          %1056 = vrot.lane.b32.xlu0 %v965, 8
          %v1057 = vpop.permute.xlu0 %1056
          %1058 = vrot.lane.b32.xlu0 %v968, 8
          %v1059 = vpop.permute.xlu0 %1058
          %1060 = vrot.lane.b32.xlu0 %v972, 8
          %v1061 = vpop.permute.xlu0 %1060
          %1062 = vrot.lane.b32.xlu0 %v975, 8
          %v1063 = vpop.permute.xlu0 %1062
          %1064 = vrot.lane.b32.xlu0 %v979, 8
          %v1065 = vpop.permute.xlu0 %1064
          %1066 = vrot.lane.b32.xlu0 %v982, 8
          %v1067 = vpop.permute.xlu0 %1066
          %1068 = vrot.lane.b32.xlu0 %v986, 8
          %v1069 = vpop.permute.xlu0 %1068
          %1070 = vrot.lane.b32.xlu0 %v989, 8
          %v1071 = vpop.permute.xlu0 %1070
          %1072 = vrot.lane.b32.xlu0 %v993, 8
          %v1073 = vpop.permute.xlu0 %1072
          %1074 = vrot.lane.b32.xlu0 %v996, 8
          %v1075 = vpop.permute.xlu0 %1074
          %1076 = vrot.lane.b32.xlu0 %v1000, 8
          %v1077 = vpop.permute.xlu0 %1076
          %1078 = vrot.lane.b32.xlu0 %v1003, 8
          %v1079 = vpop.permute.xlu0 %1078
          %1080 = vrot.lane.b32.xlu0 %v1007, 8
          %v1081 = vpop.permute.xlu0 %1080
          %1082 = vrot.lane.b32.xlu0 %v1010, 8
          %v1083 = vpop.permute.xlu0 %1082
          %1084 = vrot.lane.b32.xlu0 %v1014, 8
          %v1085 = vpop.permute.xlu0 %1084
          %1086 = vrot.lane.b32.xlu0 %v1017, 8
          %v1087 = vpop.permute.xlu0 %1086
          %1088 = vrot.lane.b32.xlu0 %v1021, 8
          %v1089 = vpop.permute.xlu0 %1088
          %1090 = vrot.lane.b32.xlu0 %v1024, 8
          %v1091 = vpop.permute.xlu0 %1090
          %1092 = vrot.lane.b32.xlu0 %v1028, 8
          %v1093 = vpop.permute.xlu0 %1092
          %1094 = vrot.lane.b32.xlu0 %v1031, 8
          %v1095 = vpop.permute.xlu0 %1094
          %vm1128 = vcmask 93248
          %1129 = vst.msk [vmem:[#allocation2] sm:$0xf] %vm1128, %v1033
          %1130 = vst.msk [vmem:[#allocation2 + $0x4] sm:$0xf] %vm1128, %v1035
          %1131 = vst.msk [vmem:[#allocation2 + $0x8] sm:$0xf] %vm1128, %v1037
          %1132 = vst.msk [vmem:[#allocation2 + $0xc] sm:$0xf] %vm1128, %v1039
          %1133 = vst.msk [vmem:[#allocation2 + $0x10] sm:$0xf] %vm1128, %v1041
          %1134 = vst.msk [vmem:[#allocation2 + $0x14] sm:$0xf] %vm1128, %v1043
          %1135 = vst.msk [vmem:[#allocation2 + $0x18] sm:$0xf] %vm1128, %v1045
          %1136 = vst.msk [vmem:[#allocation2 + $0x1c] sm:$0xf] %vm1128, %v1047
          %1137 = vst.msk [vmem:[#allocation2 + $0x20] sm:$0xf] %vm1128, %v1049
          %1138 = vst.msk [vmem:[#allocation2 + $0x24] sm:$0xf] %vm1128, %v1051
          %1139 = vst.msk [vmem:[#allocation2 + $0x28] sm:$0xf] %vm1128, %v1053
          %1140 = vst.msk [vmem:[#allocation2 + $0x2c] sm:$0xf] %vm1128, %v1055
          %1141 = vst.msk [vmem:[#allocation2 + $0x30] sm:$0xf] %vm1128, %v1057
          %1142 = vst.msk [vmem:[#allocation2 + $0x34] sm:$0xf] %vm1128, %v1059
          %1143 = vst.msk [vmem:[#allocation2 + $0x38] sm:$0xf] %vm1128, %v1061
          %1144 = vst.msk [vmem:[#allocation2 + $0x3c] sm:$0xf] %vm1128, %v1063
          %1145 = vst.msk [vmem:[#allocation2 + $0x40] sm:$0xf] %vm1128, %v1065
          %1146 = vst.msk [vmem:[#allocation2 + $0x44] sm:$0xf] %vm1128, %v1067
          %1147 = vst.msk [vmem:[#allocation2 + $0x48] sm:$0xf] %vm1128, %v1069
          %1148 = vst.msk [vmem:[#allocation2 + $0x4c] sm:$0xf] %vm1128, %v1071
          %1149 = vst.msk [vmem:[#allocation2 + $0x50] sm:$0xf] %vm1128, %v1073
          %1150 = vst.msk [vmem:[#allocation2 + $0x54] sm:$0xf] %vm1128, %v1075
          %1151 = vst.msk [vmem:[#allocation2 + $0x58] sm:$0xf] %vm1128, %v1077
          %1152 = vst.msk [vmem:[#allocation2 + $0x5c] sm:$0xf] %vm1128, %v1079
          %1153 = vst.msk [vmem:[#allocation2 + $0x60] sm:$0xf] %vm1128, %v1081
          %1154 = vst.msk [vmem:[#allocation2 + $0x64] sm:$0xf] %vm1128, %v1083
          %1155 = vst.msk [vmem:[#allocation2 + $0x68] sm:$0xf] %vm1128, %v1085
          %1156 = vst.msk [vmem:[#allocation2 + $0x6c] sm:$0xf] %vm1128, %v1087
          %1157 = vst.msk [vmem:[#allocation2 + $0x70] sm:$0xf] %vm1128, %v1089
          %1158 = vst.msk [vmem:[#allocation2 + $0x74] sm:$0xf] %vm1128, %v1091
          %1159 = vst.msk [vmem:[#allocation2 + $0x78] sm:$0xf] %vm1128, %v1093
          %1160 = vst.msk [vmem:[#allocation2 + $0x7c] sm:$0xf] %vm1128, %v1095
          %s1161 = sadd.s32 %s188, 1
          %s1162 = smul.u32 %s1161, 3
          %s1163 = smul.addr %s1162, 4
          %s1164 = scalar_lea.vmem %s177, %s1163
          %v1165 = vld [vmem:[%s1164] sm:$0xf]
          %v1166 = vld [vmem:[%s1164 + $0x4] sm:$0xf]
          %v1167 = vld [vmem:[%s1164 + $0xc] sm:$0xf]
          %v1168 = vld [vmem:[%s1164 + $0x10] sm:$0xf]
          %v1169 = vld [vmem:[%s1164 + $0x18] sm:$0xf]
          %v1170 = vld [vmem:[%s1164 + $0x1c] sm:$0xf]
          %v1171 = vld [vmem:[%s1164 + $0x24] sm:$0xf]
          %v1172 = vld [vmem:[%s1164 + $0x28] sm:$0xf]
          %v1173 = vld [vmem:[%s1164 + $0x30] sm:$0xf]
          %v1174 = vld [vmem:[%s1164 + $0x34] sm:$0xf]
          %v1175 = vld [vmem:[%s1164 + $0x3c] sm:$0xf]
          %v1176 = vld [vmem:[%s1164 + $0x40] sm:$0xf]
          %v1177 = vld [vmem:[%s1164 + $0x48] sm:$0xf]
          %v1178 = vld [vmem:[%s1164 + $0x4c] sm:$0xf]
          %v1179 = vld [vmem:[%s1164 + $0x54] sm:$0xf]
          %v1180 = vld [vmem:[%s1164 + $0x58] sm:$0xf]
          %v1181 = vld [vmem:[%s1164 + $0x60] sm:$0xf]
          %v1182 = vld [vmem:[%s1164 + $0x64] sm:$0xf]
          %v1183 = vld [vmem:[%s1164 + $0x6c] sm:$0xf]
          %v1184 = vld [vmem:[%s1164 + $0x70] sm:$0xf]
          %v1185 = vld [vmem:[%s1164 + $0x78] sm:$0xf]
          %v1186 = vld [vmem:[%s1164 + $0x7c] sm:$0xf]
          %v1187 = vld [vmem:[%s1164 + $0x84] sm:$0xf]
          %v1188 = vld [vmem:[%s1164 + $0x88] sm:$0xf]
          %v1189 = vld [vmem:[%s1164 + $0x90] sm:$0xf]
          %v1190 = vld [vmem:[%s1164 + $0x94] sm:$0xf]
          %v1191 = vld [vmem:[%s1164 + $0x9c] sm:$0xf]
          %v1192 = vld [vmem:[%s1164 + $0xa0] sm:$0xf]
          %v1193 = vld [vmem:[%s1164 + $0xa8] sm:$0xf]
          %v1194 = vld [vmem:[%s1164 + $0xac] sm:$0xf]
          %v1195 = vld [vmem:[%s1164 + $0xb4] sm:$0xf]
          %v1196 = vld [vmem:[%s1164 + $0xb8] sm:$0xf]
          %1229 = vrot.lane.b32.xlu0 %v1165, 12
          %v1230 = vpop.permute.xlu0 %1229
          %1231 = vrot.lane.b32.xlu0 %v1166, 12
          %v1232 = vpop.permute.xlu0 %1231
          %1233 = vrot.lane.b32.xlu0 %v1167, 12
          %v1234 = vpop.permute.xlu0 %1233
          %1235 = vrot.lane.b32.xlu0 %v1168, 12
          %v1236 = vpop.permute.xlu0 %1235
          %1237 = vrot.lane.b32.xlu0 %v1169, 12
          %v1238 = vpop.permute.xlu0 %1237
          %1239 = vrot.lane.b32.xlu0 %v1170, 12
          %v1240 = vpop.permute.xlu0 %1239
          %1241 = vrot.lane.b32.xlu0 %v1171, 12
          %v1242 = vpop.permute.xlu0 %1241
          %1243 = vrot.lane.b32.xlu0 %v1172, 12
          %v1244 = vpop.permute.xlu0 %1243
          %1245 = vrot.lane.b32.xlu0 %v1173, 12
          %v1246 = vpop.permute.xlu0 %1245
          %1247 = vrot.lane.b32.xlu0 %v1174, 12
          %v1248 = vpop.permute.xlu0 %1247
          %1249 = vrot.lane.b32.xlu0 %v1175, 12
          %v1250 = vpop.permute.xlu0 %1249
          %1251 = vrot.lane.b32.xlu0 %v1176, 12
          %v1252 = vpop.permute.xlu0 %1251
          %1253 = vrot.lane.b32.xlu0 %v1177, 12
          %v1254 = vpop.permute.xlu0 %1253
          %1255 = vrot.lane.b32.xlu0 %v1178, 12
          %v1256 = vpop.permute.xlu0 %1255
          %1257 = vrot.lane.b32.xlu0 %v1179, 12
          %v1258 = vpop.permute.xlu0 %1257
          %1259 = vrot.lane.b32.xlu0 %v1180, 12
          %v1260 = vpop.permute.xlu0 %1259
          %1261 = vrot.lane.b32.xlu0 %v1181, 12
          %v1262 = vpop.permute.xlu0 %1261
          %1263 = vrot.lane.b32.xlu0 %v1182, 12
          %v1264 = vpop.permute.xlu0 %1263
          %1265 = vrot.lane.b32.xlu0 %v1183, 12
          %v1266 = vpop.permute.xlu0 %1265
          %1267 = vrot.lane.b32.xlu0 %v1184, 12
          %v1268 = vpop.permute.xlu0 %1267
          %1269 = vrot.lane.b32.xlu0 %v1185, 12
          %v1270 = vpop.permute.xlu0 %1269
          %1271 = vrot.lane.b32.xlu0 %v1186, 12
          %v1272 = vpop.permute.xlu0 %1271
          %1273 = vrot.lane.b32.xlu0 %v1187, 12
          %v1274 = vpop.permute.xlu0 %1273
          %1275 = vrot.lane.b32.xlu0 %v1188, 12
          %v1276 = vpop.permute.xlu0 %1275
          %1277 = vrot.lane.b32.xlu0 %v1189, 12
          %v1278 = vpop.permute.xlu0 %1277
          %1279 = vrot.lane.b32.xlu0 %v1190, 12
          %v1280 = vpop.permute.xlu0 %1279
          %1281 = vrot.lane.b32.xlu0 %v1191, 12
          %v1282 = vpop.permute.xlu0 %1281
          %1283 = vrot.lane.b32.xlu0 %v1192, 12
          %v1284 = vpop.permute.xlu0 %1283
          %1285 = vrot.lane.b32.xlu0 %v1193, 12
          %v1286 = vpop.permute.xlu0 %1285
          %1287 = vrot.lane.b32.xlu0 %v1194, 12
          %v1288 = vpop.permute.xlu0 %1287
          %1289 = vrot.lane.b32.xlu0 %v1195, 12
          %v1290 = vpop.permute.xlu0 %1289
          %1291 = vrot.lane.b32.xlu0 %v1196, 12
          %v1292 = vpop.permute.xlu0 %1291
          %vm1325 = vcmask 126048
          %1326 = vst.msk [vmem:[#allocation2] sm:$0xf] %vm1325, %v1230
          %1327 = vst.msk [vmem:[#allocation2 + $0x4] sm:$0xf] %vm1325, %v1232
          %1328 = vst.msk [vmem:[#allocation2 + $0x8] sm:$0xf] %vm1325, %v1234
          %1329 = vst.msk [vmem:[#allocation2 + $0xc] sm:$0xf] %vm1325, %v1236
          %1330 = vst.msk [vmem:[#allocation2 + $0x10] sm:$0xf] %vm1325, %v1238
          %1331 = vst.msk [vmem:[#allocation2 + $0x14] sm:$0xf] %vm1325, %v1240
          %1332 = vst.msk [vmem:[#allocation2 + $0x18] sm:$0xf] %vm1325, %v1242
          %1333 = vst.msk [vmem:[#allocation2 + $0x1c] sm:$0xf] %vm1325, %v1244
          %1334 = vst.msk [vmem:[#allocation2 + $0x20] sm:$0xf] %vm1325, %v1246
          %1335 = vst.msk [vmem:[#allocation2 + $0x24] sm:$0xf] %vm1325, %v1248
          %1336 = vst.msk [vmem:[#allocation2 + $0x28] sm:$0xf] %vm1325, %v1250
          %1337 = vst.msk [vmem:[#allocation2 + $0x2c] sm:$0xf] %vm1325, %v1252
          %1338 = vst.msk [vmem:[#allocation2 + $0x30] sm:$0xf] %vm1325, %v1254
          %1339 = vst.msk [vmem:[#allocation2 + $0x34] sm:$0xf] %vm1325, %v1256
          %1340 = vst.msk [vmem:[#allocation2 + $0x38] sm:$0xf] %vm1325, %v1258
          %1341 = vst.msk [vmem:[#allocation2 + $0x3c] sm:$0xf] %vm1325, %v1260
          %1342 = vst.msk [vmem:[#allocation2 + $0x40] sm:$0xf] %vm1325, %v1262
          %1343 = vst.msk [vmem:[#allocation2 + $0x44] sm:$0xf] %vm1325, %v1264
          %1344 = vst.msk [vmem:[#allocation2 + $0x48] sm:$0xf] %vm1325, %v1266
          %1345 = vst.msk [vmem:[#allocation2 + $0x4c] sm:$0xf] %vm1325, %v1268
          %1346 = vst.msk [vmem:[#allocation2 + $0x50] sm:$0xf] %vm1325, %v1270
          %1347 = vst.msk [vmem:[#allocation2 + $0x54] sm:$0xf] %vm1325, %v1272
          %1348 = vst.msk [vmem:[#allocation2 + $0x58] sm:$0xf] %vm1325, %v1274
          %1349 = vst.msk [vmem:[#allocation2 + $0x5c] sm:$0xf] %vm1325, %v1276
          %1350 = vst.msk [vmem:[#allocation2 + $0x60] sm:$0xf] %vm1325, %v1278
          %1351 = vst.msk [vmem:[#allocation2 + $0x64] sm:$0xf] %vm1325, %v1280
          %1352 = vst.msk [vmem:[#allocation2 + $0x68] sm:$0xf] %vm1325, %v1282
          %1353 = vst.msk [vmem:[#allocation2 + $0x6c] sm:$0xf] %vm1325, %v1284
          %1354 = vst.msk [vmem:[#allocation2 + $0x70] sm:$0xf] %vm1325, %v1286
          %1355 = vst.msk [vmem:[#allocation2 + $0x74] sm:$0xf] %vm1325, %v1288
          %1356 = vst.msk [vmem:[#allocation2 + $0x78] sm:$0xf] %vm1325, %v1290
          %1357 = vst.msk [vmem:[#allocation2 + $0x7c] sm:$0xf] %vm1325, %v1292
          %v1358 = vld [vmem:[%s1164] sm:$0xf]
          %v1359 = vld [vmem:[%s1164 + $0x4] sm:$0xf]
          %v1360 = vld [vmem:[%s1164 + $0x8] sm:$0x1]
          %v1361 = vld [vmem:[%s1164 + $0xc] sm:$0xf]
          %v1362 = vld [vmem:[%s1164 + $0x10] sm:$0xf]
          %v1363 = vld [vmem:[%s1164 + $0x14] sm:$0x1]
          %v1364 = vld [vmem:[%s1164 + $0x18] sm:$0xf]
          %v1365 = vld [vmem:[%s1164 + $0x1c] sm:$0xf]
          %v1366 = vld [vmem:[%s1164 + $0x20] sm:$0x1]
          %v1367 = vld [vmem:[%s1164 + $0x24] sm:$0xf]
          %v1368 = vld [vmem:[%s1164 + $0x28] sm:$0xf]
          %v1369 = vld [vmem:[%s1164 + $0x2c] sm:$0x1]
          %v1370 = vld [vmem:[%s1164 + $0x30] sm:$0xf]
          %v1371 = vld [vmem:[%s1164 + $0x34] sm:$0xf]
          %v1372 = vld [vmem:[%s1164 + $0x38] sm:$0x1]
          %v1373 = vld [vmem:[%s1164 + $0x3c] sm:$0xf]
          %v1374 = vld [vmem:[%s1164 + $0x40] sm:$0xf]
          %v1375 = vld [vmem:[%s1164 + $0x44] sm:$0x1]
          %v1376 = vld [vmem:[%s1164 + $0x48] sm:$0xf]
          %v1377 = vld [vmem:[%s1164 + $0x4c] sm:$0xf]
          %v1378 = vld [vmem:[%s1164 + $0x50] sm:$0x1]
          %v1379 = vld [vmem:[%s1164 + $0x54] sm:$0xf]
          %v1380 = vld [vmem:[%s1164 + $0x58] sm:$0xf]
          %v1381 = vld [vmem:[%s1164 + $0x5c] sm:$0x1]
          %v1382 = vld [vmem:[%s1164 + $0x60] sm:$0xf]
          %v1383 = vld [vmem:[%s1164 + $0x64] sm:$0xf]
          %v1384 = vld [vmem:[%s1164 + $0x68] sm:$0x1]
          %v1385 = vld [vmem:[%s1164 + $0x6c] sm:$0xf]
          %v1386 = vld [vmem:[%s1164 + $0x70] sm:$0xf]
          %v1387 = vld [vmem:[%s1164 + $0x74] sm:$0x1]
          %v1388 = vld [vmem:[%s1164 + $0x78] sm:$0xf]
          %v1389 = vld [vmem:[%s1164 + $0x7c] sm:$0xf]
          %v1390 = vld [vmem:[%s1164 + $0x80] sm:$0x1]
          %v1391 = vld [vmem:[%s1164 + $0x84] sm:$0xf]
          %v1392 = vld [vmem:[%s1164 + $0x88] sm:$0xf]
          %v1393 = vld [vmem:[%s1164 + $0x8c] sm:$0x1]
          %v1394 = vld [vmem:[%s1164 + $0x90] sm:$0xf]
          %v1395 = vld [vmem:[%s1164 + $0x94] sm:$0xf]
          %v1396 = vld [vmem:[%s1164 + $0x98] sm:$0x1]
          %v1397 = vld [vmem:[%s1164 + $0x9c] sm:$0xf]
          %v1398 = vld [vmem:[%s1164 + $0xa0] sm:$0xf]
          %v1399 = vld [vmem:[%s1164 + $0xa4] sm:$0x1]
          %v1400 = vld [vmem:[%s1164 + $0xa8] sm:$0xf]
          %v1401 = vld [vmem:[%s1164 + $0xac] sm:$0xf]
          %v1402 = vld [vmem:[%s1164 + $0xb0] sm:$0x1]
          %v1403 = vld [vmem:[%s1164 + $0xb4] sm:$0xf]
          %v1404 = vld [vmem:[%s1164 + $0xb8] sm:$0xf]
          %v1405 = vld [vmem:[%s1164 + $0xbc] sm:$0x1]
          %v1407 = vshrl.u32 %v1358, 16
          %v1409 = vrot.slane %v1407, 4
          %v1410 = vshll.u32 %v1358, 16
          %v1412 = vrot.slane %v1410, 5
          %v1413 = vor.u32 %v1409, %v1412
          %v1414 = vrot.slane %v1413, 4
          %v1416 = vshll.u32 %v1359, 16
          %v1418 = vrot.slane %v1416, 5
          %v1419 = vsel %vm307, %v1414, %v1418
          %v1420 = vshrl.u32 %v1359, 16
          %v1422 = vrot.slane %v1420, 4
          %v1423 = vor.u32 %v1422, %v1418
          %v1424 = vrot.slane %v1423, 4
          %v1426 = vshll.u32 %v1360, 16
          %v1428 = vrot.slane %v1426, 5
          %v1429 = vsel %vm307, %v1424, %v1428
          %v1431 = vshrl.u32 %v1361, 16
          %v1433 = vrot.slane %v1431, 4
          %v1434 = vshll.u32 %v1361, 16
          %v1436 = vrot.slane %v1434, 5
          %v1437 = vor.u32 %v1433, %v1436
          %v1438 = vrot.slane %v1437, 4
          %v1440 = vshll.u32 %v1362, 16
          %v1442 = vrot.slane %v1440, 5
          %v1443 = vsel %vm307, %v1438, %v1442
          %v1444 = vshrl.u32 %v1362, 16
          %v1446 = vrot.slane %v1444, 4
          %v1447 = vor.u32 %v1446, %v1442
          %v1448 = vrot.slane %v1447, 4
          %v1450 = vshll.u32 %v1363, 16
          %v1452 = vrot.slane %v1450, 5
          %v1453 = vsel %vm307, %v1448, %v1452
          %v1455 = vshrl.u32 %v1364, 16
          %v1457 = vrot.slane %v1455, 4
          %v1458 = vshll.u32 %v1364, 16
          %v1460 = vrot.slane %v1458, 5
          %v1461 = vor.u32 %v1457, %v1460
          %v1462 = vrot.slane %v1461, 4
          %v1464 = vshll.u32 %v1365, 16
          %v1466 = vrot.slane %v1464, 5
          %v1467 = vsel %vm307, %v1462, %v1466
          %v1468 = vshrl.u32 %v1365, 16
          %v1470 = vrot.slane %v1468, 4
          %v1471 = vor.u32 %v1470, %v1466
          %v1472 = vrot.slane %v1471, 4
          %v1474 = vshll.u32 %v1366, 16
          %v1476 = vrot.slane %v1474, 5
          %v1477 = vsel %vm307, %v1472, %v1476
          %v1479 = vshrl.u32 %v1367, 16
          %v1481 = vrot.slane %v1479, 4
          %v1482 = vshll.u32 %v1367, 16
          %v1484 = vrot.slane %v1482, 5
          %v1485 = vor.u32 %v1481, %v1484
          %v1486 = vrot.slane %v1485, 4
          %v1488 = vshll.u32 %v1368, 16
          %v1490 = vrot.slane %v1488, 5
          %v1491 = vsel %vm307, %v1486, %v1490
          %v1492 = vshrl.u32 %v1368, 16
          %v1494 = vrot.slane %v1492, 4
          %v1495 = vor.u32 %v1494, %v1490
          %v1496 = vrot.slane %v1495, 4
          %v1498 = vshll.u32 %v1369, 16
          %v1500 = vrot.slane %v1498, 5
          %v1501 = vsel %vm307, %v1496, %v1500
          %v1503 = vshrl.u32 %v1370, 16
          %v1505 = vrot.slane %v1503, 4
          %v1506 = vshll.u32 %v1370, 16
          %v1508 = vrot.slane %v1506, 5
          %v1509 = vor.u32 %v1505, %v1508
          %v1510 = vrot.slane %v1509, 4
          %v1512 = vshll.u32 %v1371, 16
          %v1514 = vrot.slane %v1512, 5
          %v1515 = vsel %vm307, %v1510, %v1514
          %v1516 = vshrl.u32 %v1371, 16
          %v1518 = vrot.slane %v1516, 4
          %v1519 = vor.u32 %v1518, %v1514
          %v1520 = vrot.slane %v1519, 4
          %v1522 = vshll.u32 %v1372, 16
          %v1524 = vrot.slane %v1522, 5
          %v1525 = vsel %vm307, %v1520, %v1524
          %v1527 = vshrl.u32 %v1373, 16
          %v1529 = vrot.slane %v1527, 4
          %v1530 = vshll.u32 %v1373, 16
          %v1532 = vrot.slane %v1530, 5
          %v1533 = vor.u32 %v1529, %v1532
          %v1534 = vrot.slane %v1533, 4
          %v1536 = vshll.u32 %v1374, 16
          %v1538 = vrot.slane %v1536, 5
          %v1539 = vsel %vm307, %v1534, %v1538
          %v1540 = vshrl.u32 %v1374, 16
          %v1542 = vrot.slane %v1540, 4
          %v1543 = vor.u32 %v1542, %v1538
          %v1544 = vrot.slane %v1543, 4
          %v1546 = vshll.u32 %v1375, 16
          %v1548 = vrot.slane %v1546, 5
          %v1549 = vsel %vm307, %v1544, %v1548
          %v1551 = vshrl.u32 %v1376, 16
          %v1553 = vrot.slane %v1551, 4
          %v1554 = vshll.u32 %v1376, 16
          %v1556 = vrot.slane %v1554, 5
          %v1557 = vor.u32 %v1553, %v1556
          %v1558 = vrot.slane %v1557, 4
          %v1560 = vshll.u32 %v1377, 16
          %v1562 = vrot.slane %v1560, 5
          %v1563 = vsel %vm307, %v1558, %v1562
          %v1564 = vshrl.u32 %v1377, 16
          %v1566 = vrot.slane %v1564, 4
          %v1567 = vor.u32 %v1566, %v1562
          %v1568 = vrot.slane %v1567, 4
          %v1570 = vshll.u32 %v1378, 16
          %v1572 = vrot.slane %v1570, 5
          %v1573 = vsel %vm307, %v1568, %v1572
          %v1575 = vshrl.u32 %v1379, 16
          %v1577 = vrot.slane %v1575, 4
          %v1578 = vshll.u32 %v1379, 16
          %v1580 = vrot.slane %v1578, 5
          %v1581 = vor.u32 %v1577, %v1580
          %v1582 = vrot.slane %v1581, 4
          %v1584 = vshll.u32 %v1380, 16
          %v1586 = vrot.slane %v1584, 5
          %v1587 = vsel %vm307, %v1582, %v1586
          %v1588 = vshrl.u32 %v1380, 16
          %v1590 = vrot.slane %v1588, 4
          %v1591 = vor.u32 %v1590, %v1586
          %v1592 = vrot.slane %v1591, 4
          %v1594 = vshll.u32 %v1381, 16
          %v1596 = vrot.slane %v1594, 5
          %v1597 = vsel %vm307, %v1592, %v1596
          %v1599 = vshrl.u32 %v1382, 16
          %v1601 = vrot.slane %v1599, 4
          %v1602 = vshll.u32 %v1382, 16
          %v1604 = vrot.slane %v1602, 5
          %v1605 = vor.u32 %v1601, %v1604
          %v1606 = vrot.slane %v1605, 4
          %v1608 = vshll.u32 %v1383, 16
          %v1610 = vrot.slane %v1608, 5
          %v1611 = vsel %vm307, %v1606, %v1610
          %v1612 = vshrl.u32 %v1383, 16
          %v1614 = vrot.slane %v1612, 4
          %v1615 = vor.u32 %v1614, %v1610
          %v1616 = vrot.slane %v1615, 4
          %v1618 = vshll.u32 %v1384, 16
          %v1620 = vrot.slane %v1618, 5
          %v1621 = vsel %vm307, %v1616, %v1620
          %v1623 = vshrl.u32 %v1385, 16
          %v1625 = vrot.slane %v1623, 4
          %v1626 = vshll.u32 %v1385, 16
          %v1628 = vrot.slane %v1626, 5
          %v1629 = vor.u32 %v1625, %v1628
          %v1630 = vrot.slane %v1629, 4
          %v1632 = vshll.u32 %v1386, 16
          %v1634 = vrot.slane %v1632, 5
          %v1635 = vsel %vm307, %v1630, %v1634
          %v1636 = vshrl.u32 %v1386, 16
          %v1638 = vrot.slane %v1636, 4
          %v1639 = vor.u32 %v1638, %v1634
          %v1640 = vrot.slane %v1639, 4
          %v1642 = vshll.u32 %v1387, 16
          %v1644 = vrot.slane %v1642, 5
          %v1645 = vsel %vm307, %v1640, %v1644
          %v1647 = vshrl.u32 %v1388, 16
          %v1649 = vrot.slane %v1647, 4
          %v1650 = vshll.u32 %v1388, 16
          %v1652 = vrot.slane %v1650, 5
          %v1653 = vor.u32 %v1649, %v1652
          %v1654 = vrot.slane %v1653, 4
          %v1656 = vshll.u32 %v1389, 16
          %v1658 = vrot.slane %v1656, 5
          %v1659 = vsel %vm307, %v1654, %v1658
          %v1660 = vshrl.u32 %v1389, 16
          %v1662 = vrot.slane %v1660, 4
          %v1663 = vor.u32 %v1662, %v1658
          %v1664 = vrot.slane %v1663, 4
          %v1666 = vshll.u32 %v1390, 16
          %v1668 = vrot.slane %v1666, 5
          %v1669 = vsel %vm307, %v1664, %v1668
          %v1671 = vshrl.u32 %v1391, 16
          %v1673 = vrot.slane %v1671, 4
          %v1674 = vshll.u32 %v1391, 16
          %v1676 = vrot.slane %v1674, 5
          %v1677 = vor.u32 %v1673, %v1676
          %v1678 = vrot.slane %v1677, 4
          %v1680 = vshll.u32 %v1392, 16
          %v1682 = vrot.slane %v1680, 5
          %v1683 = vsel %vm307, %v1678, %v1682
          %v1684 = vshrl.u32 %v1392, 16
          %v1686 = vrot.slane %v1684, 4
          %v1687 = vor.u32 %v1686, %v1682
          %v1688 = vrot.slane %v1687, 4
          %v1690 = vshll.u32 %v1393, 16
          %v1692 = vrot.slane %v1690, 5
          %v1693 = vsel %vm307, %v1688, %v1692
          %v1695 = vshrl.u32 %v1394, 16
          %v1697 = vrot.slane %v1695, 4
          %v1698 = vshll.u32 %v1394, 16
          %v1700 = vrot.slane %v1698, 5
          %v1701 = vor.u32 %v1697, %v1700
          %v1702 = vrot.slane %v1701, 4
          %v1704 = vshll.u32 %v1395, 16
          %v1706 = vrot.slane %v1704, 5
          %v1707 = vsel %vm307, %v1702, %v1706
          %v1708 = vshrl.u32 %v1395, 16
          %v1710 = vrot.slane %v1708, 4
          %v1711 = vor.u32 %v1710, %v1706
          %v1712 = vrot.slane %v1711, 4
          %v1714 = vshll.u32 %v1396, 16
          %v1716 = vrot.slane %v1714, 5
          %v1717 = vsel %vm307, %v1712, %v1716
          %v1719 = vshrl.u32 %v1397, 16
          %v1721 = vrot.slane %v1719, 4
          %v1722 = vshll.u32 %v1397, 16
          %v1724 = vrot.slane %v1722, 5
          %v1725 = vor.u32 %v1721, %v1724
          %v1726 = vrot.slane %v1725, 4
          %v1728 = vshll.u32 %v1398, 16
          %v1730 = vrot.slane %v1728, 5
          %v1731 = vsel %vm307, %v1726, %v1730
          %v1732 = vshrl.u32 %v1398, 16
          %v1734 = vrot.slane %v1732, 4
          %v1735 = vor.u32 %v1734, %v1730
          %v1736 = vrot.slane %v1735, 4
          %v1738 = vshll.u32 %v1399, 16
          %v1740 = vrot.slane %v1738, 5
          %v1741 = vsel %vm307, %v1736, %v1740
          %v1743 = vshrl.u32 %v1400, 16
          %v1745 = vrot.slane %v1743, 4
          %v1746 = vshll.u32 %v1400, 16
          %v1748 = vrot.slane %v1746, 5
          %v1749 = vor.u32 %v1745, %v1748
          %v1750 = vrot.slane %v1749, 4
          %v1752 = vshll.u32 %v1401, 16
          %v1754 = vrot.slane %v1752, 5
          %v1755 = vsel %vm307, %v1750, %v1754
          %v1756 = vshrl.u32 %v1401, 16
          %v1758 = vrot.slane %v1756, 4
          %v1759 = vor.u32 %v1758, %v1754
          %v1760 = vrot.slane %v1759, 4
          %v1762 = vshll.u32 %v1402, 16
          %v1764 = vrot.slane %v1762, 5
          %v1765 = vsel %vm307, %v1760, %v1764
          %v1767 = vshrl.u32 %v1403, 16
          %v1769 = vrot.slane %v1767, 4
          %v1770 = vshll.u32 %v1403, 16
          %v1772 = vrot.slane %v1770, 5
          %v1773 = vor.u32 %v1769, %v1772
          %v1774 = vrot.slane %v1773, 4
          %v1776 = vshll.u32 %v1404, 16
          %v1778 = vrot.slane %v1776, 5
          %v1779 = vsel %vm307, %v1774, %v1778
          %v1780 = vshrl.u32 %v1404, 16
          %v1782 = vrot.slane %v1780, 4
          %v1783 = vor.u32 %v1782, %v1778
          %v1784 = vrot.slane %v1783, 4
          %v1786 = vshll.u32 %v1405, 16
          %v1788 = vrot.slane %v1786, 5
          %v1789 = vsel %vm307, %v1784, %v1788
          %1790 = vrot.lane.b32.xlu0 %v1419, 16
          %v1791 = vpop.permute.xlu0 %1790
          %1792 = vrot.lane.b32.xlu0 %v1429, 16
          %v1793 = vpop.permute.xlu0 %1792
          %1794 = vrot.lane.b32.xlu0 %v1443, 16
          %v1795 = vpop.permute.xlu0 %1794
          %1796 = vrot.lane.b32.xlu0 %v1453, 16
          %v1797 = vpop.permute.xlu0 %1796
          %1798 = vrot.lane.b32.xlu0 %v1467, 16
          %v1799 = vpop.permute.xlu0 %1798
          %1800 = vrot.lane.b32.xlu0 %v1477, 16
          %v1801 = vpop.permute.xlu0 %1800
          %1802 = vrot.lane.b32.xlu0 %v1491, 16
          %v1803 = vpop.permute.xlu0 %1802
          %1804 = vrot.lane.b32.xlu0 %v1501, 16
          %v1805 = vpop.permute.xlu0 %1804
          %1806 = vrot.lane.b32.xlu0 %v1515, 16
          %v1807 = vpop.permute.xlu0 %1806
          %1808 = vrot.lane.b32.xlu0 %v1525, 16
          %v1809 = vpop.permute.xlu0 %1808
          %1810 = vrot.lane.b32.xlu0 %v1539, 16
          %v1811 = vpop.permute.xlu0 %1810
          %1812 = vrot.lane.b32.xlu0 %v1549, 16
          %v1813 = vpop.permute.xlu0 %1812
          %1814 = vrot.lane.b32.xlu0 %v1563, 16
          %v1815 = vpop.permute.xlu0 %1814
          %1816 = vrot.lane.b32.xlu0 %v1573, 16
          %v1817 = vpop.permute.xlu0 %1816
          %1818 = vrot.lane.b32.xlu0 %v1587, 16
          %v1819 = vpop.permute.xlu0 %1818
          %1820 = vrot.lane.b32.xlu0 %v1597, 16
          %v1821 = vpop.permute.xlu0 %1820
          %1822 = vrot.lane.b32.xlu0 %v1611, 16
          %v1823 = vpop.permute.xlu0 %1822
          %1824 = vrot.lane.b32.xlu0 %v1621, 16
          %v1825 = vpop.permute.xlu0 %1824
          %1826 = vrot.lane.b32.xlu0 %v1635, 16
          %v1827 = vpop.permute.xlu0 %1826
          %1828 = vrot.lane.b32.xlu0 %v1645, 16
          %v1829 = vpop.permute.xlu0 %1828
          %1830 = vrot.lane.b32.xlu0 %v1659, 16
          %v1831 = vpop.permute.xlu0 %1830
          %1832 = vrot.lane.b32.xlu0 %v1669, 16
          %v1833 = vpop.permute.xlu0 %1832
          %1834 = vrot.lane.b32.xlu0 %v1683, 16
          %v1835 = vpop.permute.xlu0 %1834
          %1836 = vrot.lane.b32.xlu0 %v1693, 16
          %v1837 = vpop.permute.xlu0 %1836
          %1838 = vrot.lane.b32.xlu0 %v1707, 16
          %v1839 = vpop.permute.xlu0 %1838
          %1840 = vrot.lane.b32.xlu0 %v1717, 16
          %v1841 = vpop.permute.xlu0 %1840
          %1842 = vrot.lane.b32.xlu0 %v1731, 16
          %v1843 = vpop.permute.xlu0 %1842
          %1844 = vrot.lane.b32.xlu0 %v1741, 16
          %v1845 = vpop.permute.xlu0 %1844
          %1846 = vrot.lane.b32.xlu0 %v1755, 16
          %v1847 = vpop.permute.xlu0 %1846
          %1848 = vrot.lane.b32.xlu0 %v1765, 16
          %v1849 = vpop.permute.xlu0 %1848
          %1850 = vrot.lane.b32.xlu0 %v1779, 16
          %v1851 = vpop.permute.xlu0 %1850
          %1852 = vrot.lane.b32.xlu0 %v1789, 16
          %v1853 = vpop.permute.xlu0 %1852
          %vm1886 = vcmask 158848
          %1887 = vst.msk [vmem:[#allocation2] sm:$0xf] %vm1886, %v1791
          %1888 = vst.msk [vmem:[#allocation2 + $0x4] sm:$0xf] %vm1886, %v1793
          %1889 = vst.msk [vmem:[#allocation2 + $0x8] sm:$0xf] %vm1886, %v1795
          %1890 = vst.msk [vmem:[#allocation2 + $0xc] sm:$0xf] %vm1886, %v1797
          %1891 = vst.msk [vmem:[#allocation2 + $0x10] sm:$0xf] %vm1886, %v1799
          %1892 = vst.msk [vmem:[#allocation2 + $0x14] sm:$0xf] %vm1886, %v1801
          %1893 = vst.msk [vmem:[#allocation2 + $0x18] sm:$0xf] %vm1886, %v1803
          %1894 = vst.msk [vmem:[#allocation2 + $0x1c] sm:$0xf] %vm1886, %v1805
          %1895 = vst.msk [vmem:[#allocation2 + $0x20] sm:$0xf] %vm1886, %v1807
          %1896 = vst.msk [vmem:[#allocation2 + $0x24] sm:$0xf] %vm1886, %v1809
          %1897 = vst.msk [vmem:[#allocation2 + $0x28] sm:$0xf] %vm1886, %v1811
          %1898 = vst.msk [vmem:[#allocation2 + $0x2c] sm:$0xf] %vm1886, %v1813
          %1899 = vst.msk [vmem:[#allocation2 + $0x30] sm:$0xf] %vm1886, %v1815
          %1900 = vst.msk [vmem:[#allocation2 + $0x34] sm:$0xf] %vm1886, %v1817
          %1901 = vst.msk [vmem:[#allocation2 + $0x38] sm:$0xf] %vm1886, %v1819
          %1902 = vst.msk [vmem:[#allocation2 + $0x3c] sm:$0xf] %vm1886, %v1821
          %1903 = vst.msk [vmem:[#allocation2 + $0x40] sm:$0xf] %vm1886, %v1823
          %1904 = vst.msk [vmem:[#allocation2 + $0x44] sm:$0xf] %vm1886, %v1825
          %1905 = vst.msk [vmem:[#allocation2 + $0x48] sm:$0xf] %vm1886, %v1827
          %1906 = vst.msk [vmem:[#allocation2 + $0x4c] sm:$0xf] %vm1886, %v1829
          %1907 = vst.msk [vmem:[#allocation2 + $0x50] sm:$0xf] %vm1886, %v1831
          %1908 = vst.msk [vmem:[#allocation2 + $0x54] sm:$0xf] %vm1886, %v1833
          %1909 = vst.msk [vmem:[#allocation2 + $0x58] sm:$0xf] %vm1886, %v1835
          %1910 = vst.msk [vmem:[#allocation2 + $0x5c] sm:$0xf] %vm1886, %v1837
          %1911 = vst.msk [vmem:[#allocation2 + $0x60] sm:$0xf] %vm1886, %v1839
          %1912 = vst.msk [vmem:[#allocation2 + $0x64] sm:$0xf] %vm1886, %v1841
          %1913 = vst.msk [vmem:[#allocation2 + $0x68] sm:$0xf] %vm1886, %v1843
          %1914 = vst.msk [vmem:[#allocation2 + $0x6c] sm:$0xf] %vm1886, %v1845
          %1915 = vst.msk [vmem:[#allocation2 + $0x70] sm:$0xf] %vm1886, %v1847
          %1916 = vst.msk [vmem:[#allocation2 + $0x74] sm:$0xf] %vm1886, %v1849
          %1917 = vst.msk [vmem:[#allocation2 + $0x78] sm:$0xf] %vm1886, %v1851
          %1918 = vst.msk [vmem:[#allocation2 + $0x7c] sm:$0xf] %vm1886, %v1853
          %v1919 = vld [vmem:[%s1164] sm:$0xe]
          %v1920 = vld [vmem:[%s1164 + $0x4] sm:$0xf]
          %v1921 = vld [vmem:[%s1164 + $0x8] sm:$0x1]
          %v1922 = vld [vmem:[%s1164 + $0xc] sm:$0xe]
          %v1923 = vld [vmem:[%s1164 + $0x10] sm:$0xf]
          %v1924 = vld [vmem:[%s1164 + $0x14] sm:$0x1]
          %v1925 = vld [vmem:[%s1164 + $0x18] sm:$0xe]
          %v1926 = vld [vmem:[%s1164 + $0x1c] sm:$0xf]
          %v1927 = vld [vmem:[%s1164 + $0x20] sm:$0x1]
          %v1928 = vld [vmem:[%s1164 + $0x24] sm:$0xe]
          %v1929 = vld [vmem:[%s1164 + $0x28] sm:$0xf]
          %v1930 = vld [vmem:[%s1164 + $0x2c] sm:$0x1]
          %v1931 = vld [vmem:[%s1164 + $0x30] sm:$0xe]
          %v1932 = vld [vmem:[%s1164 + $0x34] sm:$0xf]
          %v1933 = vld [vmem:[%s1164 + $0x38] sm:$0x1]
          %v1934 = vld [vmem:[%s1164 + $0x3c] sm:$0xe]
          %v1935 = vld [vmem:[%s1164 + $0x40] sm:$0xf]
          %v1936 = vld [vmem:[%s1164 + $0x44] sm:$0x1]
          %v1937 = vld [vmem:[%s1164 + $0x48] sm:$0xe]
          %v1938 = vld [vmem:[%s1164 + $0x4c] sm:$0xf]
          %v1939 = vld [vmem:[%s1164 + $0x50] sm:$0x1]
          %v1940 = vld [vmem:[%s1164 + $0x54] sm:$0xe]
          %v1941 = vld [vmem:[%s1164 + $0x58] sm:$0xf]
          %v1942 = vld [vmem:[%s1164 + $0x5c] sm:$0x1]
          %v1943 = vld [vmem:[%s1164 + $0x60] sm:$0xe]
          %v1944 = vld [vmem:[%s1164 + $0x64] sm:$0xf]
          %v1945 = vld [vmem:[%s1164 + $0x68] sm:$0x1]
          %v1946 = vld [vmem:[%s1164 + $0x6c] sm:$0xe]
          %v1947 = vld [vmem:[%s1164 + $0x70] sm:$0xf]
          %v1948 = vld [vmem:[%s1164 + $0x74] sm:$0x1]
          %v1949 = vld [vmem:[%s1164 + $0x78] sm:$0xe]
          %v1950 = vld [vmem:[%s1164 + $0x7c] sm:$0xf]
          %v1951 = vld [vmem:[%s1164 + $0x80] sm:$0x1]
          %v1952 = vld [vmem:[%s1164 + $0x84] sm:$0xe]
          %v1953 = vld [vmem:[%s1164 + $0x88] sm:$0xf]
          %v1954 = vld [vmem:[%s1164 + $0x8c] sm:$0x1]
          %v1955 = vld [vmem:[%s1164 + $0x90] sm:$0xe]
          %v1956 = vld [vmem:[%s1164 + $0x94] sm:$0xf]
          %v1957 = vld [vmem:[%s1164 + $0x98] sm:$0x1]
          %v1958 = vld [vmem:[%s1164 + $0x9c] sm:$0xe]
          %v1959 = vld [vmem:[%s1164 + $0xa0] sm:$0xf]
          %v1960 = vld [vmem:[%s1164 + $0xa4] sm:$0x1]
          %v1961 = vld [vmem:[%s1164 + $0xa8] sm:$0xe]
          %v1962 = vld [vmem:[%s1164 + $0xac] sm:$0xf]
          %v1963 = vld [vmem:[%s1164 + $0xb0] sm:$0x1]
          %v1964 = vld [vmem:[%s1164 + $0xb4] sm:$0xe]
          %v1965 = vld [vmem:[%s1164 + $0xb8] sm:$0xf]
          %v1966 = vld [vmem:[%s1164 + $0xbc] sm:$0x1]
          %v2015 = vrot.slane %v1919, 5
          %v2016 = vrot.slane %v2015, 4
          %v2017 = vrot.slane %v1920, 5
          %v2018 = vsel %vm919, %v2016, %v2017
          %v2019 = vrot.slane %v2017, 4
          %v2020 = vrot.slane %v1921, 5
          %v2021 = vsel %vm919, %v2019, %v2020
          %v2022 = vrot.slane %v1922, 5
          %v2023 = vrot.slane %v2022, 4
          %v2024 = vrot.slane %v1923, 5
          %v2025 = vsel %vm919, %v2023, %v2024
          %v2026 = vrot.slane %v2024, 4
          %v2027 = vrot.slane %v1924, 5
          %v2028 = vsel %vm919, %v2026, %v2027
          %v2029 = vrot.slane %v1925, 5
          %v2030 = vrot.slane %v2029, 4
          %v2031 = vrot.slane %v1926, 5
          %v2032 = vsel %vm919, %v2030, %v2031
          %v2033 = vrot.slane %v2031, 4
          %v2034 = vrot.slane %v1927, 5
          %v2035 = vsel %vm919, %v2033, %v2034
          %v2036 = vrot.slane %v1928, 5
          %v2037 = vrot.slane %v2036, 4
          %v2038 = vrot.slane %v1929, 5
          %v2039 = vsel %vm919, %v2037, %v2038
          %v2040 = vrot.slane %v2038, 4
          %v2041 = vrot.slane %v1930, 5
          %v2042 = vsel %vm919, %v2040, %v2041
          %v2043 = vrot.slane %v1931, 5
          %v2044 = vrot.slane %v2043, 4
          %v2045 = vrot.slane %v1932, 5
          %v2046 = vsel %vm919, %v2044, %v2045
          %v2047 = vrot.slane %v2045, 4
          %v2048 = vrot.slane %v1933, 5
          %v2049 = vsel %vm919, %v2047, %v2048
          %v2050 = vrot.slane %v1934, 5
          %v2051 = vrot.slane %v2050, 4
          %v2052 = vrot.slane %v1935, 5
          %v2053 = vsel %vm919, %v2051, %v2052
          %v2054 = vrot.slane %v2052, 4
          %v2055 = vrot.slane %v1936, 5
          %v2056 = vsel %vm919, %v2054, %v2055
          %v2057 = vrot.slane %v1937, 5
          %v2058 = vrot.slane %v2057, 4
          %v2059 = vrot.slane %v1938, 5
          %v2060 = vsel %vm919, %v2058, %v2059
          %v2061 = vrot.slane %v2059, 4
          %v2062 = vrot.slane %v1939, 5
          %v2063 = vsel %vm919, %v2061, %v2062
          %v2064 = vrot.slane %v1940, 5
          %v2065 = vrot.slane %v2064, 4
          %v2066 = vrot.slane %v1941, 5
          %v2067 = vsel %vm919, %v2065, %v2066
          %v2068 = vrot.slane %v2066, 4
          %v2069 = vrot.slane %v1942, 5
          %v2070 = vsel %vm919, %v2068, %v2069
          %v2071 = vrot.slane %v1943, 5
          %v2072 = vrot.slane %v2071, 4
          %v2073 = vrot.slane %v1944, 5
          %v2074 = vsel %vm919, %v2072, %v2073
          %v2075 = vrot.slane %v2073, 4
          %v2076 = vrot.slane %v1945, 5
          %v2077 = vsel %vm919, %v2075, %v2076
          %v2078 = vrot.slane %v1946, 5
          %v2079 = vrot.slane %v2078, 4
          %v2080 = vrot.slane %v1947, 5
          %v2081 = vsel %vm919, %v2079, %v2080
          %v2082 = vrot.slane %v2080, 4
          %v2083 = vrot.slane %v1948, 5
          %v2084 = vsel %vm919, %v2082, %v2083
          %v2085 = vrot.slane %v1949, 5
          %v2086 = vrot.slane %v2085, 4
          %v2087 = vrot.slane %v1950, 5
          %v2088 = vsel %vm919, %v2086, %v2087
          %v2089 = vrot.slane %v2087, 4
          %v2090 = vrot.slane %v1951, 5
          %v2091 = vsel %vm919, %v2089, %v2090
          %v2092 = vrot.slane %v1952, 5
          %v2093 = vrot.slane %v2092, 4
          %v2094 = vrot.slane %v1953, 5
          %v2095 = vsel %vm919, %v2093, %v2094
          %v2096 = vrot.slane %v2094, 4
          %v2097 = vrot.slane %v1954, 5
          %v2098 = vsel %vm919, %v2096, %v2097
          %v2099 = vrot.slane %v1955, 5
          %v2100 = vrot.slane %v2099, 4
          %v2101 = vrot.slane %v1956, 5
          %v2102 = vsel %vm919, %v2100, %v2101
          %v2103 = vrot.slane %v2101, 4
          %v2104 = vrot.slane %v1957, 5
          %v2105 = vsel %vm919, %v2103, %v2104
          %v2106 = vrot.slane %v1958, 5
          %v2107 = vrot.slane %v2106, 4
          %v2108 = vrot.slane %v1959, 5
          %v2109 = vsel %vm919, %v2107, %v2108
          %v2110 = vrot.slane %v2108, 4
          %v2111 = vrot.slane %v1960, 5
          %v2112 = vsel %vm919, %v2110, %v2111
          %v2113 = vrot.slane %v1961, 5
          %v2114 = vrot.slane %v2113, 4
          %v2115 = vrot.slane %v1962, 5
          %v2116 = vsel %vm919, %v2114, %v2115
          %v2117 = vrot.slane %v2115, 4
          %v2118 = vrot.slane %v1963, 5
          %v2119 = vsel %vm919, %v2117, %v2118
          %v2120 = vrot.slane %v1964, 5
          %v2121 = vrot.slane %v2120, 4
          %v2122 = vrot.slane %v1965, 5
          %v2123 = vsel %vm919, %v2121, %v2122
          %v2124 = vrot.slane %v2122, 4
          %v2125 = vrot.slane %v1966, 5
          %v2126 = vsel %vm919, %v2124, %v2125
          %2127 = vrot.lane.b32.xlu0 %v2018, 20
          %v2128 = vpop.permute.xlu0 %2127
          %2129 = vrot.lane.b32.xlu0 %v2021, 20
          %v2130 = vpop.permute.xlu0 %2129
          %2131 = vrot.lane.b32.xlu0 %v2025, 20
          %v2132 = vpop.permute.xlu0 %2131
          %2133 = vrot.lane.b32.xlu0 %v2028, 20
          %v2134 = vpop.permute.xlu0 %2133
          %2135 = vrot.lane.b32.xlu0 %v2032, 20
          %v2136 = vpop.permute.xlu0 %2135
          %2137 = vrot.lane.b32.xlu0 %v2035, 20
          %v2138 = vpop.permute.xlu0 %2137
          %2139 = vrot.lane.b32.xlu0 %v2039, 20
          %v2140 = vpop.permute.xlu0 %2139
          %2141 = vrot.lane.b32.xlu0 %v2042, 20
          %v2142 = vpop.permute.xlu0 %2141
          %2143 = vrot.lane.b32.xlu0 %v2046, 20
          %v2144 = vpop.permute.xlu0 %2143
          %2145 = vrot.lane.b32.xlu0 %v2049, 20
          %v2146 = vpop.permute.xlu0 %2145
          %2147 = vrot.lane.b32.xlu0 %v2053, 20
          %v2148 = vpop.permute.xlu0 %2147
          %2149 = vrot.lane.b32.xlu0 %v2056, 20
          %v2150 = vpop.permute.xlu0 %2149
          %2151 = vrot.lane.b32.xlu0 %v2060, 20
          %v2152 = vpop.permute.xlu0 %2151
          %2153 = vrot.lane.b32.xlu0 %v2063, 20
          %v2154 = vpop.permute.xlu0 %2153
          %2155 = vrot.lane.b32.xlu0 %v2067, 20
          %v2156 = vpop.permute.xlu0 %2155
          %2157 = vrot.lane.b32.xlu0 %v2070, 20
          %v2158 = vpop.permute.xlu0 %2157
          %2159 = vrot.lane.b32.xlu0 %v2074, 20
          %v2160 = vpop.permute.xlu0 %2159
          %2161 = vrot.lane.b32.xlu0 %v2077, 20
          %v2162 = vpop.permute.xlu0 %2161
          %2163 = vrot.lane.b32.xlu0 %v2081, 20
          %v2164 = vpop.permute.xlu0 %2163
          %2165 = vrot.lane.b32.xlu0 %v2084, 20
          %v2166 = vpop.permute.xlu0 %2165
          %2167 = vrot.lane.b32.xlu0 %v2088, 20
          %v2168 = vpop.permute.xlu0 %2167
          %2169 = vrot.lane.b32.xlu0 %v2091, 20
          %v2170 = vpop.permute.xlu0 %2169
          %2171 = vrot.lane.b32.xlu0 %v2095, 20
          %v2172 = vpop.permute.xlu0 %2171
          %2173 = vrot.lane.b32.xlu0 %v2098, 20
          %v2174 = vpop.permute.xlu0 %2173
          %2175 = vrot.lane.b32.xlu0 %v2102, 20
          %v2176 = vpop.permute.xlu0 %2175
          %2177 = vrot.lane.b32.xlu0 %v2105, 20
          %v2178 = vpop.permute.xlu0 %2177
          %2179 = vrot.lane.b32.xlu0 %v2109, 20
          %v2180 = vpop.permute.xlu0 %2179
          %2181 = vrot.lane.b32.xlu0 %v2112, 20
          %v2182 = vpop.permute.xlu0 %2181
          %2183 = vrot.lane.b32.xlu0 %v2116, 20
          %v2184 = vpop.permute.xlu0 %2183
          %2185 = vrot.lane.b32.xlu0 %v2119, 20
          %v2186 = vpop.permute.xlu0 %2185
          %2187 = vrot.lane.b32.xlu0 %v2123, 20
          %v2188 = vpop.permute.xlu0 %2187
          %2189 = vrot.lane.b32.xlu0 %v2126, 20
          %v2190 = vpop.permute.xlu0 %2189
          %vm2223 = vcmask 191648
          %2224 = vst.msk [vmem:[#allocation2] sm:$0xf] %vm2223, %v2128
          %2225 = vst.msk [vmem:[#allocation2 + $0x4] sm:$0xf] %vm2223, %v2130
          %2226 = vst.msk [vmem:[#allocation2 + $0x8] sm:$0xf] %vm2223, %v2132
          %2227 = vst.msk [vmem:[#allocation2 + $0xc] sm:$0xf] %vm2223, %v2134
          %2228 = vst.msk [vmem:[#allocation2 + $0x10] sm:$0xf] %vm2223, %v2136
          %2229 = vst.msk [vmem:[#allocation2 + $0x14] sm:$0xf] %vm2223, %v2138
          %2230 = vst.msk [vmem:[#allocation2 + $0x18] sm:$0xf] %vm2223, %v2140
          %2231 = vst.msk [vmem:[#allocation2 + $0x1c] sm:$0xf] %vm2223, %v2142
          %2232 = vst.msk [vmem:[#allocation2 + $0x20] sm:$0xf] %vm2223, %v2144
          %2233 = vst.msk [vmem:[#allocation2 + $0x24] sm:$0xf] %vm2223, %v2146
          %2234 = vst.msk [vmem:[#allocation2 + $0x28] sm:$0xf] %vm2223, %v2148
          %2235 = vst.msk [vmem:[#allocation2 + $0x2c] sm:$0xf] %vm2223, %v2150
          %2236 = vst.msk [vmem:[#allocation2 + $0x30] sm:$0xf] %vm2223, %v2152
          %2237 = vst.msk [vmem:[#allocation2 + $0x34] sm:$0xf] %vm2223, %v2154
          %2238 = vst.msk [vmem:[#allocation2 + $0x38] sm:$0xf] %vm2223, %v2156
          %2239 = vst.msk [vmem:[#allocation2 + $0x3c] sm:$0xf] %vm2223, %v2158
          %2240 = vst.msk [vmem:[#allocation2 + $0x40] sm:$0xf] %vm2223, %v2160
          %2241 = vst.msk [vmem:[#allocation2 + $0x44] sm:$0xf] %vm2223, %v2162
          %2242 = vst.msk [vmem:[#allocation2 + $0x48] sm:$0xf] %vm2223, %v2164
          %2243 = vst.msk [vmem:[#allocation2 + $0x4c] sm:$0xf] %vm2223, %v2166
          %2244 = vst.msk [vmem:[#allocation2 + $0x50] sm:$0xf] %vm2223, %v2168
          %2245 = vst.msk [vmem:[#allocation2 + $0x54] sm:$0xf] %vm2223, %v2170
          %2246 = vst.msk [vmem:[#allocation2 + $0x58] sm:$0xf] %vm2223, %v2172
          %2247 = vst.msk [vmem:[#allocation2 + $0x5c] sm:$0xf] %vm2223, %v2174
          %2248 = vst.msk [vmem:[#allocation2 + $0x60] sm:$0xf] %vm2223, %v2176
          %2249 = vst.msk [vmem:[#allocation2 + $0x64] sm:$0xf] %vm2223, %v2178
          %2250 = vst.msk [vmem:[#allocation2 + $0x68] sm:$0xf] %vm2223, %v2180
          %2251 = vst.msk [vmem:[#allocation2 + $0x6c] sm:$0xf] %vm2223, %v2182
          %2252 = vst.msk [vmem:[#allocation2 + $0x70] sm:$0xf] %vm2223, %v2184
          %2253 = vst.msk [vmem:[#allocation2 + $0x74] sm:$0xf] %vm2223, %v2186
          %2254 = vst.msk [vmem:[#allocation2 + $0x78] sm:$0xf] %vm2223, %v2188
          %2255 = vst.msk [vmem:[#allocation2 + $0x7c] sm:$0xf] %vm2223, %v2190
          %s2256 = sadd.s32 %s188, 2
          %s2257 = smul.u32 %s2256, 3
          %s2258 = smul.addr %s2257, 4
          %s2259 = scalar_lea.vmem %s177, %s2258
          %v2260 = vld [vmem:[%s2259] sm:$0xf]
          %v2261 = vld [vmem:[%s2259 + $0x4] sm:$0xf]
          %v2262 = vld [vmem:[%s2259 + $0xc] sm:$0xf]
          %v2263 = vld [vmem:[%s2259 + $0x10] sm:$0xf]
          %v2264 = vld [vmem:[%s2259 + $0x18] sm:$0xf]
          %v2265 = vld [vmem:[%s2259 + $0x1c] sm:$0xf]
          %v2266 = vld [vmem:[%s2259 + $0x24] sm:$0xf]
          %v2267 = vld [vmem:[%s2259 + $0x28] sm:$0xf]
          %v2268 = vld [vmem:[%s2259 + $0x30] sm:$0xf]
          %v2269 = vld [vmem:[%s2259 + $0x34] sm:$0xf]
          %v2270 = vld [vmem:[%s2259 + $0x3c] sm:$0xf]
          %v2271 = vld [vmem:[%s2259 + $0x40] sm:$0xf]
          %v2272 = vld [vmem:[%s2259 + $0x48] sm:$0xf]
          %v2273 = vld [vmem:[%s2259 + $0x4c] sm:$0xf]
          %v2274 = vld [vmem:[%s2259 + $0x54] sm:$0xf]
          %v2275 = vld [vmem:[%s2259 + $0x58] sm:$0xf]
          %v2276 = vld [vmem:[%s2259 + $0x60] sm:$0xf]
          %v2277 = vld [vmem:[%s2259 + $0x64] sm:$0xf]
          %v2278 = vld [vmem:[%s2259 + $0x6c] sm:$0xf]
          %v2279 = vld [vmem:[%s2259 + $0x70] sm:$0xf]
          %v2280 = vld [vmem:[%s2259 + $0x78] sm:$0xf]
          %v2281 = vld [vmem:[%s2259 + $0x7c] sm:$0xf]
          %v2282 = vld [vmem:[%s2259 + $0x84] sm:$0xf]
          %v2283 = vld [vmem:[%s2259 + $0x88] sm:$0xf]
          %v2284 = vld [vmem:[%s2259 + $0x90] sm:$0xf]
          %v2285 = vld [vmem:[%s2259 + $0x94] sm:$0xf]
          %v2286 = vld [vmem:[%s2259 + $0x9c] sm:$0xf]
          %v2287 = vld [vmem:[%s2259 + $0xa0] sm:$0xf]
          %v2288 = vld [vmem:[%s2259 + $0xa8] sm:$0xf]
          %v2289 = vld [vmem:[%s2259 + $0xac] sm:$0xf]
          %v2290 = vld [vmem:[%s2259 + $0xb4] sm:$0xf]
          %v2291 = vld [vmem:[%s2259 + $0xb8] sm:$0xf]
          %2324 = vrot.lane.b32.xlu0 %v2260, 24
          %v2325 = vpop.permute.xlu0 %2324
          %2326 = vrot.lane.b32.xlu0 %v2261, 24
          %v2327 = vpop.permute.xlu0 %2326
          %2328 = vrot.lane.b32.xlu0 %v2262, 24
          %v2329 = vpop.permute.xlu0 %2328
          %2330 = vrot.lane.b32.xlu0 %v2263, 24
          %v2331 = vpop.permute.xlu0 %2330
          %2332 = vrot.lane.b32.xlu0 %v2264, 24
          %v2333 = vpop.permute.xlu0 %2332
          %2334 = vrot.lane.b32.xlu0 %v2265, 24
          %v2335 = vpop.permute.xlu0 %2334
          %2336 = vrot.lane.b32.xlu0 %v2266, 24
          %v2337 = vpop.permute.xlu0 %2336
          %2338 = vrot.lane.b32.xlu0 %v2267, 24
          %v2339 = vpop.permute.xlu0 %2338
          %2340 = vrot.lane.b32.xlu0 %v2268, 24
          %v2341 = vpop.permute.xlu0 %2340
          %2342 = vrot.lane.b32.xlu0 %v2269, 24
          %v2343 = vpop.permute.xlu0 %2342
          %2344 = vrot.lane.b32.xlu0 %v2270, 24
          %v2345 = vpop.permute.xlu0 %2344
          %2346 = vrot.lane.b32.xlu0 %v2271, 24
          %v2347 = vpop.permute.xlu0 %2346
          %2348 = vrot.lane.b32.xlu0 %v2272, 24
          %v2349 = vpop.permute.xlu0 %2348
          %2350 = vrot.lane.b32.xlu0 %v2273, 24
          %v2351 = vpop.permute.xlu0 %2350
          %2352 = vrot.lane.b32.xlu0 %v2274, 24
          %v2353 = vpop.permute.xlu0 %2352
          %2354 = vrot.lane.b32.xlu0 %v2275, 24
          %v2355 = vpop.permute.xlu0 %2354
          %2356 = vrot.lane.b32.xlu0 %v2276, 24
          %v2357 = vpop.permute.xlu0 %2356
          %2358 = vrot.lane.b32.xlu0 %v2277, 24
          %v2359 = vpop.permute.xlu0 %2358
          %2360 = vrot.lane.b32.xlu0 %v2278, 24
          %v2361 = vpop.permute.xlu0 %2360
          %2362 = vrot.lane.b32.xlu0 %v2279, 24
          %v2363 = vpop.permute.xlu0 %2362
          %2364 = vrot.lane.b32.xlu0 %v2280, 24
          %v2365 = vpop.permute.xlu0 %2364
          %2366 = vrot.lane.b32.xlu0 %v2281, 24
          %v2367 = vpop.permute.xlu0 %2366
          %2368 = vrot.lane.b32.xlu0 %v2282, 24
          %v2369 = vpop.permute.xlu0 %2368
          %2370 = vrot.lane.b32.xlu0 %v2283, 24
          %v2371 = vpop.permute.xlu0 %2370
          %2372 = vrot.lane.b32.xlu0 %v2284, 24
          %v2373 = vpop.permute.xlu0 %2372
          %2374 = vrot.lane.b32.xlu0 %v2285, 24
          %v2375 = vpop.permute.xlu0 %2374
          %2376 = vrot.lane.b32.xlu0 %v2286, 24
          %v2377 = vpop.permute.xlu0 %2376
          %2378 = vrot.lane.b32.xlu0 %v2287, 24
          %v2379 = vpop.permute.xlu0 %2378
          %2380 = vrot.lane.b32.xlu0 %v2288, 24
          %v2381 = vpop.permute.xlu0 %2380
          %2382 = vrot.lane.b32.xlu0 %v2289, 24
          %v2383 = vpop.permute.xlu0 %2382
          %2384 = vrot.lane.b32.xlu0 %v2290, 24
          %v2385 = vpop.permute.xlu0 %2384
          %2386 = vrot.lane.b32.xlu0 %v2291, 24
          %v2387 = vpop.permute.xlu0 %2386
          %vm2420 = vcmask 224448
          %2421 = vst.msk [vmem:[#allocation2] sm:$0xf] %vm2420, %v2325
          %2422 = vst.msk [vmem:[#allocation2 + $0x4] sm:$0xf] %vm2420, %v2327
          %2423 = vst.msk [vmem:[#allocation2 + $0x8] sm:$0xf] %vm2420, %v2329
          %2424 = vst.msk [vmem:[#allocation2 + $0xc] sm:$0xf] %vm2420, %v2331
          %2425 = vst.msk [vmem:[#allocation2 + $0x10] sm:$0xf] %vm2420, %v2333
          %2426 = vst.msk [vmem:[#allocation2 + $0x14] sm:$0xf] %vm2420, %v2335
          %2427 = vst.msk [vmem:[#allocation2 + $0x18] sm:$0xf] %vm2420, %v2337
          %2428 = vst.msk [vmem:[#allocation2 + $0x1c] sm:$0xf] %vm2420, %v2339
          %2429 = vst.msk [vmem:[#allocation2 + $0x20] sm:$0xf] %vm2420, %v2341
          %2430 = vst.msk [vmem:[#allocation2 + $0x24] sm:$0xf] %vm2420, %v2343
          %2431 = vst.msk [vmem:[#allocation2 + $0x28] sm:$0xf] %vm2420, %v2345
          %2432 = vst.msk [vmem:[#allocation2 + $0x2c] sm:$0xf] %vm2420, %v2347
          %2433 = vst.msk [vmem:[#allocation2 + $0x30] sm:$0xf] %vm2420, %v2349
          %2434 = vst.msk [vmem:[#allocation2 + $0x34] sm:$0xf] %vm2420, %v2351
          %2435 = vst.msk [vmem:[#allocation2 + $0x38] sm:$0xf] %vm2420, %v2353
          %2436 = vst.msk [vmem:[#allocation2 + $0x3c] sm:$0xf] %vm2420, %v2355
          %2437 = vst.msk [vmem:[#allocation2 + $0x40] sm:$0xf] %vm2420, %v2357
          %2438 = vst.msk [vmem:[#allocation2 + $0x44] sm:$0xf] %vm2420, %v2359
          %2439 = vst.msk [vmem:[#allocation2 + $0x48] sm:$0xf] %vm2420, %v2361
          %2440 = vst.msk [vmem:[#allocation2 + $0x4c] sm:$0xf] %vm2420, %v2363
          %2441 = vst.msk [vmem:[#allocation2 + $0x50] sm:$0xf] %vm2420, %v2365
          %2442 = vst.msk [vmem:[#allocation2 + $0x54] sm:$0xf] %vm2420, %v2367
          %2443 = vst.msk [vmem:[#allocation2 + $0x58] sm:$0xf] %vm2420, %v2369
          %2444 = vst.msk [vmem:[#allocation2 + $0x5c] sm:$0xf] %vm2420, %v2371
          %2445 = vst.msk [vmem:[#allocation2 + $0x60] sm:$0xf] %vm2420, %v2373
          %2446 = vst.msk [vmem:[#allocation2 + $0x64] sm:$0xf] %vm2420, %v2375
          %2447 = vst.msk [vmem:[#allocation2 + $0x68] sm:$0xf] %vm2420, %v2377
          %2448 = vst.msk [vmem:[#allocation2 + $0x6c] sm:$0xf] %vm2420, %v2379
          %2449 = vst.msk [vmem:[#allocation2 + $0x70] sm:$0xf] %vm2420, %v2381
          %2450 = vst.msk [vmem:[#allocation2 + $0x74] sm:$0xf] %vm2420, %v2383
          %2451 = vst.msk [vmem:[#allocation2 + $0x78] sm:$0xf] %vm2420, %v2385
          %2452 = vst.msk [vmem:[#allocation2 + $0x7c] sm:$0xf] %vm2420, %v2387
          %v2453 = vld [vmem:[%s2259] sm:$0xf]
          %v2454 = vld [vmem:[%s2259 + $0x4] sm:$0xf]
          %v2455 = vld [vmem:[%s2259 + $0x8] sm:$0x1]
          %v2456 = vld [vmem:[%s2259 + $0xc] sm:$0xf]
          %v2457 = vld [vmem:[%s2259 + $0x10] sm:$0xf]
          %v2458 = vld [vmem:[%s2259 + $0x14] sm:$0x1]
          %v2459 = vld [vmem:[%s2259 + $0x18] sm:$0xf]
          %v2460 = vld [vmem:[%s2259 + $0x1c] sm:$0xf]
          %v2461 = vld [vmem:[%s2259 + $0x20] sm:$0x1]
          %v2462 = vld [vmem:[%s2259 + $0x24] sm:$0xf]
          %v2463 = vld [vmem:[%s2259 + $0x28] sm:$0xf]
          %v2464 = vld [vmem:[%s2259 + $0x2c] sm:$0x1]
          %v2465 = vld [vmem:[%s2259 + $0x30] sm:$0xf]
          %v2466 = vld [vmem:[%s2259 + $0x34] sm:$0xf]
          %v2467 = vld [vmem:[%s2259 + $0x38] sm:$0x1]
          %v2468 = vld [vmem:[%s2259 + $0x3c] sm:$0xf]
          %v2469 = vld [vmem:[%s2259 + $0x40] sm:$0xf]
          %v2470 = vld [vmem:[%s2259 + $0x44] sm:$0x1]
          %v2471 = vld [vmem:[%s2259 + $0x48] sm:$0xf]
          %v2472 = vld [vmem:[%s2259 + $0x4c] sm:$0xf]
          %v2473 = vld [vmem:[%s2259 + $0x50] sm:$0x1]
          %v2474 = vld [vmem:[%s2259 + $0x54] sm:$0xf]
          %v2475 = vld [vmem:[%s2259 + $0x58] sm:$0xf]
          %v2476 = vld [vmem:[%s2259 + $0x5c] sm:$0x1]
          %v2477 = vld [vmem:[%s2259 + $0x60] sm:$0xf]
          %v2478 = vld [vmem:[%s2259 + $0x64] sm:$0xf]
          %v2479 = vld [vmem:[%s2259 + $0x68] sm:$0x1]
          %v2480 = vld [vmem:[%s2259 + $0x6c] sm:$0xf]
          %v2481 = vld [vmem:[%s2259 + $0x70] sm:$0xf]
          %v2482 = vld [vmem:[%s2259 + $0x74] sm:$0x1]
          %v2483 = vld [vmem:[%s2259 + $0x78] sm:$0xf]
          %v2484 = vld [vmem:[%s2259 + $0x7c] sm:$0xf]
          %v2485 = vld [vmem:[%s2259 + $0x80] sm:$0x1]
          %v2486 = vld [vmem:[%s2259 + $0x84] sm:$0xf]
          %v2487 = vld [vmem:[%s2259 + $0x88] sm:$0xf]
          %v2488 = vld [vmem:[%s2259 + $0x8c] sm:$0x1]
          %v2489 = vld [vmem:[%s2259 + $0x90] sm:$0xf]
          %v2490 = vld [vmem:[%s2259 + $0x94] sm:$0xf]
          %v2491 = vld [vmem:[%s2259 + $0x98] sm:$0x1]
          %v2492 = vld [vmem:[%s2259 + $0x9c] sm:$0xf]
          %v2493 = vld [vmem:[%s2259 + $0xa0] sm:$0xf]
          %v2494 = vld [vmem:[%s2259 + $0xa4] sm:$0x1]
          %v2495 = vld [vmem:[%s2259 + $0xa8] sm:$0xf]
          %v2496 = vld [vmem:[%s2259 + $0xac] sm:$0xf]
          %v2497 = vld [vmem:[%s2259 + $0xb0] sm:$0x1]
          %v2498 = vld [vmem:[%s2259 + $0xb4] sm:$0xf]
          %v2499 = vld [vmem:[%s2259 + $0xb8] sm:$0xf]
          %v2500 = vld [vmem:[%s2259 + $0xbc] sm:$0x1]
          %v2502 = vshrl.u32 %v2453, 16
          %v2504 = vrot.slane %v2502, 4
          %v2505 = vshll.u32 %v2453, 16
          %v2507 = vrot.slane %v2505, 5
          %v2508 = vor.u32 %v2504, %v2507
          %v2509 = vrot.slane %v2508, 4
          %v2511 = vshll.u32 %v2454, 16
          %v2513 = vrot.slane %v2511, 5
          %v2514 = vsel %vm307, %v2509, %v2513
          %v2515 = vshrl.u32 %v2454, 16
          %v2517 = vrot.slane %v2515, 4
          %v2518 = vor.u32 %v2517, %v2513
          %v2519 = vrot.slane %v2518, 4
          %v2521 = vshll.u32 %v2455, 16
          %v2523 = vrot.slane %v2521, 5
          %v2524 = vsel %vm307, %v2519, %v2523
          %v2526 = vshrl.u32 %v2456, 16
          %v2528 = vrot.slane %v2526, 4
          %v2529 = vshll.u32 %v2456, 16
          %v2531 = vrot.slane %v2529, 5
          %v2532 = vor.u32 %v2528, %v2531
          %v2533 = vrot.slane %v2532, 4
          %v2535 = vshll.u32 %v2457, 16
          %v2537 = vrot.slane %v2535, 5
          %v2538 = vsel %vm307, %v2533, %v2537
          %v2539 = vshrl.u32 %v2457, 16
          %v2541 = vrot.slane %v2539, 4
          %v2542 = vor.u32 %v2541, %v2537
          %v2543 = vrot.slane %v2542, 4
          %v2545 = vshll.u32 %v2458, 16
          %v2547 = vrot.slane %v2545, 5
          %v2548 = vsel %vm307, %v2543, %v2547
          %v2550 = vshrl.u32 %v2459, 16
          %v2552 = vrot.slane %v2550, 4
          %v2553 = vshll.u32 %v2459, 16
          %v2555 = vrot.slane %v2553, 5
          %v2556 = vor.u32 %v2552, %v2555
          %v2557 = vrot.slane %v2556, 4
          %v2559 = vshll.u32 %v2460, 16
          %v2561 = vrot.slane %v2559, 5
          %v2562 = vsel %vm307, %v2557, %v2561
          %v2563 = vshrl.u32 %v2460, 16
          %v2565 = vrot.slane %v2563, 4
          %v2566 = vor.u32 %v2565, %v2561
          %v2567 = vrot.slane %v2566, 4
          %v2569 = vshll.u32 %v2461, 16
          %v2571 = vrot.slane %v2569, 5
          %v2572 = vsel %vm307, %v2567, %v2571
          %v2574 = vshrl.u32 %v2462, 16
          %v2576 = vrot.slane %v2574, 4
          %v2577 = vshll.u32 %v2462, 16
          %v2579 = vrot.slane %v2577, 5
          %v2580 = vor.u32 %v2576, %v2579
          %v2581 = vrot.slane %v2580, 4
          %v2583 = vshll.u32 %v2463, 16
          %v2585 = vrot.slane %v2583, 5
          %v2586 = vsel %vm307, %v2581, %v2585
          %v2587 = vshrl.u32 %v2463, 16
          %v2589 = vrot.slane %v2587, 4
          %v2590 = vor.u32 %v2589, %v2585
          %v2591 = vrot.slane %v2590, 4
          %v2593 = vshll.u32 %v2464, 16
          %v2595 = vrot.slane %v2593, 5
          %v2596 = vsel %vm307, %v2591, %v2595
          %v2598 = vshrl.u32 %v2465, 16
          %v2600 = vrot.slane %v2598, 4
          %v2601 = vshll.u32 %v2465, 16
          %v2603 = vrot.slane %v2601, 5
          %v2604 = vor.u32 %v2600, %v2603
          %v2605 = vrot.slane %v2604, 4
          %v2607 = vshll.u32 %v2466, 16
          %v2609 = vrot.slane %v2607, 5
          %v2610 = vsel %vm307, %v2605, %v2609
          %v2611 = vshrl.u32 %v2466, 16
          %v2613 = vrot.slane %v2611, 4
          %v2614 = vor.u32 %v2613, %v2609
          %v2615 = vrot.slane %v2614, 4
          %v2617 = vshll.u32 %v2467, 16
          %v2619 = vrot.slane %v2617, 5
          %v2620 = vsel %vm307, %v2615, %v2619
          %v2622 = vshrl.u32 %v2468, 16
          %v2624 = vrot.slane %v2622, 4
          %v2625 = vshll.u32 %v2468, 16
          %v2627 = vrot.slane %v2625, 5
          %v2628 = vor.u32 %v2624, %v2627
          %v2629 = vrot.slane %v2628, 4
          %v2631 = vshll.u32 %v2469, 16
          %v2633 = vrot.slane %v2631, 5
          %v2634 = vsel %vm307, %v2629, %v2633
          %v2635 = vshrl.u32 %v2469, 16
          %v2637 = vrot.slane %v2635, 4
          %v2638 = vor.u32 %v2637, %v2633
          %v2639 = vrot.slane %v2638, 4
          %v2641 = vshll.u32 %v2470, 16
          %v2643 = vrot.slane %v2641, 5
          %v2644 = vsel %vm307, %v2639, %v2643
          %v2646 = vshrl.u32 %v2471, 16
          %v2648 = vrot.slane %v2646, 4
          %v2649 = vshll.u32 %v2471, 16
          %v2651 = vrot.slane %v2649, 5
          %v2652 = vor.u32 %v2648, %v2651
          %v2653 = vrot.slane %v2652, 4
          %v2655 = vshll.u32 %v2472, 16
          %v2657 = vrot.slane %v2655, 5
          %v2658 = vsel %vm307, %v2653, %v2657
          %v2659 = vshrl.u32 %v2472, 16
          %v2661 = vrot.slane %v2659, 4
          %v2662 = vor.u32 %v2661, %v2657
          %v2663 = vrot.slane %v2662, 4
          %v2665 = vshll.u32 %v2473, 16
          %v2667 = vrot.slane %v2665, 5
          %v2668 = vsel %vm307, %v2663, %v2667
          %v2670 = vshrl.u32 %v2474, 16
          %v2672 = vrot.slane %v2670, 4
          %v2673 = vshll.u32 %v2474, 16
          %v2675 = vrot.slane %v2673, 5
          %v2676 = vor.u32 %v2672, %v2675
          %v2677 = vrot.slane %v2676, 4
          %v2679 = vshll.u32 %v2475, 16
          %v2681 = vrot.slane %v2679, 5
          %v2682 = vsel %vm307, %v2677, %v2681
          %v2683 = vshrl.u32 %v2475, 16
          %v2685 = vrot.slane %v2683, 4
          %v2686 = vor.u32 %v2685, %v2681
          %v2687 = vrot.slane %v2686, 4
          %v2689 = vshll.u32 %v2476, 16
          %v2691 = vrot.slane %v2689, 5
          %v2692 = vsel %vm307, %v2687, %v2691
          %v2694 = vshrl.u32 %v2477, 16
          %v2696 = vrot.slane %v2694, 4
          %v2697 = vshll.u32 %v2477, 16
          %v2699 = vrot.slane %v2697, 5
          %v2700 = vor.u32 %v2696, %v2699
          %v2701 = vrot.slane %v2700, 4
          %v2703 = vshll.u32 %v2478, 16
          %v2705 = vrot.slane %v2703, 5
          %v2706 = vsel %vm307, %v2701, %v2705
          %v2707 = vshrl.u32 %v2478, 16
          %v2709 = vrot.slane %v2707, 4
          %v2710 = vor.u32 %v2709, %v2705
          %v2711 = vrot.slane %v2710, 4
          %v2713 = vshll.u32 %v2479, 16
          %v2715 = vrot.slane %v2713, 5
          %v2716 = vsel %vm307, %v2711, %v2715
          %v2718 = vshrl.u32 %v2480, 16
          %v2720 = vrot.slane %v2718, 4
          %v2721 = vshll.u32 %v2480, 16
          %v2723 = vrot.slane %v2721, 5
          %v2724 = vor.u32 %v2720, %v2723
          %v2725 = vrot.slane %v2724, 4
          %v2727 = vshll.u32 %v2481, 16
          %v2729 = vrot.slane %v2727, 5
          %v2730 = vsel %vm307, %v2725, %v2729
          %v2731 = vshrl.u32 %v2481, 16
          %v2733 = vrot.slane %v2731, 4
          %v2734 = vor.u32 %v2733, %v2729
          %v2735 = vrot.slane %v2734, 4
          %v2737 = vshll.u32 %v2482, 16
          %v2739 = vrot.slane %v2737, 5
          %v2740 = vsel %vm307, %v2735, %v2739
          %v2742 = vshrl.u32 %v2483, 16
          %v2744 = vrot.slane %v2742, 4
          %v2745 = vshll.u32 %v2483, 16
          %v2747 = vrot.slane %v2745, 5
          %v2748 = vor.u32 %v2744, %v2747
          %v2749 = vrot.slane %v2748, 4
          %v2751 = vshll.u32 %v2484, 16
          %v2753 = vrot.slane %v2751, 5
          %v2754 = vsel %vm307, %v2749, %v2753
          %v2755 = vshrl.u32 %v2484, 16
          %v2757 = vrot.slane %v2755, 4
          %v2758 = vor.u32 %v2757, %v2753
          %v2759 = vrot.slane %v2758, 4
          %v2761 = vshll.u32 %v2485, 16
          %v2763 = vrot.slane %v2761, 5
          %v2764 = vsel %vm307, %v2759, %v2763
          %v2766 = vshrl.u32 %v2486, 16
          %v2768 = vrot.slane %v2766, 4
          %v2769 = vshll.u32 %v2486, 16
          %v2771 = vrot.slane %v2769, 5
          %v2772 = vor.u32 %v2768, %v2771
          %v2773 = vrot.slane %v2772, 4
          %v2775 = vshll.u32 %v2487, 16
          %v2777 = vrot.slane %v2775, 5
          %v2778 = vsel %vm307, %v2773, %v2777
          %v2779 = vshrl.u32 %v2487, 16
          %v2781 = vrot.slane %v2779, 4
          %v2782 = vor.u32 %v2781, %v2777
          %v2783 = vrot.slane %v2782, 4
          %v2785 = vshll.u32 %v2488, 16
          %v2787 = vrot.slane %v2785, 5
          %v2788 = vsel %vm307, %v2783, %v2787
          %v2790 = vshrl.u32 %v2489, 16
          %v2792 = vrot.slane %v2790, 4
          %v2793 = vshll.u32 %v2489, 16
          %v2795 = vrot.slane %v2793, 5
          %v2796 = vor.u32 %v2792, %v2795
          %v2797 = vrot.slane %v2796, 4
          %v2799 = vshll.u32 %v2490, 16
          %v2801 = vrot.slane %v2799, 5
          %v2802 = vsel %vm307, %v2797, %v2801
          %v2803 = vshrl.u32 %v2490, 16
          %v2805 = vrot.slane %v2803, 4
          %v2806 = vor.u32 %v2805, %v2801
          %v2807 = vrot.slane %v2806, 4
          %v2809 = vshll.u32 %v2491, 16
          %v2811 = vrot.slane %v2809, 5
          %v2812 = vsel %vm307, %v2807, %v2811
          %v2814 = vshrl.u32 %v2492, 16
          %v2816 = vrot.slane %v2814, 4
          %v2817 = vshll.u32 %v2492, 16
          %v2819 = vrot.slane %v2817, 5
          %v2820 = vor.u32 %v2816, %v2819
          %v2821 = vrot.slane %v2820, 4
          %v2823 = vshll.u32 %v2493, 16
          %v2825 = vrot.slane %v2823, 5
          %v2826 = vsel %vm307, %v2821, %v2825
          %v2827 = vshrl.u32 %v2493, 16
          %v2829 = vrot.slane %v2827, 4
          %v2830 = vor.u32 %v2829, %v2825
          %v2831 = vrot.slane %v2830, 4
          %v2833 = vshll.u32 %v2494, 16
          %v2835 = vrot.slane %v2833, 5
          %v2836 = vsel %vm307, %v2831, %v2835
          %v2838 = vshrl.u32 %v2495, 16
          %v2840 = vrot.slane %v2838, 4
          %v2841 = vshll.u32 %v2495, 16
          %v2843 = vrot.slane %v2841, 5
          %v2844 = vor.u32 %v2840, %v2843
          %v2845 = vrot.slane %v2844, 4
          %v2847 = vshll.u32 %v2496, 16
          %v2849 = vrot.slane %v2847, 5
          %v2850 = vsel %vm307, %v2845, %v2849
          %v2851 = vshrl.u32 %v2496, 16
          %v2853 = vrot.slane %v2851, 4
          %v2854 = vor.u32 %v2853, %v2849
          %v2855 = vrot.slane %v2854, 4
          %v2857 = vshll.u32 %v2497, 16
          %v2859 = vrot.slane %v2857, 5
          %v2860 = vsel %vm307, %v2855, %v2859
          %v2862 = vshrl.u32 %v2498, 16
          %v2864 = vrot.slane %v2862, 4
          %v2865 = vshll.u32 %v2498, 16
          %v2867 = vrot.slane %v2865, 5
          %v2868 = vor.u32 %v2864, %v2867
          %v2869 = vrot.slane %v2868, 4
          %v2871 = vshll.u32 %v2499, 16
          %v2873 = vrot.slane %v2871, 5
          %v2874 = vsel %vm307, %v2869, %v2873
          %v2875 = vshrl.u32 %v2499, 16
          %v2877 = vrot.slane %v2875, 4
          %v2878 = vor.u32 %v2877, %v2873
          %v2879 = vrot.slane %v2878, 4
          %v2881 = vshll.u32 %v2500, 16
          %v2883 = vrot.slane %v2881, 5
          %v2884 = vsel %vm307, %v2879, %v2883
          %2885 = vrot.lane.b32.xlu0 %v2514, 28
          %v2886 = vpop.permute.xlu0 %2885
          %2887 = vrot.lane.b32.xlu0 %v2524, 28
          %v2888 = vpop.permute.xlu0 %2887
          %2889 = vrot.lane.b32.xlu0 %v2538, 28
          %v2890 = vpop.permute.xlu0 %2889
          %2891 = vrot.lane.b32.xlu0 %v2548, 28
          %v2892 = vpop.permute.xlu0 %2891
          %2893 = vrot.lane.b32.xlu0 %v2562, 28
          %v2894 = vpop.permute.xlu0 %2893
          %2895 = vrot.lane.b32.xlu0 %v2572, 28
          %v2896 = vpop.permute.xlu0 %2895
          %2897 = vrot.lane.b32.xlu0 %v2586, 28
          %v2898 = vpop.permute.xlu0 %2897
          %2899 = vrot.lane.b32.xlu0 %v2596, 28
          %v2900 = vpop.permute.xlu0 %2899
          %2901 = vrot.lane.b32.xlu0 %v2610, 28
          %v2902 = vpop.permute.xlu0 %2901
          %2903 = vrot.lane.b32.xlu0 %v2620, 28
          %v2904 = vpop.permute.xlu0 %2903
          %2905 = vrot.lane.b32.xlu0 %v2634, 28
          %v2906 = vpop.permute.xlu0 %2905
          %2907 = vrot.lane.b32.xlu0 %v2644, 28
          %v2908 = vpop.permute.xlu0 %2907
          %2909 = vrot.lane.b32.xlu0 %v2658, 28
          %v2910 = vpop.permute.xlu0 %2909
          %2911 = vrot.lane.b32.xlu0 %v2668, 28
          %v2912 = vpop.permute.xlu0 %2911
          %2913 = vrot.lane.b32.xlu0 %v2682, 28
          %v2914 = vpop.permute.xlu0 %2913
          %2915 = vrot.lane.b32.xlu0 %v2692, 28
          %v2916 = vpop.permute.xlu0 %2915
          %2917 = vrot.lane.b32.xlu0 %v2706, 28
          %v2918 = vpop.permute.xlu0 %2917
          %2919 = vrot.lane.b32.xlu0 %v2716, 28
          %v2920 = vpop.permute.xlu0 %2919
          %2921 = vrot.lane.b32.xlu0 %v2730, 28
          %v2922 = vpop.permute.xlu0 %2921
          %2923 = vrot.lane.b32.xlu0 %v2740, 28
          %v2924 = vpop.permute.xlu0 %2923
          %2925 = vrot.lane.b32.xlu0 %v2754, 28
          %v2926 = vpop.permute.xlu0 %2925
          %2927 = vrot.lane.b32.xlu0 %v2764, 28
          %v2928 = vpop.permute.xlu0 %2927
          %2929 = vrot.lane.b32.xlu0 %v2778, 28
          %v2930 = vpop.permute.xlu0 %2929
          %2931 = vrot.lane.b32.xlu0 %v2788, 28
          %v2932 = vpop.permute.xlu0 %2931
          %2933 = vrot.lane.b32.xlu0 %v2802, 28
          %v2934 = vpop.permute.xlu0 %2933
          %2935 = vrot.lane.b32.xlu0 %v2812, 28
          %v2936 = vpop.permute.xlu0 %2935
          %2937 = vrot.lane.b32.xlu0 %v2826, 28
          %v2938 = vpop.permute.xlu0 %2937
          %2939 = vrot.lane.b32.xlu0 %v2836, 28
          %v2940 = vpop.permute.xlu0 %2939
          %2941 = vrot.lane.b32.xlu0 %v2850, 28
          %v2942 = vpop.permute.xlu0 %2941
          %2943 = vrot.lane.b32.xlu0 %v2860, 28
          %v2944 = vpop.permute.xlu0 %2943
          %2945 = vrot.lane.b32.xlu0 %v2874, 28
          %v2946 = vpop.permute.xlu0 %2945
          %2947 = vrot.lane.b32.xlu0 %v2884, 28
          %v2948 = vpop.permute.xlu0 %2947
          %vm2981 = vcmask 257248
          %2982 = vst.msk [vmem:[#allocation2] sm:$0xf] %vm2981, %v2886
          %2983 = vst.msk [vmem:[#allocation2 + $0x4] sm:$0xf] %vm2981, %v2888
          %2984 = vst.msk [vmem:[#allocation2 + $0x8] sm:$0xf] %vm2981, %v2890
          %2985 = vst.msk [vmem:[#allocation2 + $0xc] sm:$0xf] %vm2981, %v2892
          %2986 = vst.msk [vmem:[#allocation2 + $0x10] sm:$0xf] %vm2981, %v2894
          %2987 = vst.msk [vmem:[#allocation2 + $0x14] sm:$0xf] %vm2981, %v2896
          %2988 = vst.msk [vmem:[#allocation2 + $0x18] sm:$0xf] %vm2981, %v2898
          %2989 = vst.msk [vmem:[#allocation2 + $0x1c] sm:$0xf] %vm2981, %v2900
          %2990 = vst.msk [vmem:[#allocation2 + $0x20] sm:$0xf] %vm2981, %v2902
          %2991 = vst.msk [vmem:[#allocation2 + $0x24] sm:$0xf] %vm2981, %v2904
          %2992 = vst.msk [vmem:[#allocation2 + $0x28] sm:$0xf] %vm2981, %v2906
          %2993 = vst.msk [vmem:[#allocation2 + $0x2c] sm:$0xf] %vm2981, %v2908
          %2994 = vst.msk [vmem:[#allocation2 + $0x30] sm:$0xf] %vm2981, %v2910
          %2995 = vst.msk [vmem:[#allocation2 + $0x34] sm:$0xf] %vm2981, %v2912
          %2996 = vst.msk [vmem:[#allocation2 + $0x38] sm:$0xf] %vm2981, %v2914
          %2997 = vst.msk [vmem:[#allocation2 + $0x3c] sm:$0xf] %vm2981, %v2916
          %2998 = vst.msk [vmem:[#allocation2 + $0x40] sm:$0xf] %vm2981, %v2918
          %2999 = vst.msk [vmem:[#allocation2 + $0x44] sm:$0xf] %vm2981, %v2920
          %3000 = vst.msk [vmem:[#allocation2 + $0x48] sm:$0xf] %vm2981, %v2922
          %3001 = vst.msk [vmem:[#allocation2 + $0x4c] sm:$0xf] %vm2981, %v2924
          %3002 = vst.msk [vmem:[#allocation2 + $0x50] sm:$0xf] %vm2981, %v2926
          %3003 = vst.msk [vmem:[#allocation2 + $0x54] sm:$0xf] %vm2981, %v2928
          %3004 = vst.msk [vmem:[#allocation2 + $0x58] sm:$0xf] %vm2981, %v2930
          %3005 = vst.msk [vmem:[#allocation2 + $0x5c] sm:$0xf] %vm2981, %v2932
          %3006 = vst.msk [vmem:[#allocation2 + $0x60] sm:$0xf] %vm2981, %v2934
          %3007 = vst.msk [vmem:[#allocation2 + $0x64] sm:$0xf] %vm2981, %v2936
          %3008 = vst.msk [vmem:[#allocation2 + $0x68] sm:$0xf] %vm2981, %v2938
          %3009 = vst.msk [vmem:[#allocation2 + $0x6c] sm:$0xf] %vm2981, %v2940
          %3010 = vst.msk [vmem:[#allocation2 + $0x70] sm:$0xf] %vm2981, %v2942
          %3011 = vst.msk [vmem:[#allocation2 + $0x74] sm:$0xf] %vm2981, %v2944
          %3012 = vst.msk [vmem:[#allocation2 + $0x78] sm:$0xf] %vm2981, %v2946
          %3013 = vst.msk [vmem:[#allocation2 + $0x7c] sm:$0xf] %vm2981, %v2948
          %v3014 = vld [vmem:[%s2259] sm:$0xe]
          %v3015 = vld [vmem:[%s2259 + $0x4] sm:$0xf]
          %v3016 = vld [vmem:[%s2259 + $0x8] sm:$0x1]
          %v3017 = vld [vmem:[%s2259 + $0xc] sm:$0xe]
          %v3018 = vld [vmem:[%s2259 + $0x10] sm:$0xf]
          %v3019 = vld [vmem:[%s2259 + $0x14] sm:$0x1]
          %v3020 = vld [vmem:[%s2259 + $0x18] sm:$0xe]
          %v3021 = vld [vmem:[%s2259 + $0x1c] sm:$0xf]
          %v3022 = vld [vmem:[%s2259 + $0x20] sm:$0x1]
          %v3023 = vld [vmem:[%s2259 + $0x24] sm:$0xe]
          %v3024 = vld [vmem:[%s2259 + $0x28] sm:$0xf]
          %v3025 = vld [vmem:[%s2259 + $0x2c] sm:$0x1]
          %v3026 = vld [vmem:[%s2259 + $0x30] sm:$0xe]
          %v3027 = vld [vmem:[%s2259 + $0x34] sm:$0xf]
          %v3028 = vld [vmem:[%s2259 + $0x38] sm:$0x1]
          %v3029 = vld [vmem:[%s2259 + $0x3c] sm:$0xe]
          %v3030 = vld [vmem:[%s2259 + $0x40] sm:$0xf]
          %v3031 = vld [vmem:[%s2259 + $0x44] sm:$0x1]
          %v3032 = vld [vmem:[%s2259 + $0x48] sm:$0xe]
          %v3033 = vld [vmem:[%s2259 + $0x4c] sm:$0xf]
          %v3034 = vld [vmem:[%s2259 + $0x50] sm:$0x1]
          %v3035 = vld [vmem:[%s2259 + $0x54] sm:$0xe]
          %v3036 = vld [vmem:[%s2259 + $0x58] sm:$0xf]
          %v3037 = vld [vmem:[%s2259 + $0x5c] sm:$0x1]
          %v3038 = vld [vmem:[%s2259 + $0x60] sm:$0xe]
          %v3039 = vld [vmem:[%s2259 + $0x64] sm:$0xf]
          %v3040 = vld [vmem:[%s2259 + $0x68] sm:$0x1]
          %v3041 = vld [vmem:[%s2259 + $0x6c] sm:$0xe]
          %v3042 = vld [vmem:[%s2259 + $0x70] sm:$0xf]
          %v3043 = vld [vmem:[%s2259 + $0x74] sm:$0x1]
          %v3044 = vld [vmem:[%s2259 + $0x78] sm:$0xe]
          %v3045 = vld [vmem:[%s2259 + $0x7c] sm:$0xf]
          %v3046 = vld [vmem:[%s2259 + $0x80] sm:$0x1]
          %v3047 = vld [vmem:[%s2259 + $0x84] sm:$0xe]
          %v3048 = vld [vmem:[%s2259 + $0x88] sm:$0xf]
          %v3049 = vld [vmem:[%s2259 + $0x8c] sm:$0x1]
          %v3050 = vld [vmem:[%s2259 + $0x90] sm:$0xe]
          %v3051 = vld [vmem:[%s2259 + $0x94] sm:$0xf]
          %v3052 = vld [vmem:[%s2259 + $0x98] sm:$0x1]
          %v3053 = vld [vmem:[%s2259 + $0x9c] sm:$0xe]
          %v3054 = vld [vmem:[%s2259 + $0xa0] sm:$0xf]
          %v3055 = vld [vmem:[%s2259 + $0xa4] sm:$0x1]
          %v3056 = vld [vmem:[%s2259 + $0xa8] sm:$0xe]
          %v3057 = vld [vmem:[%s2259 + $0xac] sm:$0xf]
          %v3058 = vld [vmem:[%s2259 + $0xb0] sm:$0x1]
          %v3059 = vld [vmem:[%s2259 + $0xb4] sm:$0xe]
          %v3060 = vld [vmem:[%s2259 + $0xb8] sm:$0xf]
          %v3061 = vld [vmem:[%s2259 + $0xbc] sm:$0x1]
          %v3110 = vrot.slane %v3014, 5
          %v3111 = vrot.slane %v3110, 4
          %v3112 = vrot.slane %v3015, 5
          %v3113 = vsel %vm919, %v3111, %v3112
          %v3114 = vrot.slane %v3112, 4
          %v3115 = vrot.slane %v3016, 5
          %v3116 = vsel %vm919, %v3114, %v3115
          %v3117 = vrot.slane %v3017, 5
          %v3118 = vrot.slane %v3117, 4
          %v3119 = vrot.slane %v3018, 5
          %v3120 = vsel %vm919, %v3118, %v3119
          %v3121 = vrot.slane %v3119, 4
          %v3122 = vrot.slane %v3019, 5
          %v3123 = vsel %vm919, %v3121, %v3122
          %v3124 = vrot.slane %v3020, 5
          %v3125 = vrot.slane %v3124, 4
          %v3126 = vrot.slane %v3021, 5
          %v3127 = vsel %vm919, %v3125, %v3126
          %v3128 = vrot.slane %v3126, 4
          %v3129 = vrot.slane %v3022, 5
          %v3130 = vsel %vm919, %v3128, %v3129
          %v3131 = vrot.slane %v3023, 5
          %v3132 = vrot.slane %v3131, 4
          %v3133 = vrot.slane %v3024, 5
          %v3134 = vsel %vm919, %v3132, %v3133
          %v3135 = vrot.slane %v3133, 4
          %v3136 = vrot.slane %v3025, 5
          %v3137 = vsel %vm919, %v3135, %v3136
          %v3138 = vrot.slane %v3026, 5
          %v3139 = vrot.slane %v3138, 4
          %v3140 = vrot.slane %v3027, 5
          %v3141 = vsel %vm919, %v3139, %v3140
          %v3142 = vrot.slane %v3140, 4
          %v3143 = vrot.slane %v3028, 5
          %v3144 = vsel %vm919, %v3142, %v3143
          %v3145 = vrot.slane %v3029, 5
          %v3146 = vrot.slane %v3145, 4
          %v3147 = vrot.slane %v3030, 5
          %v3148 = vsel %vm919, %v3146, %v3147
          %v3149 = vrot.slane %v3147, 4
          %v3150 = vrot.slane %v3031, 5
          %v3151 = vsel %vm919, %v3149, %v3150
          %v3152 = vrot.slane %v3032, 5
          %v3153 = vrot.slane %v3152, 4
          %v3154 = vrot.slane %v3033, 5
          %v3155 = vsel %vm919, %v3153, %v3154
          %v3156 = vrot.slane %v3154, 4
          %v3157 = vrot.slane %v3034, 5
          %v3158 = vsel %vm919, %v3156, %v3157
          %v3159 = vrot.slane %v3035, 5
          %v3160 = vrot.slane %v3159, 4
          %v3161 = vrot.slane %v3036, 5
          %v3162 = vsel %vm919, %v3160, %v3161
          %v3163 = vrot.slane %v3161, 4
          %v3164 = vrot.slane %v3037, 5
          %v3165 = vsel %vm919, %v3163, %v3164
          %v3166 = vrot.slane %v3038, 5
          %v3167 = vrot.slane %v3166, 4
          %v3168 = vrot.slane %v3039, 5
          %v3169 = vsel %vm919, %v3167, %v3168
          %v3170 = vrot.slane %v3168, 4
          %v3171 = vrot.slane %v3040, 5
          %v3172 = vsel %vm919, %v3170, %v3171
          %v3173 = vrot.slane %v3041, 5
          %v3174 = vrot.slane %v3173, 4
          %v3175 = vrot.slane %v3042, 5
          %v3176 = vsel %vm919, %v3174, %v3175
          %v3177 = vrot.slane %v3175, 4
          %v3178 = vrot.slane %v3043, 5
          %v3179 = vsel %vm919, %v3177, %v3178
          %v3180 = vrot.slane %v3044, 5
          %v3181 = vrot.slane %v3180, 4
          %v3182 = vrot.slane %v3045, 5
          %v3183 = vsel %vm919, %v3181, %v3182
          %v3184 = vrot.slane %v3182, 4
          %v3185 = vrot.slane %v3046, 5
          %v3186 = vsel %vm919, %v3184, %v3185
          %v3187 = vrot.slane %v3047, 5
          %v3188 = vrot.slane %v3187, 4
          %v3189 = vrot.slane %v3048, 5
          %v3190 = vsel %vm919, %v3188, %v3189
          %v3191 = vrot.slane %v3189, 4
          %v3192 = vrot.slane %v3049, 5
          %v3193 = vsel %vm919, %v3191, %v3192
          %v3194 = vrot.slane %v3050, 5
          %v3195 = vrot.slane %v3194, 4
          %v3196 = vrot.slane %v3051, 5
          %v3197 = vsel %vm919, %v3195, %v3196
          %v3198 = vrot.slane %v3196, 4
          %v3199 = vrot.slane %v3052, 5
          %v3200 = vsel %vm919, %v3198, %v3199
          %v3201 = vrot.slane %v3053, 5
          %v3202 = vrot.slane %v3201, 4
          %v3203 = vrot.slane %v3054, 5
          %v3204 = vsel %vm919, %v3202, %v3203
          %v3205 = vrot.slane %v3203, 4
          %v3206 = vrot.slane %v3055, 5
          %v3207 = vsel %vm919, %v3205, %v3206
          %v3208 = vrot.slane %v3056, 5
          %v3209 = vrot.slane %v3208, 4
          %v3210 = vrot.slane %v3057, 5
          %v3211 = vsel %vm919, %v3209, %v3210
          %v3212 = vrot.slane %v3210, 4
          %v3213 = vrot.slane %v3058, 5
          %v3214 = vsel %vm919, %v3212, %v3213
          %v3215 = vrot.slane %v3059, 5
          %v3216 = vrot.slane %v3215, 4
          %v3217 = vrot.slane %v3060, 5
          %v3218 = vsel %vm919, %v3216, %v3217
          %v3219 = vrot.slane %v3217, 4
          %v3220 = vrot.slane %v3061, 5
          %v3221 = vsel %vm919, %v3219, %v3220
          %3222 = vrot.lane.b32.xlu0 %v3113, 32
          %v3223 = vpop.permute.xlu0 %3222
          %3224 = vrot.lane.b32.xlu0 %v3116, 32
          %v3225 = vpop.permute.xlu0 %3224
          %3226 = vrot.lane.b32.xlu0 %v3120, 32
          %v3227 = vpop.permute.xlu0 %3226
          %3228 = vrot.lane.b32.xlu0 %v3123, 32
          %v3229 = vpop.permute.xlu0 %3228
          %3230 = vrot.lane.b32.xlu0 %v3127, 32
          %v3231 = vpop.permute.xlu0 %3230
          %3232 = vrot.lane.b32.xlu0 %v3130, 32
          %v3233 = vpop.permute.xlu0 %3232
          %3234 = vrot.lane.b32.xlu0 %v3134, 32
          %v3235 = vpop.permute.xlu0 %3234
          %3236 = vrot.lane.b32.xlu0 %v3137, 32
          %v3237 = vpop.permute.xlu0 %3236
          %3238 = vrot.lane.b32.xlu0 %v3141, 32
          %v3239 = vpop.permute.xlu0 %3238
          %3240 = vrot.lane.b32.xlu0 %v3144, 32
          %v3241 = vpop.permute.xlu0 %3240
          %3242 = vrot.lane.b32.xlu0 %v3148, 32
          %v3243 = vpop.permute.xlu0 %3242
          %3244 = vrot.lane.b32.xlu0 %v3151, 32
          %v3245 = vpop.permute.xlu0 %3244
          %3246 = vrot.lane.b32.xlu0 %v3155, 32
          %v3247 = vpop.permute.xlu0 %3246
          %3248 = vrot.lane.b32.xlu0 %v3158, 32
          %v3249 = vpop.permute.xlu0 %3248
          %3250 = vrot.lane.b32.xlu0 %v3162, 32
          %v3251 = vpop.permute.xlu0 %3250
          %3252 = vrot.lane.b32.xlu0 %v3165, 32
          %v3253 = vpop.permute.xlu0 %3252
          %3254 = vrot.lane.b32.xlu0 %v3169, 32
          %v3255 = vpop.permute.xlu0 %3254
          %3256 = vrot.lane.b32.xlu0 %v3172, 32
          %v3257 = vpop.permute.xlu0 %3256
          %3258 = vrot.lane.b32.xlu0 %v3176, 32
          %v3259 = vpop.permute.xlu0 %3258
          %3260 = vrot.lane.b32.xlu0 %v3179, 32
          %v3261 = vpop.permute.xlu0 %3260
          %3262 = vrot.lane.b32.xlu0 %v3183, 32
          %v3263 = vpop.permute.xlu0 %3262
          %3264 = vrot.lane.b32.xlu0 %v3186, 32
          %v3265 = vpop.permute.xlu0 %3264
          %3266 = vrot.lane.b32.xlu0 %v3190, 32
          %v3267 = vpop.permute.xlu0 %3266
          %3268 = vrot.lane.b32.xlu0 %v3193, 32
          %v3269 = vpop.permute.xlu0 %3268
          %3270 = vrot.lane.b32.xlu0 %v3197, 32
          %v3271 = vpop.permute.xlu0 %3270
          %3272 = vrot.lane.b32.xlu0 %v3200, 32
          %v3273 = vpop.permute.xlu0 %3272
          %3274 = vrot.lane.b32.xlu0 %v3204, 32
          %v3275 = vpop.permute.xlu0 %3274
          %3276 = vrot.lane.b32.xlu0 %v3207, 32
          %v3277 = vpop.permute.xlu0 %3276
          %3278 = vrot.lane.b32.xlu0 %v3211, 32
          %v3279 = vpop.permute.xlu0 %3278
          %3280 = vrot.lane.b32.xlu0 %v3214, 32
          %v3281 = vpop.permute.xlu0 %3280
          %3282 = vrot.lane.b32.xlu0 %v3218, 32
          %v3283 = vpop.permute.xlu0 %3282
          %3284 = vrot.lane.b32.xlu0 %v3221, 32
          %v3285 = vpop.permute.xlu0 %3284
          %vm3318 = vcmask 290048
          %3319 = vst.msk [vmem:[#allocation2] sm:$0xf] %vm3318, %v3223
          %3320 = vst.msk [vmem:[#allocation2 + $0x4] sm:$0xf] %vm3318, %v3225
          %3321 = vst.msk [vmem:[#allocation2 + $0x8] sm:$0xf] %vm3318, %v3227
          %3322 = vst.msk [vmem:[#allocation2 + $0xc] sm:$0xf] %vm3318, %v3229
          %3323 = vst.msk [vmem:[#allocation2 + $0x10] sm:$0xf] %vm3318, %v3231
          %3324 = vst.msk [vmem:[#allocation2 + $0x14] sm:$0xf] %vm3318, %v3233
          %3325 = vst.msk [vmem:[#allocation2 + $0x18] sm:$0xf] %vm3318, %v3235
          %3326 = vst.msk [vmem:[#allocation2 + $0x1c] sm:$0xf] %vm3318, %v3237
          %3327 = vst.msk [vmem:[#allocation2 + $0x20] sm:$0xf] %vm3318, %v3239
          %3328 = vst.msk [vmem:[#allocation2 + $0x24] sm:$0xf] %vm3318, %v3241
          %3329 = vst.msk [vmem:[#allocation2 + $0x28] sm:$0xf] %vm3318, %v3243
          %3330 = vst.msk [vmem:[#allocation2 + $0x2c] sm:$0xf] %vm3318, %v3245
          %3331 = vst.msk [vmem:[#allocation2 + $0x30] sm:$0xf] %vm3318, %v3247
          %3332 = vst.msk [vmem:[#allocation2 + $0x34] sm:$0xf] %vm3318, %v3249
          %3333 = vst.msk [vmem:[#allocation2 + $0x38] sm:$0xf] %vm3318, %v3251
          %3334 = vst.msk [vmem:[#allocation2 + $0x3c] sm:$0xf] %vm3318, %v3253
          %3335 = vst.msk [vmem:[#allocation2 + $0x40] sm:$0xf] %vm3318, %v3255
          %3336 = vst.msk [vmem:[#allocation2 + $0x44] sm:$0xf] %vm3318, %v3257
          %3337 = vst.msk [vmem:[#allocation2 + $0x48] sm:$0xf] %vm3318, %v3259
          %3338 = vst.msk [vmem:[#allocation2 + $0x4c] sm:$0xf] %vm3318, %v3261
          %3339 = vst.msk [vmem:[#allocation2 + $0x50] sm:$0xf] %vm3318, %v3263
          %3340 = vst.msk [vmem:[#allocation2 + $0x54] sm:$0xf] %vm3318, %v3265
          %3341 = vst.msk [vmem:[#allocation2 + $0x58] sm:$0xf] %vm3318, %v3267
          %3342 = vst.msk [vmem:[#allocation2 + $0x5c] sm:$0xf] %vm3318, %v3269
          %3343 = vst.msk [vmem:[#allocation2 + $0x60] sm:$0xf] %vm3318, %v3271
          %3344 = vst.msk [vmem:[#allocation2 + $0x64] sm:$0xf] %vm3318, %v3273
          %3345 = vst.msk [vmem:[#allocation2 + $0x68] sm:$0xf] %vm3318, %v3275
          %3346 = vst.msk [vmem:[#allocation2 + $0x6c] sm:$0xf] %vm3318, %v3277
          %3347 = vst.msk [vmem:[#allocation2 + $0x70] sm:$0xf] %vm3318, %v3279
          %3348 = vst.msk [vmem:[#allocation2 + $0x74] sm:$0xf] %vm3318, %v3281
          %3349 = vst.msk [vmem:[#allocation2 + $0x78] sm:$0xf] %vm3318, %v3283
          %3350 = vst.msk [vmem:[#allocation2 + $0x7c] sm:$0xf] %vm3318, %v3285
        $region32: #{tpu_custom_call.1} parent=27 // pred_fallthru
          _
        %v3351 = vld [vmem:[#allocation2] sm:$0xf]
        %v3352 = vld [vmem:[#allocation2 + $0x4] sm:$0xf]
        %v3353 = vld [vmem:[#allocation2 + $0x8] sm:$0xf]
        %v3354 = vld [vmem:[#allocation2 + $0xc] sm:$0xf]
        %v3355 = vld [vmem:[#allocation2 + $0x10] sm:$0xf]
        %v3356 = vld [vmem:[#allocation2 + $0x14] sm:$0xf]
        %v3357 = vld [vmem:[#allocation2 + $0x18] sm:$0xf]
        %v3358 = vld [vmem:[#allocation2 + $0x1c] sm:$0xf]
        %v3359 = vld [vmem:[#allocation2 + $0x20] sm:$0xf]
        %v3360 = vld [vmem:[#allocation2 + $0x24] sm:$0xf]
        %v3361 = vld [vmem:[#allocation2 + $0x28] sm:$0xf]
        %v3362 = vld [vmem:[#allocation2 + $0x2c] sm:$0xf]
        %v3363 = vld [vmem:[#allocation2 + $0x30] sm:$0xf]
        %v3364 = vld [vmem:[#allocation2 + $0x34] sm:$0xf]
        %v3365 = vld [vmem:[#allocation2 + $0x38] sm:$0xf]
        %v3366 = vld [vmem:[#allocation2 + $0x3c] sm:$0xf]
        %v3367 = vld [vmem:[#allocation2 + $0x40] sm:$0xf]
        %v3368 = vld [vmem:[#allocation2 + $0x44] sm:$0xf]
        %v3369 = vld [vmem:[#allocation2 + $0x48] sm:$0xf]
        %v3370 = vld [vmem:[#allocation2 + $0x4c] sm:$0xf]
        %v3371 = vld [vmem:[#allocation2 + $0x50] sm:$0xf]
        %v3372 = vld [vmem:[#allocation2 + $0x54] sm:$0xf]
        %v3373 = vld [vmem:[#allocation2 + $0x58] sm:$0xf]
        %v3374 = vld [vmem:[#allocation2 + $0x5c] sm:$0xf]
        %v3375 = vld [vmem:[#allocation2 + $0x60] sm:$0xf]
        %v3376 = vld [vmem:[#allocation2 + $0x64] sm:$0xf]
        %v3377 = vld [vmem:[#allocation2 + $0x68] sm:$0xf]
        %v3378 = vld [vmem:[#allocation2 + $0x6c] sm:$0xf]
        %v3379 = vld [vmem:[#allocation2 + $0x70] sm:$0xf]
        %v3380 = vld [vmem:[#allocation2 + $0x74] sm:$0xf]
        %v3381 = vld [vmem:[#allocation2 + $0x78] sm:$0xf]
        %v3382 = vld [vmem:[#allocation2 + $0x7c] sm:$0xf]
        %v3383 = vld [vmem:[%s181] sm:$0xf]
        %v3384 = vld [vmem:[%s181 + $0x4] sm:$0xf]
        %v3385 = vld [vmem:[%s181 + $0x8] sm:$0xf]
        %v3386 = vld [vmem:[%s181 + $0xc] sm:$0xf]
        %v3387 = vld [vmem:[%s181 + $0x10] sm:$0x3]
        %v3420 = vunpack.c.l.b16 %v3351
        %v3421 = vunpack.c.l.b16 %v3352
        %v3422 = vunpack.c.l.b16 %v3353
        %v3423 = vunpack.c.l.b16 %v3354
        %v3424 = vunpack.c.l.b16 %v3355
        %v3425 = vunpack.c.l.b16 %v3356
        %v3426 = vunpack.c.l.b16 %v3357
        %v3427 = vunpack.c.l.b16 %v3358
        %v3428 = vunpack.c.l.b16 %v3359
        %v3429 = vunpack.c.l.b16 %v3360
        %v3430 = vunpack.c.l.b16 %v3361
        %v3431 = vunpack.c.l.b16 %v3362
        %v3432 = vunpack.c.l.b16 %v3363
        %v3433 = vunpack.c.l.b16 %v3364
        %v3434 = vunpack.c.l.b16 %v3365
        %v3435 = vunpack.c.l.b16 %v3366
        %v3436 = vunpack.c.l.b16 %v3367
        %v3437 = vunpack.c.l.b16 %v3368
        %v3438 = vunpack.c.l.b16 %v3369
        %v3439 = vunpack.c.l.b16 %v3370
        %v3440 = vunpack.c.l.b16 %v3371
        %v3441 = vunpack.c.l.b16 %v3372
        %v3442 = vunpack.c.l.b16 %v3373
        %v3443 = vunpack.c.l.b16 %v3374
        %v3444 = vunpack.c.l.b16 %v3375
        %v3445 = vunpack.c.l.b16 %v3376
        %v3446 = vunpack.c.l.b16 %v3377
        %v3447 = vunpack.c.l.b16 %v3378
        %v3448 = vunpack.c.l.b16 %v3379
        %v3449 = vunpack.c.l.b16 %v3380
        %v3450 = vunpack.c.l.b16 %v3381
        %v3451 = vunpack.c.l.b16 %v3382
        %v3452 = vpack.c.b16 %v3421, %v3420
        %v3453 = vpack.c.b16 %v3423, %v3422
        %v3454 = vpack.c.b16 %v3425, %v3424
        %v3455 = vpack.c.b16 %v3427, %v3426
        %v3456 = vpack.c.b16 %v3429, %v3428
        %v3457 = vpack.c.b16 %v3431, %v3430
        %v3458 = vpack.c.b16 %v3433, %v3432
        %v3459 = vpack.c.b16 %v3435, %v3434
        %v3460 = vpack.c.b16 %v3437, %v3436
        %v3461 = vpack.c.b16 %v3439, %v3438
        %v3462 = vpack.c.b16 %v3441, %v3440
        %v3463 = vpack.c.b16 %v3443, %v3442
        %v3464 = vpack.c.b16 %v3445, %v3444
        %v3465 = vpack.c.b16 %v3447, %v3446
        %v3466 = vpack.c.b16 %v3449, %v3448
        %v3467 = vpack.c.b16 %v3451, %v3450
        %v3473 = vunpack.c.l.b16 %v3383
        %v3474 = vunpack.c.l.b16 %v3384
        %v3475 = vunpack.c.l.b16 %v3385
        %v3476 = vunpack.c.l.b16 %v3386
        %v3477 = vunpack.c.l.b16 %v3387
        %v3478 = vpack.c.b16 %v3474, %v3473
        %v3479 = vpack.c.b16 %v3476, %v3475
        %v3480 = vpack.c.b16 %v3477, %v3477
        %vm3483 = vcmask 293888
        %v3485 = vsel %vm3483, %v3452, 0
        %v3488 = vsel %vm3483, %v3453, 0
        %v3491 = vsel %vm3483, %v3454, 0
        %v3494 = vsel %vm3483, %v3455, 0
        %v3497 = vsel %vm3483, %v3456, 0
        %v3500 = vsel %vm3483, %v3457, 0
        %v3503 = vsel %vm3483, %v3458, 0
        %v3506 = vsel %vm3483, %v3459, 0
        %v3509 = vsel %vm3483, %v3460, 0
        %v3512 = vsel %vm3483, %v3461, 0
        %v3515 = vsel %vm3483, %v3462, 0
        %v3518 = vsel %vm3483, %v3463, 0
        %v3521 = vsel %vm3483, %v3464, 0
        %v3524 = vsel %vm3483, %v3465, 0
        %v3527 = vsel %vm3483, %v3466, 0
        %v3530 = vsel %vm3483, %v3467, 0
        %vm3532 = vcmask 1041408
        %v3534 = vsel %vm3532, %v3480, 0
        %3536 = vmatprep.subr.bf16.mxu0 0
        %3537 = vmatpush1.bf16.msra.mxu0 0
        %3538 = vmatprep.subr.bf16.mxu0 0
        %3539 = vmatpush1.bf16.msra.mxu0 0
        %3540 = vmatprep.subr.bf16.mxu0 0
        %3541 = vmatpush1.bf16.msra.mxu0 0
        %3542 = vmatprep.subr.bf16.mxu0 0
        %3543 = vmatpush1.bf16.msra.mxu0 0
        %3544 = vmatprep.subr.bf16.mxu0 0
        %3545 = vmatpush1.bf16.msra.mxu0 0
        %3546 = vmatprep.subr.bf16.mxu0 0
        %3547 = vmatpush1.bf16.msra.mxu0 %v3534
        %3548 = vmatprep.subr.bf16.mxu0 0
        %3549 = vmatpush1.bf16.msra.mxu0 %v3479
        %3550 = vmatprep.subr.bf16.mxu0 0
        %3551 = vmatpush1.bf16.msra.mxu0 %v3478
        %3552 = vmatprep.subr.bf16.mxu0 0
        %3553 = vmatpush2.bf16.msra.mxu0 0
        %3554 = vmatprep.subr.bf16.mxu0 0
        %3555 = vmatpush2.bf16.msra.mxu0 0
        %3556 = vmatprep.subr.bf16.mxu0 0
        %3557 = vmatpush2.bf16.msra.mxu0 0
        %3558 = vmatprep.subr.bf16.mxu0 0
        %3559 = vmatpush2.bf16.msra.mxu0 0
        %3560 = vmatprep.subr.bf16.mxu0 0
        %3561 = vmatpush2.bf16.msra.mxu0 0
        %3562 = vmatprep.subr.bf16.mxu0 0
        %3563 = vmatpush2.bf16.msra.mxu0 0
        %3564 = vmatprep.subr.bf16.mxu0 0
        %3565 = vmatpush2.bf16.msra.mxu0 0
        %3566 = vmatprep.subr.bf16.mxu0 0
        %3567 = vmatpush2.bf16.msra.mxu0 0
        %3568 = vmatprep.mubr.bf16.mxu0 0
        %3569 = vmatmul.mubr.bf16.gmra.mxu0 %v3485
        %v3570 = vpop.f32.mrf.mxu0
        %v3571 = vadd.f32 0.0, %v3570
        %v3572 = vpop.f32.mrf.mxu0
        %v3573 = vpop.f32.mrf.mxu0
        %v3574 = vadd.f32 0.0, %v3573
        %v3575 = vpop.f32.mrf.mxu0
        %3576 = vmatprep.mubr.bf16.mxu0 0
        %3577 = vmatmul.mubr.bf16.gmra.mxu0 %v3488
        %v3578 = vpop.f32.mrf.mxu0
        %v3579 = vadd.f32 0.0, %v3578
        %v3580 = vpop.f32.mrf.mxu0
        %v3581 = vpop.f32.mrf.mxu0
        %v3582 = vadd.f32 0.0, %v3581
        %v3583 = vpop.f32.mrf.mxu0
        %3584 = vmatprep.mubr.bf16.mxu0 0
        %3585 = vmatmul.mubr.bf16.gmra.mxu0 %v3491
        %v3586 = vpop.f32.mrf.mxu0
        %v3587 = vadd.f32 0.0, %v3586
        %v3588 = vpop.f32.mrf.mxu0
        %v3589 = vpop.f32.mrf.mxu0
        %v3590 = vadd.f32 0.0, %v3589
        %v3591 = vpop.f32.mrf.mxu0
        %3592 = vmatprep.mubr.bf16.mxu0 0
        %3593 = vmatmul.mubr.bf16.gmra.mxu0 %v3494
        %v3594 = vpop.f32.mrf.mxu0
        %v3595 = vadd.f32 0.0, %v3594
        %v3596 = vpop.f32.mrf.mxu0
        %v3597 = vpop.f32.mrf.mxu0
        %v3598 = vadd.f32 0.0, %v3597
        %v3599 = vpop.f32.mrf.mxu0
        %3600 = vmatprep.mubr.bf16.mxu0 0
        %3601 = vmatmul.mubr.bf16.gmra.mxu0 %v3497
        %v3602 = vpop.f32.mrf.mxu0
        %v3603 = vadd.f32 0.0, %v3602
        %v3604 = vpop.f32.mrf.mxu0
        %v3605 = vpop.f32.mrf.mxu0
        %v3606 = vadd.f32 0.0, %v3605
        %v3607 = vpop.f32.mrf.mxu0
        %3608 = vmatprep.mubr.bf16.mxu0 0
        %3609 = vmatmul.mubr.bf16.gmra.mxu0 %v3500
        %v3610 = vpop.f32.mrf.mxu0
        %v3611 = vadd.f32 0.0, %v3610
        %v3612 = vpop.f32.mrf.mxu0
        %v3613 = vpop.f32.mrf.mxu0
        %v3614 = vadd.f32 0.0, %v3613
        %v3615 = vpop.f32.mrf.mxu0
        %3616 = vmatprep.mubr.bf16.mxu0 0
        %3617 = vmatmul.mubr.bf16.gmra.mxu0 %v3503
        %v3618 = vpop.f32.mrf.mxu0
        %v3619 = vadd.f32 0.0, %v3618
        %v3620 = vpop.f32.mrf.mxu0
        %v3621 = vpop.f32.mrf.mxu0
        %v3622 = vadd.f32 0.0, %v3621
        %v3623 = vpop.f32.mrf.mxu0
        %3624 = vmatprep.mubr.bf16.mxu0 0
        %3625 = vmatmul.mubr.bf16.gmra.mxu0 %v3506
        %v3626 = vpop.f32.mrf.mxu0
        %v3627 = vadd.f32 0.0, %v3626
        %v3628 = vpop.f32.mrf.mxu0
        %v3629 = vpop.f32.mrf.mxu0
        %v3630 = vadd.f32 0.0, %v3629
        %v3631 = vpop.f32.mrf.mxu0
        %3632 = vmatprep.mubr.bf16.mxu0 0
        %3633 = vmatmul.mubr.bf16.gmra.mxu0 %v3509
        %v3634 = vpop.f32.mrf.mxu0
        %v3635 = vadd.f32 0.0, %v3634
        %v3636 = vpop.f32.mrf.mxu0
        %v3637 = vpop.f32.mrf.mxu0
        %v3638 = vadd.f32 0.0, %v3637
        %v3639 = vpop.f32.mrf.mxu0
        %3640 = vmatprep.mubr.bf16.mxu0 0
        %3641 = vmatmul.mubr.bf16.gmra.mxu0 %v3512
        %v3642 = vpop.f32.mrf.mxu0
        %v3643 = vadd.f32 0.0, %v3642
        %v3644 = vpop.f32.mrf.mxu0
        %v3645 = vpop.f32.mrf.mxu0
        %v3646 = vadd.f32 0.0, %v3645
        %v3647 = vpop.f32.mrf.mxu0
        %3648 = vmatprep.mubr.bf16.mxu0 0
        %3649 = vmatmul.mubr.bf16.gmra.mxu0 %v3515
        %v3650 = vpop.f32.mrf.mxu0
        %v3651 = vadd.f32 0.0, %v3650
        %v3652 = vpop.f32.mrf.mxu0
        %v3653 = vpop.f32.mrf.mxu0
        %v3654 = vadd.f32 0.0, %v3653
        %v3655 = vpop.f32.mrf.mxu0
        %3656 = vmatprep.mubr.bf16.mxu0 0
        %3657 = vmatmul.mubr.bf16.gmra.mxu0 %v3518
        %v3658 = vpop.f32.mrf.mxu0
        %v3659 = vadd.f32 0.0, %v3658
        %v3660 = vpop.f32.mrf.mxu0
        %v3661 = vpop.f32.mrf.mxu0
        %v3662 = vadd.f32 0.0, %v3661
        %v3663 = vpop.f32.mrf.mxu0
        %3664 = vmatprep.mubr.bf16.mxu0 0
        %3665 = vmatmul.mubr.bf16.gmra.mxu0 %v3521
        %v3666 = vpop.f32.mrf.mxu0
        %v3667 = vadd.f32 0.0, %v3666
        %v3668 = vpop.f32.mrf.mxu0
        %v3669 = vpop.f32.mrf.mxu0
        %v3670 = vadd.f32 0.0, %v3669
        %v3671 = vpop.f32.mrf.mxu0
        %3672 = vmatprep.mubr.bf16.mxu0 0
        %3673 = vmatmul.mubr.bf16.gmra.mxu0 %v3524
        %v3674 = vpop.f32.mrf.mxu0
        %v3675 = vadd.f32 0.0, %v3674
        %v3676 = vpop.f32.mrf.mxu0
        %v3677 = vpop.f32.mrf.mxu0
        %v3678 = vadd.f32 0.0, %v3677
        %v3679 = vpop.f32.mrf.mxu0
        %3680 = vmatprep.mubr.bf16.mxu0 0
        %3681 = vmatmul.mubr.bf16.gmra.mxu0 %v3527
        %v3682 = vpop.f32.mrf.mxu0
        %v3683 = vadd.f32 0.0, %v3682
        %v3684 = vpop.f32.mrf.mxu0
        %v3685 = vpop.f32.mrf.mxu0
        %v3686 = vadd.f32 0.0, %v3685
        %v3687 = vpop.f32.mrf.mxu0
        %3688 = vmatprep.mubr.bf16.mxu0 0
        %3689 = vmatmul.mubr.bf16.gmra.mxu0 %v3530
        %v3690 = vpop.f32.mrf.mxu0
        %v3691 = vadd.f32 0.0, %v3690
        %v3692 = vpop.f32.mrf.mxu0
        %v3693 = vpop.f32.mrf.mxu0
        %v3694 = vadd.f32 0.0, %v3693
        %v3695 = vpop.f32.mrf.mxu0
        %3696 = vdwg.mxu0
        %3697 = vst [vmem:[%s172] sm:$0xff] %v3571
        %3698 = vst [vmem:[%s172 + $0x8] sm:$0xff] %v3574
        %3699 = vst [vmem:[%s172 + $0x10] sm:$0xff] %v3579
        %3700 = vst [vmem:[%s172 + $0x18] sm:$0xff] %v3582
        %3701 = vst [vmem:[%s172 + $0x20] sm:$0xff] %v3587
        %3702 = vst [vmem:[%s172 + $0x28] sm:$0xff] %v3590
        %3703 = vst [vmem:[%s172 + $0x30] sm:$0xff] %v3595
        %3704 = vst [vmem:[%s172 + $0x38] sm:$0xff] %v3598
        %3705 = vst [vmem:[%s172 + $0x40] sm:$0xff] %v3603
        %3706 = vst [vmem:[%s172 + $0x48] sm:$0xff] %v3606
        %3707 = vst [vmem:[%s172 + $0x50] sm:$0xff] %v3611
        %3708 = vst [vmem:[%s172 + $0x58] sm:$0xff] %v3614
        %3709 = vst [vmem:[%s172 + $0x60] sm:$0xff] %v3619
        %3710 = vst [vmem:[%s172 + $0x68] sm:$0xff] %v3622
        %3711 = vst [vmem:[%s172 + $0x70] sm:$0xff] %v3627
        %3712 = vst [vmem:[%s172 + $0x78] sm:$0xff] %v3630
        %3713 = vst [vmem:[%s172 + $0x80] sm:$0xff] %v3635
        %3714 = vst [vmem:[%s172 + $0x88] sm:$0xff] %v3638
        %3715 = vst [vmem:[%s172 + $0x90] sm:$0xff] %v3643
        %3716 = vst [vmem:[%s172 + $0x98] sm:$0xff] %v3646
        %3717 = vst [vmem:[%s172 + $0xa0] sm:$0xff] %v3651
        %3718 = vst [vmem:[%s172 + $0xa8] sm:$0xff] %v3654
        %3719 = vst [vmem:[%s172 + $0xb0] sm:$0xff] %v3659
        %3720 = vst [vmem:[%s172 + $0xb8] sm:$0xff] %v3662
        %3721 = vst [vmem:[%s172 + $0xc0] sm:$0xff] %v3667
        %3722 = vst [vmem:[%s172 + $0xc8] sm:$0xff] %v3670
        %3723 = vst [vmem:[%s172 + $0xd0] sm:$0xff] %v3675
        %3724 = vst [vmem:[%s172 + $0xd8] sm:$0xff] %v3678
        %3725 = vst [vmem:[%s172 + $0xe0] sm:$0xff] %v3683
        %3726 = vst [vmem:[%s172 + $0xe8] sm:$0xff] %v3686
        %3727 = vst [vmem:[%s172 + $0xf0] sm:$0xff] %v3691
        %3728 = vst [vmem:[%s172 + $0xf8] sm:$0xff] %v3694
        %s3729 = sand.u32 %s99, 1
        %s3730 = scalar_lea.sflag [#allocation4], %s3729
        %s3731 = sand.u32 %s99, 1
        %s3732 = smul.addr %s3731, 256
        %s3733 = scalar_lea.vmem [#allocation3], %s3732
        // Predicated region
        $region33: #{tpu_custom_call.1} parent=27 // pred_check
          %p3734 = pneg %p109
        $region34: #{tpu_custom_call.1} parent=27 // pred_check_branch
          %3736 = sbr.rel (%p3734) target = $region36
        $region35: #{tpu_custom_call.1} parent=27 // pred_region
          %s3737 = smul.u32 32, %s22
          %s3739 = ssub.s32 4096, 4096
          %3740 = vsyncadd %s3730, %s3739
          %s3741 = sadd.s32 %s23, %s3737
          %s3742 = smul.addr %s21, 32
          %s3743 = sadd.s32 %s3741, %s3742
          %s3744 = smul.addr %s3743, 128
          %s3745 = scalar_lea.hbm %s2, %s3744
          %s3746 = sshll.u32 %s3733, 4
          %s3747 = int_to_ptr.vmem [resolvable:$true] %s3746
          %3752 = dma.vmem_to_hbm [thread:$0]  %s3747, 4096, %s3745, %s3730, 128, 128, 8
        $region36: #{tpu_custom_call.1} parent=27 // pred_fallthru
          _
      $region28: #{tpu_custom_call.1} parent=5 // pred_fallthru
        _
      %p3753 = scmp.le.s32.totalorder 2, %s11
      // Predicated region
      $region37: #{tpu_custom_call.1} parent=5 // pred_check
        %p3754 = pneg %p3753
      $region38: #{tpu_custom_call.1} parent=5 // pred_check_branch
        %3756 = sbr.rel (%p3754) target = $region40
      $region39: #{tpu_custom_call.1} parent=5 // pred_region
        %s3757 = ssub.s32 %s11, 2
        // Predicated region
        $region41: #{tpu_custom_call.1} parent=39 // pred_check
          %p3758 = pneg %p115
        $region42: #{tpu_custom_call.1} parent=39 // pred_check_branch
          %3760 = sbr.rel (%p3758) target = $region44
        $region43: #{tpu_custom_call.1} parent=39 // pred_region
          %s3761 = sand.u32 %s100, 1
          %s3762 = scalar_lea.sflag [#allocation4], %s3761
          %s3763 = sand.u32 %s100, 1
          %s3764 = smul.addr %s3763, 256
          %s3765 = scalar_lea.vmem [#allocation3], %s3764
          %3766 = dma.done %s3762, 4096
        $region44: #{tpu_custom_call.1} parent=39 // pred_fallthru
          _
      $region40: #{tpu_custom_call.1} parent=5 // pred_fallthru
        _
    $region6: #{tpu_custom_call.1} parent=1 // loop_footer
      %s15 = sadd.s32 1, %s11
    $region7: #{tpu_custom_call.1} parent=1 // loop_footer_branch
      %10 = sbr.rel target = $region3
    $region8: #{tpu_custom_call.1} parent=1 // loop_exit
      _
    %3767 = vsyncpa [#allocation4], 1
    %s3768 = scalar_lea.sflag [#allocation4], 1
    %3769 = vsyncpa %s3768, 1

</llo_original>
